<compile_context>
chip_gen: v5e
topology: v5e:2x2
jax: 0.10.0
libtpu: 0.0.40
codegen_flags: <defaults>
</compile_context>

<pallas_src>
import functools
import math

import jax
import jax.numpy as jnp
from jax.experimental import pallas as pl
from jax.experimental.pallas import tpu as pltpu


# ---------------------------------------------------------------------------
# Kernel 1: matmul + bias + activation (single grid step, all VMEM-resident)
#   x: (M, K) bf16, w: (K, N) bf16, b: (1, N) f32 -> (M, N) out_dtype
# ---------------------------------------------------------------------------
def _matmul_bias_act_kernel(x_ref, w_ref, b_ref, o_ref, *, act):
    acc = jnp.dot(x_ref[...], w_ref[...], preferred_element_type=jnp.float32)
    acc = acc + b_ref[...]                       # (1, N) broadcasts over rows
    if act == "relu":
        acc = jnp.maximum(acc, 0.0)
    elif act == "sigmoid":
        acc = jax.nn.sigmoid(acc)
    o_ref[...] = acc.astype(o_ref.dtype)


def _full_block(shape):
    nd = len(shape)
    return pl.BlockSpec(shape, lambda i, _nd=nd: (0,) * _nd)


def _matmul_bias_act(x, w, b, *, act=None, out_dtype=jnp.bfloat16):
    M, K = x.shape
    N = w.shape[1]
    kernel = functools.partial(_matmul_bias_act_kernel, act=act)
    return pl.pallas_call(
        kernel,
        out_shape=jax.ShapeDtypeStruct((M, N), out_dtype),
        grid=(1,),
        in_specs=[_full_block(x.shape), _full_block(w.shape), _full_block(b.shape)],
        out_specs=_full_block((M, N)),
        cost_estimate=pl.CostEstimate(
            flops=2 * M * K * N,
            transcendentals=(M * N) if act == "sigmoid" else 0,
            bytes_accessed=(M * K * 2 + K * N * 2 + N * 4
                            + M * N * jnp.dtype(out_dtype).itemsize)),
    )(x, w, b)


# ---------------------------------------------------------------------------
# Kernel 2: fused latent tail
#   enc4 -> relu -> pool -> fc1 -> (fc_mu|fc_log_var) -> reparameterize
#   -> fc2 -> dec1 -> relu         (all weights bf16, f32 accumulation)
# ---------------------------------------------------------------------------
def _tail_kernel(x_ref, eps_ref, we4_ref, be4_ref, w1_ref, b1_ref,
                 wml_ref, bml_ref, w2_ref, b2_ref, wd_ref, bd_ref,
                 mulv_ref, dec1_ref, *, latent_dim):
    h4 = jnp.dot(x_ref[...], we4_ref[...],
                 preferred_element_type=jnp.float32) + be4_ref[...]
    h4 = jnp.maximum(h4, 0.0)                           # relu(enc4), (B, 64)
    # adaptive_avg_pool2d(1) over enc4's 1x1 spatial map is the identity.
    hidden = jnp.dot(h4.astype(jnp.bfloat16), w1_ref[...],
                     preferred_element_type=jnp.float32) + b1_ref[...]
    mulv = jnp.dot(hidden.astype(jnp.bfloat16), wml_ref[...],
                   preferred_element_type=jnp.float32) + bml_ref[...]
    mulv_ref[...] = mulv                                # [mu | log_var]
    mu = mulv[:, :latent_dim]
    log_var = mulv[:, latent_dim:]
    z = mu + eps_ref[...] * jnp.exp(0.5 * log_var)      # reparameterize
    h = jnp.dot(z.astype(jnp.bfloat16), w2_ref[...],
                preferred_element_type=jnp.float32) + b2_ref[...]
    d = jnp.dot(h.astype(jnp.bfloat16), wd_ref[...],
                preferred_element_type=jnp.float32) + bd_ref[...]
    dec1_ref[...] = jnp.maximum(d, 0.0).astype(dec1_ref.dtype)   # relu(dec1)


def _fused_tail(x4, eps, p, *, latent_dim):
    B = x4.shape[0]
    args = (x4, eps,
            p["enc4_w"], p["enc4_b"], p["fc1_w"], p["fc1_b"],
            p["fcml_w"], p["fcml_b"], p["fc2_w"], p["fc2_b"],
            p["dec1_w"], p["dec1_b"])
    out_shape = (jax.ShapeDtypeStruct((B, 2 * latent_dim), jnp.float32),
                 jax.ShapeDtypeStruct((B, p["dec1_w"].shape[1]), jnp.bfloat16))
    kernel = functools.partial(_tail_kernel, latent_dim=latent_dim)
    return pl.pallas_call(
        kernel,
        out_shape=out_shape,
        grid=(1,),
        in_specs=[_full_block(a.shape) for a in args],
        out_specs=tuple(_full_block(s.shape) for s in out_shape),
    )(*args)


# ---------------------------------------------------------------------------
# Conv / deconv wrappers (NHWC; patch extraction is pure data movement in XLA)
# ---------------------------------------------------------------------------
def _im2col_nhwc(x, kernel, stride, padding):
    """x: (B, H, W, C) -> (B*Ho*Wo, KH*KW*C); flatten order (kh, kw, c)."""
    B, H, W, C = x.shape
    KH = KW = kernel
    xp = jnp.pad(x, ((0, 0), (padding, padding), (padding, padding), (0, 0)))
    Hp, Wp = H + 2 * padding, W + 2 * padding
    Ho = (Hp - KH) // stride + 1
    Wo = (Wp - KW) // stride + 1
    cols = []
    for kh in range(KH):
        for kw in range(KW):
            cols.append(xp[:, kh:kh + stride * (Ho - 1) + 1:stride,
                           kw:kw + stride * (Wo - 1) + 1:stride, :])
    patches = jnp.concatenate(cols, axis=-1)            # (B, Ho, Wo, KH*KW*C)
    return patches.reshape(B * Ho * Wo, KH * KW * C), Ho, Wo


def conv2d_nhwc(x, layer, *, kernel, stride, padding, act):
    """Standard Conv2d (PyTorch semantics) on an NHWC bf16 input."""
    B = x.shape[0]
    patches, Ho, Wo = _im2col_nhwc(x, kernel, stride, padding)
    out = _matmul_bias_act(patches, layer["w"], layer["b"], act=act,
                           out_dtype=jnp.bfloat16)
    return out.reshape(B, Ho, Wo, layer["w"].shape[1])


def _neighborhood3x3(x):
    """x: (B, H, W, C) -> (B*H*W, 9*C): zero-padded 3x3 neighbourhood per
    pixel, flatten order (di, dj, c)."""
    B, H, W, C = x.shape
    xp = jnp.pad(x, ((0, 0), (1, 1), (1, 1), (0, 0)))
    cols = [xp[:, di:di + H, dj:dj + W, :] for di in range(3) for dj in range(3)]
    return jnp.concatenate(cols, axis=-1).reshape(B * H * W, 9 * C)


def deconv_s2_fold(x, layer, n_out, *, act, out_dtype=jnp.bfloat16):
    """PyTorch ConvTranspose2d(k=4, stride=2, padding=1) via the parity-folded
    formulation: ONE matmul (K=9*Cin, N=4*Cout) then a 2x2 pixel shuffle."""
    B, H, W, _ = x.shape
    patches = _neighborhood3x3(x)                                   # (B*H*W, 9*Cin)
    out = _matmul_bias_act(patches, layer["w"], layer["b"], act=act,
                           out_dtype=out_dtype)                     # (B*H*W, 4*Cout)
    out = out.reshape(B, H, W, 2, 2, n_out)
    out = jnp.transpose(out, (0, 1, 3, 2, 4, 5))                    # (B, H, 2, W, 2, C)
    return out.reshape(B, 2 * H, 2 * W, n_out)


# ---------------------------------------------------------------------------
# Parameter construction (PyTorch-style init) + one-time kernel-ready prep
# ---------------------------------------------------------------------------
def _uni(key, shape, fan_in):
    bound = 1.0 / math.sqrt(fan_in)
    return jax.random.uniform(key, shape, jnp.float32, -bound, bound)


def init_params(key, image_channels=1, kernel_size=4, latent_dim=16, init_channels=8):
    k = kernel_size
    ic = init_channels
    keys = jax.random.split(key, 24)
    p = {}
    p["enc1_w"] = _uni(keys[0], (ic, image_channels, k, k), image_channels * k * k)
    p["enc1_b"] = _uni(keys[1], (ic,), image_channels * k * k)
    p["enc2_w"] = _uni(keys[2], (ic * 2, ic, k, k), ic * k * k)
    p["enc2_b"] = _uni(keys[3], (ic * 2,), ic * k * k)
    p["enc3_w"] = _uni(keys[4], (ic * 4, ic * 2, k, k), ic * 2 * k * k)
    p["enc3_b"] = _uni(keys[5], (ic * 4,), ic * 2 * k * k)
    p["enc4_w"] = _uni(keys[6], (64, ic * 4, k, k), ic * 4 * k * k)
    p["enc4_b"] = _uni(keys[7], (64,), ic * 4 * k * k)
    p["fc1_w"] = _uni(keys[8], (128, 64), 64)
    p["fc1_b"] = _uni(keys[9], (128,), 64)
    p["fc_mu_w"] = _uni(keys[10], (latent_dim, 128), 128)
    p["fc_mu_b"] = _uni(keys[11], (latent_dim,), 128)
    p["fc_lv_w"] = _uni(keys[12], (latent_dim, 128), 128)
    p["fc_lv_b"] = _uni(keys[13], (latent_dim,), 128)
    p["fc2_w"] = _uni(keys[14], (64, latent_dim), latent_dim)
    p["fc2_b"] = _uni(keys[15], (64,), latent_dim)
    p["dec1_w"] = _uni(keys[16], (64, ic * 8, k, k), 64 * k * k)
    p["dec1_b"] = _uni(keys[17], (ic * 8,), 64 * k * k)
    p["dec2_w"] = _uni(keys[18], (ic * 8, ic * 4, k, k), ic * 8 * k * k)
    p["dec2_b"] = _uni(keys[19], (ic * 4,), ic * 8 * k * k)
    p["dec3_w"] = _uni(keys[20], (ic * 4, ic * 2, k, k), ic * 4 * k * k)
    p["dec3_b"] = _uni(keys[21], (ic * 2,), ic * 4 * k * k)
    p["dec4_w"] = _uni(keys[22], (ic * 2, image_channels, k, k), ic * 2 * k * k)
    p["dec4_b"] = _uni(keys[23], (image_channels,), ic * 2 * k * k)
    return p


def _prep_conv(w, b):
    """Conv2d weight (Cout, Cin, KH, KW) -> bf16 (KH*KW*Cin, Cout) matrix."""
    cout = w.shape[0]
    w_mat = jnp.transpose(w, (2, 3, 1, 0)).reshape(-1, cout).astype(jnp.bfloat16)
    return {"w": w_mat, "b": b.astype(jnp.float32).reshape(1, -1)}


# (output parity, input offset) -> ConvTranspose2d kernel tap (k=4, s=2, p=1)
_PARITY_TAPS = {(0, -1): 3, (0, 0): 1, (1, 0): 2, (1, 1): 0}


def _prep_deconv_fold(w, b):
    """ConvTranspose2d weight (Cin, Cout, 4, 4), stride=2, padding=1, folded
    into one bf16 (9*Cin, 4*Cout) matrix over the 3x3 input neighbourhood;
    entries where an output parity does not touch a tap are zero."""
    cin, cout = w.shape[0], w.shape[1]
    wf = jnp.zeros((3, 3, cin, 2, 2, cout), jnp.float32)
    for a in (0, 1):
        for di in (-1, 0, 1):
            kh = _PARITY_TAPS.get((a, di))
            if kh is None:
                continue
            for c in (0, 1):
                for dj in (-1, 0, 1):
                    kw = _PARITY_TAPS.get((c, dj))
                    if kw is None:
                        continue
                    wf = wf.at[di + 1, dj + 1, :, a, c, :].set(w[:, :, kh, kw])
    w_mat = wf.reshape(9 * cin, 4 * cout).astype(jnp.bfloat16)
    b_vec = jnp.tile(b, 4).astype(jnp.float32).reshape(1, -1)
    return {"w": w_mat, "b": b_vec}


def prepare_params(raw, latent_dim=16):
    """One-time transform of PyTorch-layout params into kernel-ready matrices."""
    p = {}
    p["enc1"] = _prep_conv(raw["enc1_w"], raw["enc1_b"])
    p["enc2"] = _prep_conv(raw["enc2_w"], raw["enc2_b"])
    p["enc3"] = _prep_conv(raw["enc3_w"], raw["enc3_b"])
    # enc4 is folded into the tail kernel: (kh, kw, cin)-ordered (512, 64) matrix.
    p["enc4_w"] = jnp.transpose(raw["enc4_w"], (2, 3, 1, 0)).reshape(-1, 64).astype(jnp.bfloat16)
    p["enc4_b"] = raw["enc4_b"].astype(jnp.float32).reshape(1, -1)
    p["fc1_w"] = raw["fc1_w"].T.astype(jnp.bfloat16)                      # (64, 128)
    p["fc1_b"] = raw["fc1_b"].astype(jnp.float32).reshape(1, -1)
    # fc_mu & fc_log_var fused into one (128, 2L) matmul.
    p["fcml_w"] = jnp.concatenate([raw["fc_mu_w"].T, raw["fc_lv_w"].T],
                                  axis=1).astype(jnp.bfloat16)            # (128, 32)
    p["fcml_b"] = jnp.concatenate([raw["fc_mu_b"], raw["fc_lv_b"]]).astype(
        jnp.float32).reshape(1, -1)
    p["fc2_w"] = raw["fc2_w"].T.astype(jnp.bfloat16)                      # (L, 64)
    p["fc2_b"] = raw["fc2_b"].astype(jnp.float32).reshape(1, -1)
    # dec1 (ConvTranspose2d, 1x1 spatial input) as a plain (64, 4*4*Cout) matmul.
    cout1 = raw["dec1_w"].shape[1]
    p["dec1_w"] = jnp.transpose(raw["dec1_w"], (0, 2, 3, 1)).reshape(
        64, 16 * cout1).astype(jnp.bfloat16)
    p["dec1_b"] = jnp.tile(raw["dec1_b"], 16).astype(jnp.float32).reshape(1, -1)
    p["dec2"] = _prep_deconv_fold(raw["dec2_w"], raw["dec2_b"])
    p["dec3"] = _prep_deconv_fold(raw["dec3_w"], raw["dec3_b"])
    p["dec4"] = _prep_deconv_fold(raw["dec4_w"], raw["dec4_b"])
    return p


# ---------------------------------------------------------------------------
# ConvVAE forward (mirrors the PyTorch module exactly)
# ---------------------------------------------------------------------------
def conv_vae_forward(params, x, eps_key, *, image_channels=1, latent_dim=16,
                     init_channels=8):
    p = params
    ic = init_channels
    h = jnp.transpose(x, (0, 2, 3, 1)).astype(jnp.bfloat16)   # NCHW -> NHWC once
    h = conv2d_nhwc(h, p["enc1"], kernel=4, stride=2, padding=1, act="relu")
    h = conv2d_nhwc(h, p["enc2"], kernel=4, stride=2, padding=1, act="relu")
    h = conv2d_nhwc(h, p["enc3"], kernel=4, stride=2, padding=1, act="relu")
    B, H3, W3, C3 = h.shape
    # enc4 (k=4, s=2, p=0) over a 4x4 map has exactly one output position, so
    # its im2col is the whole map and the layer folds into the tail kernel.
    # TODO(synk): general input sizes would need a separate enc4 call + pool.
    assert H3 == 4 and W3 == 4, "fused tail assumes 32x32 inputs"
    x4 = h.reshape(B, H3 * W3 * C3)                            # (B, 512), (h, w, c) order
    eps = jax.random.normal(eps_key, (B, latent_dim), jnp.float32)
    mulv, dec1 = _fused_tail(x4, eps, p, latent_dim=latent_dim)
    mu = mulv[:, :latent_dim]
    log_var = mulv[:, latent_dim:]
    d = dec1.reshape(B, 4, 4, ic * 8)                          # relu(dec1), NHWC bf16
    d = deconv_s2_fold(d, p["dec2"], ic * 4, act="relu")       # (B, 8, 8, 32)
    d = deconv_s2_fold(d, p["dec3"], ic * 2, act="relu")       # (B, 16, 16, 16)
    d = deconv_s2_fold(d, p["dec4"], image_channels, act="sigmoid",
                       out_dtype=jnp.float32)                  # (B, 32, 32, 1)
    reconstruction = jnp.transpose(d, (0, 3, 1, 2))            # NHWC -> NCHW once
    return reconstruction, mu, log_var


if __name__ == "__main__":
    key = jax.random.PRNGKey(0)
    k_param, k_x, k_eps = jax.random.split(key, 3)

    raw_params = init_params(k_param)
    params = prepare_params(raw_params)                # one-time weight prep
    # enc4 (stride 2, pad 0, k=4) requires spatial >= 32 -> use 32x32 images.
    x = jax.random.uniform(k_x, (2, 1, 32, 32), jnp.float32)

    fwd = jax.jit(conv_vae_forward)
    recon, mu, log_var = fwd(params, x, k_eps)
    jax.block_until_ready((recon, mu, log_var))

    assert recon.shape == (2, 1, 32, 32), recon.shape
    assert mu.shape == (2, 16) and log_var.shape == (2, 16)
    assert bool(jnp.all(jnp.isfinite(recon)))
    assert bool(jnp.all((recon >= 0.0) & (recon <= 1.0)))  # sigmoid output
    print("KERNEL_OK")
</pallas_src>

<mosaic_0001>
module attributes {stable_mosaic.version = 11 : i64} {
  func.func @_matmul_bias_act_kernel(%arg0: i32, %arg1: memref<512x16xbf16, #tpu.memory_space<vmem>>, %arg2: memref<16x8xbf16, #tpu.memory_space<vmem>>, %arg3: memref<1x8xf32, #tpu.memory_space<vmem>>, %arg4: memref<512x8xbf16, #tpu.memory_space<vmem>>) attributes {dimension_semantics = [#tpu.dimension_semantics<arbitrary>], iteration_bounds = array<i64: 1>, scalar_prefetch = 0 : i64, scratch_operands = 0 : i64, tpu.core_type = #tpu.core_type<tc>, window_params = [{pipeline_mode = #tpu.pipeline_mode<synchronous>, transform_indices = @transform_0, window_bounds = array<i64: 512, 16>}, {pipeline_mode = #tpu.pipeline_mode<synchronous>, transform_indices = @transform_1, window_bounds = array<i64: 16, 8>}, {pipeline_mode = #tpu.pipeline_mode<synchronous>, transform_indices = @transform_2, window_bounds = array<i64: 1, 8>}, {pipeline_mode = #tpu.pipeline_mode<synchronous>, transform_indices = @transform_3, window_bounds = array<i64: 512, 8>}]} {
    %c0 = arith.constant 0 : index
    %c0_0 = arith.constant 0 : index
    %0 = vector.load %arg1[%c0, %c0_0] : memref<512x16xbf16, #tpu.memory_space<vmem>>, vector<512x16xbf16>
    %c0_1 = arith.constant 0 : index
    %c0_2 = arith.constant 0 : index
    %1 = vector.load %arg2[%c0_1, %c0_2] : memref<16x8xbf16, #tpu.memory_space<vmem>>, vector<16x8xbf16>
    %cst = arith.constant dense<0.000000e+00> : vector<512x8xf32>
    %2 = tpu.matmul %0, %1, %cst {dimension_numbers = #tpu.dot_dimension_numbers<[1], [0], [0], [1], [0, 0, 1, 1], [], []>} : vector<512x16xbf16>, vector<16x8xbf16>, vector<512x8xf32> -> vector<512x8xf32>
    %c0_3 = arith.constant 0 : index
    %c0_4 = arith.constant 0 : index
    %3 = vector.load %arg3[%c0_3, %c0_4] : memref<1x8xf32, #tpu.memory_space<vmem>>, vector<1x8xf32>
    %4 = vector.broadcast %3 : vector<1x8xf32> to vector<512x8xf32>
    %5 = arith.addf %2, %4 : vector<512x8xf32>
    %cst_5 = arith.constant 0.000000e+00 : f32
    %6 = vector.broadcast %cst_5 : f32 to vector<512x8xf32>
    %7 = arith.maximumf %5, %6 : vector<512x8xf32>
    %8 = arith.truncf %7 : vector<512x8xf32> to vector<512x8xbf16>
    %c0_6 = arith.constant 0 : index
    %c0_7 = arith.constant 0 : index
    %9 = vector.load %arg4[%c0_6, %c0_7] : memref<512x8xbf16, #tpu.memory_space<vmem>>, vector<512x8xbf16>
    tpu.vector_store %arg4[%c0_6, %c0_7], %8 {strides = array<i32>} : memref<512x8xbf16, #tpu.memory_space<vmem>>, vector<512x8xbf16>,
    return
  }
  func.func @transform_0(%arg0: i32) -> (i32, i32) {
    %c0_i32 = arith.constant 0 : i32
    %c0_i32_0 = arith.constant 0 : i32
    %c0_i32_1 = arith.constant 0 : i32
    return %c0_i32, %c0_i32_0 : i32, i32
  }
  func.func @transform_1(%arg0: i32) -> (i32, i32) {
    %c0_i32 = arith.constant 0 : i32
    %c0_i32_0 = arith.constant 0 : i32
    %c0_i32_1 = arith.constant 0 : i32
    return %c0_i32, %c0_i32_0 : i32, i32
  }
  func.func @transform_2(%arg0: i32) -> (i32, i32) {
    %c0_i32 = arith.constant 0 : i32
    %c0_i32_0 = arith.constant 0 : i32
    %c0_i32_1 = arith.constant 0 : i32
    return %c0_i32, %c0_i32_0 : i32, i32
  }
  func.func @transform_3(%arg0: i32) -> (i32, i32) {
    %c0_i32 = arith.constant 0 : i32
    %c0_i32_0 = arith.constant 0 : i32
    %c0_i32_1 = arith.constant 0 : i32
    return %c0_i32, %c0_i32_0 : i32, i32
  }
}

module attributes {stable_mosaic.version = 11 : i64} {
  func.func @_matmul_bias_act_kernel(%arg0: i32, %arg1: memref<128x128xbf16, #tpu.memory_space<vmem>>, %arg2: memref<128x16xbf16, #tpu.memory_space<vmem>>, %arg3: memref<1x16xf32, #tpu.memory_space<vmem>>, %arg4: memref<128x16xbf16, #tpu.memory_space<vmem>>) attributes {dimension_semantics = [#tpu.dimension_semantics<arbitrary>], iteration_bounds = array<i64: 1>, scalar_prefetch = 0 : i64, scratch_operands = 0 : i64, tpu.core_type = #tpu.core_type<tc>, window_params = [{pipeline_mode = #tpu.pipeline_mode<synchronous>, transform_indices = @transform_0, window_bounds = array<i64: 128, 128>}, {pipeline_mode = #tpu.pipeline_mode<synchronous>, transform_indices = @transform_1, window_bounds = array<i64: 128, 16>}, {pipeline_mode = #tpu.pipeline_mode<synchronous>, transform_indices = @transform_2, window_bounds = array<i64: 1, 16>}, {pipeline_mode = #tpu.pipeline_mode<synchronous>, transform_indices = @transform_3, window_bounds = array<i64: 128, 16>}]} {
    %c0 = arith.constant 0 : index
    %c0_0 = arith.constant 0 : index
    %0 = vector.load %arg1[%c0, %c0_0] : memref<128x128xbf16, #tpu.memory_space<vmem>>, vector<128x128xbf16>
    %c0_1 = arith.constant 0 : index
    %c0_2 = arith.constant 0 : index
    %1 = vector.load %arg2[%c0_1, %c0_2] : memref<128x16xbf16, #tpu.memory_space<vmem>>, vector<128x16xbf16>
    %cst = arith.constant dense<0.000000e+00> : vector<128x16xf32>
    %2 = tpu.matmul %0, %1, %cst {dimension_numbers = #tpu.dot_dimension_numbers<[1], [0], [0], [1], [0, 0, 1, 1], [], []>} : vector<128x128xbf16>, vector<128x16xbf16>, vector<128x16xf32> -> vector<128x16xf32>
    %c0_3 = arith.constant 0 : index
    %c0_4 = arith.constant 0 : index
    %3 = vector.load %arg3[%c0_3, %c0_4] : memref<1x16xf32, #tpu.memory_space<vmem>>, vector<1x16xf32>
    %4 = vector.broadcast %3 : vector<1x16xf32> to vector<128x16xf32>
    %5 = arith.addf %2, %4 : vector<128x16xf32>
    %cst_5 = arith.constant 0.000000e+00 : f32
    %6 = vector.broadcast %cst_5 : f32 to vector<128x16xf32>
    %7 = arith.maximumf %5, %6 : vector<128x16xf32>
    %8 = arith.truncf %7 : vector<128x16xf32> to vector<128x16xbf16>
    %c0_6 = arith.constant 0 : index
    %c0_7 = arith.constant 0 : index
    %9 = vector.load %arg4[%c0_6, %c0_7] : memref<128x16xbf16, #tpu.memory_space<vmem>>, vector<128x16xbf16>
    tpu.vector_store %arg4[%c0_6, %c0_7], %8 {strides = array<i32>} : memref<128x16xbf16, #tpu.memory_space<vmem>>, vector<128x16xbf16>,
    return
  }
  func.func @transform_0(%arg0: i32) -> (i32, i32) {
    %c0_i32 = arith.constant 0 : i32
    %c0_i32_0 = arith.constant 0 : i32
    %c0_i32_1 = arith.constant 0 : i32
    return %c0_i32, %c0_i32_0 : i32, i32
  }
  func.func @transform_1(%arg0: i32) -> (i32, i32) {
    %c0_i32 = arith.constant 0 : i32
    %c0_i32_0 = arith.constant 0 : i32
    %c0_i32_1 = arith.constant 0 : i32
    return %c0_i32, %c0_i32_0 : i32, i32
  }
  func.func @transform_2(%arg0: i32) -> (i32, i32) {
    %c0_i32 = arith.constant 0 : i32
    %c0_i32_0 = arith.constant 0 : i32
    %c0_i32_1 = arith.constant 0 : i32
    return %c0_i32, %c0_i32_0 : i32, i32
  }
  func.func @transform_3(%arg0: i32) -> (i32, i32) {
    %c0_i32 = arith.constant 0 : i32
    %c0_i32_0 = arith.constant 0 : i32
    %c0_i32_1 = arith.constant 0 : i32
    return %c0_i32, %c0_i32_0 : i32, i32
  }
}

module attributes {stable_mosaic.version = 11 : i64} {
  func.func @_matmul_bias_act_kernel(%arg0: i32, %arg1: memref<32x256xbf16, #tpu.memory_space<vmem>>, %arg2: memref<256x32xbf16, #tpu.memory_space<vmem>>, %arg3: memref<1x32xf32, #tpu.memory_space<vmem>>, %arg4: memref<32x32xbf16, #tpu.memory_space<vmem>>) attributes {dimension_semantics = [#tpu.dimension_semantics<arbitrary>], iteration_bounds = array<i64: 1>, scalar_prefetch = 0 : i64, scratch_operands = 0 : i64, tpu.core_type = #tpu.core_type<tc>, window_params = [{pipeline_mode = #tpu.pipeline_mode<synchronous>, transform_indices = @transform_0, window_bounds = array<i64: 32, 256>}, {pipeline_mode = #tpu.pipeline_mode<synchronous>, transform_indices = @transform_1, window_bounds = array<i64: 256, 32>}, {pipeline_mode = #tpu.pipeline_mode<synchronous>, transform_indices = @transform_2, window_bounds = array<i64: 1, 32>}, {pipeline_mode = #tpu.pipeline_mode<synchronous>, transform_indices = @transform_3, window_bounds = array<i64: 32, 32>}]} {
    %c0 = arith.constant 0 : index
    %c0_0 = arith.constant 0 : index
    %0 = vector.load %arg1[%c0, %c0_0] : memref<32x256xbf16, #tpu.memory_space<vmem>>, vector<32x256xbf16>
    %c0_1 = arith.constant 0 : index
    %c0_2 = arith.constant 0 : index
    %1 = vector.load %arg2[%c0_1, %c0_2] : memref<256x32xbf16, #tpu.memory_space<vmem>>, vector<256x32xbf16>
    %cst = arith.constant dense<0.000000e+00> : vector<32x32xf32>
    %2 = tpu.matmul %0, %1, %cst {dimension_numbers = #tpu.dot_dimension_numbers<[1], [0], [0], [1], [0, 0, 1, 1], [], []>} : vector<32x256xbf16>, vector<256x32xbf16>, vector<32x32xf32> -> vector<32x32xf32>
    %c0_3 = arith.constant 0 : index
    %c0_4 = arith.constant 0 : index
    %3 = vector.load %arg3[%c0_3, %c0_4] : memref<1x32xf32, #tpu.memory_space<vmem>>, vector<1x32xf32>
    %4 = vector.broadcast %3 : vector<1x32xf32> to vector<32x32xf32>
    %5 = arith.addf %2, %4 : vector<32x32xf32>
    %cst_5 = arith.constant 0.000000e+00 : f32
    %6 = vector.broadcast %cst_5 : f32 to vector<32x32xf32>
    %7 = arith.maximumf %5, %6 : vector<32x32xf32>
    %8 = arith.truncf %7 : vector<32x32xf32> to vector<32x32xbf16>
    %c0_6 = arith.constant 0 : index
    %c0_7 = arith.constant 0 : index
    %9 = vector.load %arg4[%c0_6, %c0_7] : memref<32x32xbf16, #tpu.memory_space<vmem>>, vector<32x32xbf16>
    tpu.vector_store %arg4[%c0_6, %c0_7], %8 {strides = array<i32>} : memref<32x32xbf16, #tpu.memory_space<vmem>>, vector<32x32xbf16>,
    return
  }
  func.func @transform_0(%arg0: i32) -> (i32, i32) {
    %c0_i32 = arith.constant 0 : i32
    %c0_i32_0 = arith.constant 0 : i32
    %c0_i32_1 = arith.constant 0 : i32
    return %c0_i32, %c0_i32_0 : i32, i32
  }
  func.func @transform_1(%arg0: i32) -> (i32, i32) {
    %c0_i32 = arith.constant 0 : i32
    %c0_i32_0 = arith.constant 0 : i32
    %c0_i32_1 = arith.constant 0 : i32
    return %c0_i32, %c0_i32_0 : i32, i32
  }
  func.func @transform_2(%arg0: i32) -> (i32, i32) {
    %c0_i32 = arith.constant 0 : i32
    %c0_i32_0 = arith.constant 0 : i32
    %c0_i32_1 = arith.constant 0 : i32
    return %c0_i32, %c0_i32_0 : i32, i32
  }
  func.func @transform_3(%arg0: i32) -> (i32, i32) {
    %c0_i32 = arith.constant 0 : i32
    %c0_i32_0 = arith.constant 0 : i32
    %c0_i32_1 = arith.constant 0 : i32
    return %c0_i32, %c0_i32_0 : i32, i32
  }
}

module attributes {stable_mosaic.version = 11 : i64} {
  func.func @_tail_kernel(%arg0: i32, %arg1: memref<2x512xbf16, #tpu.memory_space<vmem>>, %arg2: memref<2x16xf32, #tpu.memory_space<vmem>>, %arg3: memref<512x64xbf16, #tpu.memory_space<vmem>>, %arg4: memref<1x64xf32, #tpu.memory_space<vmem>>, %arg5: memref<64x128xbf16, #tpu.memory_space<vmem>>, %arg6: memref<1x128xf32, #tpu.memory_space<vmem>>, %arg7: memref<128x32xbf16, #tpu.memory_space<vmem>>, %arg8: memref<1x32xf32, #tpu.memory_space<vmem>>, %arg9: memref<16x64xbf16, #tpu.memory_space<vmem>>, %arg10: memref<1x64xf32, #tpu.memory_space<vmem>>, %arg11: memref<64x1024xbf16, #tpu.memory_space<vmem>>, %arg12: memref<1x1024xf32, #tpu.memory_space<vmem>>, %arg13: memref<2x32xf32, #tpu.memory_space<vmem>>, %arg14: memref<2x1024xbf16, #tpu.memory_space<vmem>>) attributes {dimension_semantics = [#tpu.dimension_semantics<arbitrary>], iteration_bounds = array<i64: 1>, scalar_prefetch = 0 : i64, scratch_operands = 0 : i64, tpu.core_type = #tpu.core_type<tc>, window_params = [{pipeline_mode = #tpu.pipeline_mode<synchronous>, transform_indices = @transform_0, window_bounds = array<i64: 2, 512>}, {pipeline_mode = #tpu.pipeline_mode<synchronous>, transform_indices = @transform_1, window_bounds = array<i64: 2, 16>}, {pipeline_mode = #tpu.pipeline_mode<synchronous>, transform_indices = @transform_2, window_bounds = array<i64: 512, 64>}, {pipeline_mode = #tpu.pipeline_mode<synchronous>, transform_indices = @transform_3, window_bounds = array<i64: 1, 64>}, {pipeline_mode = #tpu.pipeline_mode<synchronous>, transform_indices = @transform_4, window_bounds = array<i64: 64, 128>}, {pipeline_mode = #tpu.pipeline_mode<synchronous>, transform_indices = @transform_5, window_bounds = array<i64: 1, 128>}, {pipeline_mode = #tpu.pipeline_mode<synchronous>, transform_indices = @transform_6, window_bounds = array<i64: 128, 32>}, {pipeline_mode = #tpu.pipeline_mode<synchronous>, transform_indices = @transform_7, window_bounds = array<i64: 1, 32>}, {pipeline_mode = #tpu.pipeline_mode<synchronous>, transform_indices = @transform_8, window_bounds = array<i64: 16, 64>}, {pipeline_mode = #tpu.pipeline_mode<synchronous>, transform_indices = @transform_9, window_bounds = array<i64: 1, 64>}, {pipeline_mode = #tpu.pipeline_mode<synchronous>, transform_indices = @transform_10, window_bounds = array<i64: 64, 1024>}, {pipeline_mode = #tpu.pipeline_mode<synchronous>, transform_indices = @transform_11, window_bounds = array<i64: 1, 1024>}, {pipeline_mode = #tpu.pipeline_mode<synchronous>, transform_indices = @transform_12, window_bounds = array<i64: 2, 32>}, {pipeline_mode = #tpu.pipeline_mode<synchronous>, transform_indices = @transform_13, window_bounds = array<i64: 2, 1024>}]} {
    %c0 = arith.constant 0 : index
    %c0_0 = arith.constant 0 : index
    %0 = vector.load %arg1[%c0, %c0_0] : memref<2x512xbf16, #tpu.memory_space<vmem>>, vector<2x512xbf16>
    %c0_1 = arith.constant 0 : index
    %c0_2 = arith.constant 0 : index
    %1 = vector.load %arg3[%c0_1, %c0_2] : memref<512x64xbf16, #tpu.memory_space<vmem>>, vector<512x64xbf16>
    %cst = arith.constant dense<0.000000e+00> : vector<2x64xf32>
    %2 = tpu.matmul %0, %1, %cst {dimension_numbers = #tpu.dot_dimension_numbers<[1], [0], [0], [1], [0, 0, 1, 1], [], []>} : vector<2x512xbf16>, vector<512x64xbf16>, vector<2x64xf32> -> vector<2x64xf32>
    %c0_3 = arith.constant 0 : index
    %c0_4 = arith.constant 0 : index
    %3 = vector.load %arg4[%c0_3, %c0_4] : memref<1x64xf32, #tpu.memory_space<vmem>>, vector<1x64xf32>
    %4 = vector.broadcast %3 : vector<1x64xf32> to vector<2x64xf32>
    %5 = arith.addf %2, %4 : vector<2x64xf32>
    %cst_5 = arith.constant 0.000000e+00 : f32
    %6 = vector.broadcast %cst_5 : f32 to vector<2x64xf32>
    %7 = arith.maximumf %5, %6 : vector<2x64xf32>
    %8 = arith.truncf %7 : vector<2x64xf32> to vector<2x64xbf16>
    %c0_6 = arith.constant 0 : index
    %c0_7 = arith.constant 0 : index
    %9 = vector.load %arg5[%c0_6, %c0_7] : memref<64x128xbf16, #tpu.memory_space<vmem>>, vector<64x128xbf16>
    %cst_8 = arith.constant dense<0.000000e+00> : vector<2x128xf32>
    %10 = tpu.matmul %8, %9, %cst_8 {dimension_numbers = #tpu.dot_dimension_numbers<[1], [0], [0], [1], [0, 0, 1, 1], [], []>} : vector<2x64xbf16>, vector<64x128xbf16>, vector<2x128xf32> -> vector<2x128xf32>
    %c0_9 = arith.constant 0 : index
    %c0_10 = arith.constant 0 : index
    %11 = vector.load %arg6[%c0_9, %c0_10] : memref<1x128xf32, #tpu.memory_space<vmem>>, vector<1x128xf32>
    %12 = vector.broadcast %11 : vector<1x128xf32> to vector<2x128xf32>
    %13 = arith.addf %10, %12 : vector<2x128xf32>
    %14 = arith.truncf %13 : vector<2x128xf32> to vector<2x128xbf16>
    %c0_11 = arith.constant 0 : index
    %c0_12 = arith.constant 0 : index
    %15 = vector.load %arg7[%c0_11, %c0_12] : memref<128x32xbf16, #tpu.memory_space<vmem>>, vector<128x32xbf16>
    %cst_13 = arith.constant dense<0.000000e+00> : vector<2x32xf32>
    %16 = tpu.matmul %14, %15, %cst_13 {dimension_numbers = #tpu.dot_dimension_numbers<[1], [0], [0], [1], [0, 0, 1, 1], [], []>} : vector<2x128xbf16>, vector<128x32xbf16>, vector<2x32xf32> -> vector<2x32xf32>
    %c0_14 = arith.constant 0 : index
    %c0_15 = arith.constant 0 : index
    %17 = vector.load %arg8[%c0_14, %c0_15] : memref<1x32xf32, #tpu.memory_space<vmem>>, vector<1x32xf32>
    %18 = vector.broadcast %17 : vector<1x32xf32> to vector<2x32xf32>
    %19 = arith.addf %16, %18 : vector<2x32xf32>
    %c0_16 = arith.constant 0 : index
    %c0_17 = arith.constant 0 : index
    %20 = vector.load %arg13[%c0_16, %c0_17] : memref<2x32xf32, #tpu.memory_space<vmem>>, vector<2x32xf32>
    tpu.vector_store %arg13[%c0_16, %c0_17], %19 {strides = array<i32>} : memref<2x32xf32, #tpu.memory_space<vmem>>, vector<2x32xf32>,
    %21 = vector.extract_strided_slice %19 {offsets = [0, 0], sizes = [2, 16], strides = [1, 1]} : vector<2x32xf32> to vector<2x16xf32>
    %22 = vector.extract_strided_slice %19 {offsets = [0, 16], sizes = [2, 16], strides = [1, 1]} : vector<2x32xf32> to vector<2x16xf32>
    %c0_18 = arith.constant 0 : index
    %c0_19 = arith.constant 0 : index
    %23 = vector.load %arg2[%c0_18, %c0_19] : memref<2x16xf32, #tpu.memory_space<vmem>>, vector<2x16xf32>
    %cst_20 = arith.constant 5.000000e-01 : f32
    %24 = vector.broadcast %cst_20 : f32 to vector<2x16xf32>
    %25 = arith.mulf %24, %22 : vector<2x16xf32>
    %26 = math.exp %25 : vector<2x16xf32>
    %27 = arith.mulf %23, %26 : vector<2x16xf32>
    %28 = arith.addf %21, %27 : vector<2x16xf32>
    %29 = arith.truncf %28 : vector<2x16xf32> to vector<2x16xbf16>
    %c0_21 = arith.constant 0 : index
    %c0_22 = arith.constant 0 : index
    %30 = vector.load %arg9[%c0_21, %c0_22] : memref<16x64xbf16, #tpu.memory_space<vmem>>, vector<16x64xbf16>
    %cst_23 = arith.constant dense<0.000000e+00> : vector<2x64xf32>
    %31 = tpu.matmul %29, %30, %cst_23 {dimension_numbers = #tpu.dot_dimension_numbers<[1], [0], [0], [1], [0, 0, 1, 1], [], []>} : vector<2x16xbf16>, vector<16x64xbf16>, vector<2x64xf32> -> vector<2x64xf32>
    %c0_24 = arith.constant 0 : index
    %c0_25 = arith.constant 0 : index
    %32 = vector.load %arg10[%c0_24, %c0_25] : memref<1x64xf32, #tpu.memory_space<vmem>>, vector<1x64xf32>
    %33 = vector.broadcast %32 : vector<1x64xf32> to vector<2x64xf32>
    %34 = arith.addf %31, %33 : vector<2x64xf32>
    %35 = arith.truncf %34 : vector<2x64xf32> to vector<2x64xbf16>
    %c0_26 = arith.constant 0 : index
    %c0_27 = arith.constant 0 : index
    %36 = vector.load %arg11[%c0_26, %c0_27] : memref<64x1024xbf16, #tpu.memory_space<vmem>>, vector<64x1024xbf16>
    %cst_28 = arith.constant dense<0.000000e+00> : vector<2x1024xf32>
    %37 = tpu.matmul %35, %36, %cst_28 {dimension_numbers = #tpu.dot_dimension_numbers<[1], [0], [0], [1], [0, 0, 1, 1], [], []>} : vector<2x64xbf16>, vector<64x1024xbf16>, vector<2x1024xf32> -> vector<2x1024xf32>
    %c0_29 = arith.constant 0 : index
    %c0_30 = arith.constant 0 : index
    %38 = vector.load %arg12[%c0_29, %c0_30] : memref<1x1024xf32, #tpu.memory_space<vmem>>, vector<1x1024xf32>
    %39 = vector.broadcast %38 : vector<1x1024xf32> to vector<2x1024xf32>
    %40 = arith.addf %37, %39 : vector<2x1024xf32>
    %cst_31 = arith.constant 0.000000e+00 : f32
    %41 = vector.broadcast %cst_31 : f32 to vector<2x1024xf32>
    %42 = arith.maximumf %40, %41 : vector<2x1024xf32>
    %43 = arith.truncf %42 : vector<2x1024xf32> to vector<2x1024xbf16>
    %c0_32 = arith.constant 0 : index
    %c0_33 = arith.constant 0 : index
    %44 = vector.load %arg14[%c0_32, %c0_33] : memref<2x1024xbf16, #tpu.memory_space<vmem>>, vector<2x1024xbf16>
    tpu.vector_store %arg14[%c0_32, %c0_33], %43 {strides = array<i32>} : memref<2x1024xbf16, #tpu.memory_space<vmem>>, vector<2x1024xbf16>,
    return
  }
  func.func @transform_0(%arg0: i32) -> (i32, i32) {
    %c0_i32 = arith.constant 0 : i32
    %c0_i32_0 = arith.constant 0 : i32
    %c0_i32_1 = arith.constant 0 : i32
    return %c0_i32, %c0_i32_0 : i32, i32
  }
  func.func @transform_1(%arg0: i32) -> (i32, i32) {
    %c0_i32 = arith.constant 0 : i32
    %c0_i32_0 = arith.constant 0 : i32
    %c0_i32_1 = arith.constant 0 : i32
    return %c0_i32, %c0_i32_0 : i32, i32
  }
  func.func @transform_2(%arg0: i32) -> (i32, i32) {
    %c0_i32 = arith.constant 0 : i32
    %c0_i32_0 = arith.constant 0 : i32
    %c0_i32_1 = arith.constant 0 : i32
    return %c0_i32, %c0_i32_0 : i32, i32
  }
  func.func @transform_3(%arg0: i32) -> (i32, i32) {
    %c0_i32 = arith.constant 0 : i32
    %c0_i32_0 = arith.constant 0 : i32
    %c0_i32_1 = arith.constant 0 : i32
    return %c0_i32, %c0_i32_0 : i32, i32
  }
  func.func @transform_4(%arg0: i32) -> (i32, i32) {
    %c0_i32 = arith.constant 0 : i32
    %c0_i32_0 = arith.constant 0 : i32
    %c0_i32_1 = arith.constant 0 : i32
    return %c0_i32, %c0_i32_0 : i32, i32
  }
  func.func @transform_5(%arg0: i32) -> (i32, i32) {
    %c0_i32 = arith.constant 0 : i32
    %c0_i32_0 = arith.constant 0 : i32
    %c0_i32_1 = arith.constant 0 : i32
    return %c0_i32, %c0_i32_0 : i32, i32
  }
  func.func @transform_6(%arg0: i32) -> (i32, i32) {
    %c0_i32 = arith.constant 0 : i32
    %c0_i32_0 = arith.constant 0 : i32
    %c0_i32_1 = arith.constant 0 : i32
    return %c0_i32, %c0_i32_0 : i32, i32
  }
  func.func @transform_7(%arg0: i32) -> (i32, i32) {
    %c0_i32 = arith.constant 0 : i32
    %c0_i32_0 = arith.constant 0 : i32
    %c0_i32_1 = arith.constant 0 : i32
    return %c0_i32, %c0_i32_0 : i32, i32
  }
  func.func @transform_8(%arg0: i32) -> (i32, i32) {
    %c0_i32 = arith.constant 0 : i32
    %c0_i32_0 = arith.constant 0 : i32
    %c0_i32_1 = arith.constant 0 : i32
    return %c0_i32, %c0_i32_0 : i32, i32
  }
  func.func @transform_9(%arg0: i32) -> (i32, i32) {
    %c0_i32 = arith.constant 0 : i32
    %c0_i32_0 = arith.constant 0 : i32
    %c0_i32_1 = arith.constant 0 : i32
    return %c0_i32, %c0_i32_0 : i32, i32
  }
  func.func @transform_10(%arg0: i32) -> (i32, i32) {
    %c0_i32 = arith.constant 0 : i32
    %c0_i32_0 = arith.constant 0 : i32
    %c0_i32_1 = arith.constant 0 : i32
    return %c0_i32, %c0_i32_0 : i32, i32
  }
  func.func @transform_11(%arg0: i32) -> (i32, i32) {
    %c0_i32 = arith.constant 0 : i32
    %c0_i32_0 = arith.constant 0 : i32
    %c0_i32_1 = arith.constant 0 : i32
    return %c0_i32, %c0_i32_0 : i32, i32
  }
  func.func @transform_12(%arg0: i32) -> (i32, i32) {
    %c0_i32 = arith.constant 0 : i32
    %c0_i32_0 = arith.constant 0 : i32
    %c0_i32_1 = arith.constant 0 : i32
    return %c0_i32, %c0_i32_0 : i32, i32
  }
  func.func @transform_13(%arg0: i32) -> (i32, i32) {
    %c0_i32 = arith.constant 0 : i32
    %c0_i32_0 = arith.constant 0 : i32
    %c0_i32_1 = arith.constant 0 : i32
    return %c0_i32, %c0_i32_0 : i32, i32
  }
}

module attributes {stable_mosaic.version = 11 : i64} {
  func.func @_matmul_bias_act_kernel(%arg0: i32, %arg1: memref<32x576xbf16, #tpu.memory_space<vmem>>, %arg2: memref<576x128xbf16, #tpu.memory_space<vmem>>, %arg3: memref<1x128xf32, #tpu.memory_space<vmem>>, %arg4: memref<32x128xbf16, #tpu.memory_space<vmem>>) attributes {dimension_semantics = [#tpu.dimension_semantics<arbitrary>], iteration_bounds = array<i64: 1>, scalar_prefetch = 0 : i64, scratch_operands = 0 : i64, tpu.core_type = #tpu.core_type<tc>, window_params = [{pipeline_mode = #tpu.pipeline_mode<synchronous>, transform_indices = @transform_0, window_bounds = array<i64: 32, 576>}, {pipeline_mode = #tpu.pipeline_mode<synchronous>, transform_indices = @transform_1, window_bounds = array<i64: 576, 128>}, {pipeline_mode = #tpu.pipeline_mode<synchronous>, transform_indices = @transform_2, window_bounds = array<i64: 1, 128>}, {pipeline_mode = #tpu.pipeline_mode<synchronous>, transform_indices = @transform_3, window_bounds = array<i64: 32, 128>}]} {
    %c0 = arith.constant 0 : index
    %c0_0 = arith.constant 0 : index
    %0 = vector.load %arg1[%c0, %c0_0] : memref<32x576xbf16, #tpu.memory_space<vmem>>, vector<32x576xbf16>
    %c0_1 = arith.constant 0 : index
    %c0_2 = arith.constant 0 : index
    %1 = vector.load %arg2[%c0_1, %c0_2] : memref<576x128xbf16, #tpu.memory_space<vmem>>, vector<576x128xbf16>
    %cst = arith.constant dense<0.000000e+00> : vector<32x128xf32>
    %2 = tpu.matmul %0, %1, %cst {dimension_numbers = #tpu.dot_dimension_numbers<[1], [0], [0], [1], [0, 0, 1, 1], [], []>} : vector<32x576xbf16>, vector<576x128xbf16>, vector<32x128xf32> -> vector<32x128xf32>
    %c0_3 = arith.constant 0 : index
    %c0_4 = arith.constant 0 : index
    %3 = vector.load %arg3[%c0_3, %c0_4] : memref<1x128xf32, #tpu.memory_space<vmem>>, vector<1x128xf32>
    %4 = vector.broadcast %3 : vector<1x128xf32> to vector<32x128xf32>
    %5 = arith.addf %2, %4 : vector<32x128xf32>
    %cst_5 = arith.constant 0.000000e+00 : f32
    %6 = vector.broadcast %cst_5 : f32 to vector<32x128xf32>
    %7 = arith.maximumf %5, %6 : vector<32x128xf32>
    %8 = arith.truncf %7 : vector<32x128xf32> to vector<32x128xbf16>
    %c0_6 = arith.constant 0 : index
    %c0_7 = arith.constant 0 : index
    %9 = vector.load %arg4[%c0_6, %c0_7] : memref<32x128xbf16, #tpu.memory_space<vmem>>, vector<32x128xbf16>
    tpu.vector_store %arg4[%c0_6, %c0_7], %8 {strides = array<i32>} : memref<32x128xbf16, #tpu.memory_space<vmem>>, vector<32x128xbf16>,
    return
  }
  func.func @transform_0(%arg0: i32) -> (i32, i32) {
    %c0_i32 = arith.constant 0 : i32
    %c0_i32_0 = arith.constant 0 : i32
    %c0_i32_1 = arith.constant 0 : i32
    return %c0_i32, %c0_i32_0 : i32, i32
  }
  func.func @transform_1(%arg0: i32) -> (i32, i32) {
    %c0_i32 = arith.constant 0 : i32
    %c0_i32_0 = arith.constant 0 : i32
    %c0_i32_1 = arith.constant 0 : i32
    return %c0_i32, %c0_i32_0 : i32, i32
  }
  func.func @transform_2(%arg0: i32) -> (i32, i32) {
    %c0_i32 = arith.constant 0 : i32
    %c0_i32_0 = arith.constant 0 : i32
    %c0_i32_1 = arith.constant 0 : i32
    return %c0_i32, %c0_i32_0 : i32, i32
  }
  func.func @transform_3(%arg0: i32) -> (i32, i32) {
    %c0_i32 = arith.constant 0 : i32
    %c0_i32_0 = arith.constant 0 : i32
    %c0_i32_1 = arith.constant 0 : i32
    return %c0_i32, %c0_i32_0 : i32, i32
  }
}

module attributes {stable_mosaic.version = 11 : i64} {
  func.func @_matmul_bias_act_kernel(%arg0: i32, %arg1: memref<128x288xbf16, #tpu.memory_space<vmem>>, %arg2: memref<288x64xbf16, #tpu.memory_space<vmem>>, %arg3: memref<1x64xf32, #tpu.memory_space<vmem>>, %arg4: memref<128x64xbf16, #tpu.memory_space<vmem>>) attributes {dimension_semantics = [#tpu.dimension_semantics<arbitrary>], iteration_bounds = array<i64: 1>, scalar_prefetch = 0 : i64, scratch_operands = 0 : i64, tpu.core_type = #tpu.core_type<tc>, window_params = [{pipeline_mode = #tpu.pipeline_mode<synchronous>, transform_indices = @transform_0, window_bounds = array<i64: 128, 288>}, {pipeline_mode = #tpu.pipeline_mode<synchronous>, transform_indices = @transform_1, window_bounds = array<i64: 288, 64>}, {pipeline_mode = #tpu.pipeline_mode<synchronous>, transform_indices = @transform_2, window_bounds = array<i64: 1, 64>}, {pipeline_mode = #tpu.pipeline_mode<synchronous>, transform_indices = @transform_3, window_bounds = array<i64: 128, 64>}]} {
    %c0 = arith.constant 0 : index
    %c0_0 = arith.constant 0 : index
    %0 = vector.load %arg1[%c0, %c0_0] : memref<128x288xbf16, #tpu.memory_space<vmem>>, vector<128x288xbf16>
    %c0_1 = arith.constant 0 : index
    %c0_2 = arith.constant 0 : index
    %1 = vector.load %arg2[%c0_1, %c0_2] : memref<288x64xbf16, #tpu.memory_space<vmem>>, vector<288x64xbf16>
    %cst = arith.constant dense<0.000000e+00> : vector<128x64xf32>
    %2 = tpu.matmul %0, %1, %cst {dimension_numbers = #tpu.dot_dimension_numbers<[1], [0], [0], [1], [0, 0, 1, 1], [], []>} : vector<128x288xbf16>, vector<288x64xbf16>, vector<128x64xf32> -> vector<128x64xf32>
    %c0_3 = arith.constant 0 : index
    %c0_4 = arith.constant 0 : index
    %3 = vector.load %arg3[%c0_3, %c0_4] : memref<1x64xf32, #tpu.memory_space<vmem>>, vector<1x64xf32>
    %4 = vector.broadcast %3 : vector<1x64xf32> to vector<128x64xf32>
    %5 = arith.addf %2, %4 : vector<128x64xf32>
    %cst_5 = arith.constant 0.000000e+00 : f32
    %6 = vector.broadcast %cst_5 : f32 to vector<128x64xf32>
    %7 = arith.maximumf %5, %6 : vector<128x64xf32>
    %8 = arith.truncf %7 : vector<128x64xf32> to vector<128x64xbf16>
    %c0_6 = arith.constant 0 : index
    %c0_7 = arith.constant 0 : index
    %9 = vector.load %arg4[%c0_6, %c0_7] : memref<128x64xbf16, #tpu.memory_space<vmem>>, vector<128x64xbf16>
    tpu.vector_store %arg4[%c0_6, %c0_7], %8 {strides = array<i32>} : memref<128x64xbf16, #tpu.memory_space<vmem>>, vector<128x64xbf16>,
    return
  }
  func.func @transform_0(%arg0: i32) -> (i32, i32) {
    %c0_i32 = arith.constant 0 : i32
    %c0_i32_0 = arith.constant 0 : i32
    %c0_i32_1 = arith.constant 0 : i32
    return %c0_i32, %c0_i32_0 : i32, i32
  }
  func.func @transform_1(%arg0: i32) -> (i32, i32) {
    %c0_i32 = arith.constant 0 : i32
    %c0_i32_0 = arith.constant 0 : i32
    %c0_i32_1 = arith.constant 0 : i32
    return %c0_i32, %c0_i32_0 : i32, i32
  }
  func.func @transform_2(%arg0: i32) -> (i32, i32) {
    %c0_i32 = arith.constant 0 : i32
    %c0_i32_0 = arith.constant 0 : i32
    %c0_i32_1 = arith.constant 0 : i32
    return %c0_i32, %c0_i32_0 : i32, i32
  }
  func.func @transform_3(%arg0: i32) -> (i32, i32) {
    %c0_i32 = arith.constant 0 : i32
    %c0_i32_0 = arith.constant 0 : i32
    %c0_i32_1 = arith.constant 0 : i32
    return %c0_i32, %c0_i32_0 : i32, i32
  }
}

module attributes {stable_mosaic.version = 11 : i64} {
  func.func @_matmul_bias_act_kernel(%arg0: i32, %arg1: memref<512x144xbf16, #tpu.memory_space<vmem>>, %arg2: memref<144x4xbf16, #tpu.memory_space<vmem>>, %arg3: memref<1x4xf32, #tpu.memory_space<vmem>>, %arg4: memref<512x4xf32, #tpu.memory_space<vmem>>) attributes {dimension_semantics = [#tpu.dimension_semantics<arbitrary>], iteration_bounds = array<i64: 1>, scalar_prefetch = 0 : i64, scratch_operands = 0 : i64, tpu.core_type = #tpu.core_type<tc>, window_params = [{pipeline_mode = #tpu.pipeline_mode<synchronous>, transform_indices = @transform_0, window_bounds = array<i64: 512, 144>}, {pipeline_mode = #tpu.pipeline_mode<synchronous>, transform_indices = @transform_1, window_bounds = array<i64: 144, 4>}, {pipeline_mode = #tpu.pipeline_mode<synchronous>, transform_indices = @transform_2, window_bounds = array<i64: 1, 4>}, {pipeline_mode = #tpu.pipeline_mode<synchronous>, transform_indices = @transform_3, window_bounds = array<i64: 512, 4>}]} {
    %c0 = arith.constant 0 : index
    %c0_0 = arith.constant 0 : index
    %0 = vector.load %arg1[%c0, %c0_0] : memref<512x144xbf16, #tpu.memory_space<vmem>>, vector<512x144xbf16>
    %c0_1 = arith.constant 0 : index
    %c0_2 = arith.constant 0 : index
    %1 = vector.load %arg2[%c0_1, %c0_2] : memref<144x4xbf16, #tpu.memory_space<vmem>>, vector<144x4xbf16>
    %cst = arith.constant dense<0.000000e+00> : vector<512x4xf32>
    %2 = tpu.matmul %0, %1, %cst {dimension_numbers = #tpu.dot_dimension_numbers<[1], [0], [0], [1], [0, 0, 1, 1], [], []>} : vector<512x144xbf16>, vector<144x4xbf16>, vector<512x4xf32> -> vector<512x4xf32>
    %c0_3 = arith.constant 0 : index
    %c0_4 = arith.constant 0 : index
    %3 = vector.load %arg3[%c0_3, %c0_4] : memref<1x4xf32, #tpu.memory_space<vmem>>, vector<1x4xf32>
    %4 = vector.broadcast %3 : vector<1x4xf32> to vector<512x4xf32>
    %5 = arith.addf %2, %4 : vector<512x4xf32>
    %6 = arith.negf %5 : vector<512x4xf32>
    %7 = math.exp %6 : vector<512x4xf32>
    %cst_5 = arith.constant 1.000000e+00 : f32
    %8 = vector.broadcast %cst_5 : f32 to vector<512x4xf32>
    %9 = arith.addf %8, %7 : vector<512x4xf32>
    %10 = arith.divf %8, %9 : vector<512x4xf32>
    %c0_6 = arith.constant 0 : index
    %c0_7 = arith.constant 0 : index
    %11 = vector.load %arg4[%c0_6, %c0_7] : memref<512x4xf32, #tpu.memory_space<vmem>>, vector<512x4xf32>
    tpu.vector_store %arg4[%c0_6, %c0_7], %10 {strides = array<i32>} : memref<512x4xf32, #tpu.memory_space<vmem>>, vector<512x4xf32>,
    return
  }
  func.func @transform_0(%arg0: i32) -> (i32, i32) {
    %c0_i32 = arith.constant 0 : i32
    %c0_i32_0 = arith.constant 0 : i32
    %c0_i32_1 = arith.constant 0 : i32
    return %c0_i32, %c0_i32_0 : i32, i32
  }
  func.func @transform_1(%arg0: i32) -> (i32, i32) {
    %c0_i32 = arith.constant 0 : i32
    %c0_i32_0 = arith.constant 0 : i32
    %c0_i32_1 = arith.constant 0 : i32
    return %c0_i32, %c0_i32_0 : i32, i32
  }
  func.func @transform_2(%arg0: i32) -> (i32, i32) {
    %c0_i32 = arith.constant 0 : i32
    %c0_i32_0 = arith.constant 0 : i32
    %c0_i32_1 = arith.constant 0 : i32
    return %c0_i32, %c0_i32_0 : i32, i32
  }
  func.func @transform_3(%arg0: i32) -> (i32, i32) {
    %c0_i32 = arith.constant 0 : i32
    %c0_i32_0 = arith.constant 0 : i32
    %c0_i32_1 = arith.constant 0 : i32
    return %c0_i32, %c0_i32_0 : i32, i32
  }
}

</mosaic_0001>

<llo_original>
// kernel: conv_vae_forward.7
$region0: #{conv_vae_forward.7}
  #allocation0 [shape = 'u32[]', space=smem, size = 0x4, offset = 0x4, fixed_abs, tag = 'smem constant byte address 0x4 - core index']
  #allocation1 [shape = 'u32[72,128]{1,0:T(1,128)}', space=vmem, size = 0x9000, scoped, tag = 'internal scratch']
  %s0 = inlined_call_operand.vmem [shape: bf16[512,16], index: 0, kind: input, shape index: {}]
  %s1 = inlined_call_operand.vmem [shape: bf16[16,8], index: 1, kind: input, shape index: {}]
  %s2 = inlined_call_operand.vmem [shape: f32[1,8], index: 2, kind: input, shape index: {}]
  %s3 = inlined_call_operand.vmem [shape: bf16[512,8], index: 3, kind: output, shape index: {}]
  %s4 = sld [smem:[#allocation0]]
  $region22: #{conv_vae_forward.7} parent=0
    _
  %s6 = ssub.s32 1, %s4
  %s7 = scalar_select 0, %s6, %s4
  // Predicated region
  $region2: #{conv_vae_forward.7} parent=0 // pred_check
    _
  $region3: #{conv_vae_forward.7} parent=0 // pred_check_branch
    %9 = sbr.rel (0) target = $region5
  $region4: #{conv_vae_forward.7} parent=0 // pred_region
    _
  $region5: #{conv_vae_forward.7} parent=0 // pred_fallthru
    _
  // Predicated region
  $region6: #{conv_vae_forward.7} parent=0 // pred_check
    _
  $region7: #{conv_vae_forward.7} parent=0 // pred_check_branch
    %11 = sbr.rel (0) target = $region9
  $region8: #{conv_vae_forward.7} parent=0 // pred_region
    _
  $region9: #{conv_vae_forward.7} parent=0 // pred_fallthru
    _
  // Predicated region
  $region10: #{conv_vae_forward.7} parent=0 // pred_check
    _
  $region11: #{conv_vae_forward.7} parent=0 // pred_check_branch
    %13 = sbr.rel (0) target = $region13
  $region12: #{conv_vae_forward.7} parent=0 // pred_region
    _
  $region13: #{conv_vae_forward.7} parent=0 // pred_fallthru
    _
  %v15 = vld [vmem:[%s0] sm:$0xf]
  %v16 = vld [vmem:[%s0 + $0x4] sm:$0xf]
  %v17 = vld [vmem:[%s0 + $0x8] sm:$0xf]
  %v18 = vld [vmem:[%s0 + $0xc] sm:$0xf]
  %v19 = vld [vmem:[%s0 + $0x10] sm:$0xf]
  %v20 = vld [vmem:[%s0 + $0x14] sm:$0xf]
  %v21 = vld [vmem:[%s0 + $0x18] sm:$0xf]
  %v22 = vld [vmem:[%s0 + $0x1c] sm:$0xf]
  %v23 = vld [vmem:[%s0 + $0x20] sm:$0xf]
  %v24 = vld [vmem:[%s0 + $0x24] sm:$0xf]
  %v25 = vld [vmem:[%s0 + $0x28] sm:$0xf]
  %v26 = vld [vmem:[%s0 + $0x2c] sm:$0xf]
  %v27 = vld [vmem:[%s0 + $0x30] sm:$0xf]
  %v28 = vld [vmem:[%s0 + $0x34] sm:$0xf]
  %v29 = vld [vmem:[%s0 + $0x38] sm:$0xf]
  %v30 = vld [vmem:[%s0 + $0x3c] sm:$0xf]
  %v31 = vld [vmem:[%s0 + $0x40] sm:$0xf]
  %v32 = vld [vmem:[%s0 + $0x44] sm:$0xf]
  %v33 = vld [vmem:[%s0 + $0x48] sm:$0xf]
  %v34 = vld [vmem:[%s0 + $0x4c] sm:$0xf]
  %v35 = vld [vmem:[%s0 + $0x50] sm:$0xf]
  %v36 = vld [vmem:[%s0 + $0x54] sm:$0xf]
  %v37 = vld [vmem:[%s0 + $0x58] sm:$0xf]
  %v38 = vld [vmem:[%s0 + $0x5c] sm:$0xf]
  %v39 = vld [vmem:[%s0 + $0x60] sm:$0xf]
  %v40 = vld [vmem:[%s0 + $0x64] sm:$0xf]
  %v41 = vld [vmem:[%s0 + $0x68] sm:$0xf]
  %v42 = vld [vmem:[%s0 + $0x6c] sm:$0xf]
  %v43 = vld [vmem:[%s0 + $0x70] sm:$0xf]
  %v44 = vld [vmem:[%s0 + $0x74] sm:$0xf]
  %v45 = vld [vmem:[%s0 + $0x78] sm:$0xf]
  %v46 = vld [vmem:[%s0 + $0x7c] sm:$0xf]
  %v47 = vld [vmem:[%s0 + $0x80] sm:$0xf]
  %v48 = vld [vmem:[%s0 + $0x84] sm:$0xf]
  %v49 = vld [vmem:[%s0 + $0x88] sm:$0xf]
  %v50 = vld [vmem:[%s0 + $0x8c] sm:$0xf]
  %v51 = vld [vmem:[%s0 + $0x90] sm:$0xf]
  %v52 = vld [vmem:[%s0 + $0x94] sm:$0xf]
  %v53 = vld [vmem:[%s0 + $0x98] sm:$0xf]
  %v54 = vld [vmem:[%s0 + $0x9c] sm:$0xf]
  %v55 = vld [vmem:[%s0 + $0xa0] sm:$0xf]
  %v56 = vld [vmem:[%s0 + $0xa4] sm:$0xf]
  %v57 = vld [vmem:[%s0 + $0xa8] sm:$0xf]
  %v58 = vld [vmem:[%s0 + $0xac] sm:$0xf]
  %v59 = vld [vmem:[%s0 + $0xb0] sm:$0xf]
  %v60 = vld [vmem:[%s0 + $0xb4] sm:$0xf]
  %v61 = vld [vmem:[%s0 + $0xb8] sm:$0xf]
  %v62 = vld [vmem:[%s0 + $0xbc] sm:$0xf]
  %v63 = vld [vmem:[%s0 + $0xc0] sm:$0xf]
  %v64 = vld [vmem:[%s0 + $0xc4] sm:$0xf]
  %v65 = vld [vmem:[%s0 + $0xc8] sm:$0xf]
  %v66 = vld [vmem:[%s0 + $0xcc] sm:$0xf]
  %v67 = vld [vmem:[%s0 + $0xd0] sm:$0xf]
  %v68 = vld [vmem:[%s0 + $0xd4] sm:$0xf]
  %v69 = vld [vmem:[%s0 + $0xd8] sm:$0xf]
  %v70 = vld [vmem:[%s0 + $0xdc] sm:$0xf]
  %v71 = vld [vmem:[%s0 + $0xe0] sm:$0xf]
  %v72 = vld [vmem:[%s0 + $0xe4] sm:$0xf]
  %v73 = vld [vmem:[%s0 + $0xe8] sm:$0xf]
  %v74 = vld [vmem:[%s0 + $0xec] sm:$0xf]
  %v75 = vld [vmem:[%s0 + $0xf0] sm:$0xf]
  %v76 = vld [vmem:[%s0 + $0xf4] sm:$0xf]
  %v77 = vld [vmem:[%s0 + $0xf8] sm:$0xf]
  %v78 = vld [vmem:[%s0 + $0xfc] sm:$0xf]
  %v79 = vld [vmem:[%s1] sm:$0xf]
  %v80 = vld [vmem:[%s1 + $0x4] sm:$0xf]
  %v81 = vld [vmem:[%s2] sm:$0x1]
  %v83 = vperm.slane %v81, 0
  %v149 = vunpack.c.l.b16 %v15
  %v150 = vunpack.c.l.b16 %v16
  %v151 = vunpack.c.l.b16 %v17
  %v152 = vunpack.c.l.b16 %v18
  %v153 = vunpack.c.l.b16 %v19
  %v154 = vunpack.c.l.b16 %v20
  %v155 = vunpack.c.l.b16 %v21
  %v156 = vunpack.c.l.b16 %v22
  %v157 = vunpack.c.l.b16 %v23
  %v158 = vunpack.c.l.b16 %v24
  %v159 = vunpack.c.l.b16 %v25
  %v160 = vunpack.c.l.b16 %v26
  %v161 = vunpack.c.l.b16 %v27
  %v162 = vunpack.c.l.b16 %v28
  %v163 = vunpack.c.l.b16 %v29
  %v164 = vunpack.c.l.b16 %v30
  %v165 = vunpack.c.l.b16 %v31
  %v166 = vunpack.c.l.b16 %v32
  %v167 = vunpack.c.l.b16 %v33
  %v168 = vunpack.c.l.b16 %v34
  %v169 = vunpack.c.l.b16 %v35
  %v170 = vunpack.c.l.b16 %v36
  %v171 = vunpack.c.l.b16 %v37
  %v172 = vunpack.c.l.b16 %v38
  %v173 = vunpack.c.l.b16 %v39
  %v174 = vunpack.c.l.b16 %v40
  %v175 = vunpack.c.l.b16 %v41
  %v176 = vunpack.c.l.b16 %v42
  %v177 = vunpack.c.l.b16 %v43
  %v178 = vunpack.c.l.b16 %v44
  %v179 = vunpack.c.l.b16 %v45
  %v180 = vunpack.c.l.b16 %v46
  %v181 = vunpack.c.l.b16 %v47
  %v182 = vunpack.c.l.b16 %v48
  %v183 = vunpack.c.l.b16 %v49
  %v184 = vunpack.c.l.b16 %v50
  %v185 = vunpack.c.l.b16 %v51
  %v186 = vunpack.c.l.b16 %v52
  %v187 = vunpack.c.l.b16 %v53
  %v188 = vunpack.c.l.b16 %v54
  %v189 = vunpack.c.l.b16 %v55
  %v190 = vunpack.c.l.b16 %v56
  %v191 = vunpack.c.l.b16 %v57
  %v192 = vunpack.c.l.b16 %v58
  %v193 = vunpack.c.l.b16 %v59
  %v194 = vunpack.c.l.b16 %v60
  %v195 = vunpack.c.l.b16 %v61
  %v196 = vunpack.c.l.b16 %v62
  %v197 = vunpack.c.l.b16 %v63
  %v198 = vunpack.c.l.b16 %v64
  %v199 = vunpack.c.l.b16 %v65
  %v200 = vunpack.c.l.b16 %v66
  %v201 = vunpack.c.l.b16 %v67
  %v202 = vunpack.c.l.b16 %v68
  %v203 = vunpack.c.l.b16 %v69
  %v204 = vunpack.c.l.b16 %v70
  %v205 = vunpack.c.l.b16 %v71
  %v206 = vunpack.c.l.b16 %v72
  %v207 = vunpack.c.l.b16 %v73
  %v208 = vunpack.c.l.b16 %v74
  %v209 = vunpack.c.l.b16 %v75
  %v210 = vunpack.c.l.b16 %v76
  %v211 = vunpack.c.l.b16 %v77
  %v212 = vunpack.c.l.b16 %v78
  %v213 = vpack.c.b16 %v150, %v149
  %v214 = vpack.c.b16 %v152, %v151
  %v215 = vpack.c.b16 %v154, %v153
  %v216 = vpack.c.b16 %v156, %v155
  %v217 = vpack.c.b16 %v158, %v157
  %v218 = vpack.c.b16 %v160, %v159
  %v219 = vpack.c.b16 %v162, %v161
  %v220 = vpack.c.b16 %v164, %v163
  %v221 = vpack.c.b16 %v166, %v165
  %v222 = vpack.c.b16 %v168, %v167
  %v223 = vpack.c.b16 %v170, %v169
  %v224 = vpack.c.b16 %v172, %v171
  %v225 = vpack.c.b16 %v174, %v173
  %v226 = vpack.c.b16 %v176, %v175
  %v227 = vpack.c.b16 %v178, %v177
  %v228 = vpack.c.b16 %v180, %v179
  %v229 = vpack.c.b16 %v182, %v181
  %v230 = vpack.c.b16 %v184, %v183
  %v231 = vpack.c.b16 %v186, %v185
  %v232 = vpack.c.b16 %v188, %v187
  %v233 = vpack.c.b16 %v190, %v189
  %v234 = vpack.c.b16 %v192, %v191
  %v235 = vpack.c.b16 %v194, %v193
  %v236 = vpack.c.b16 %v196, %v195
  %v237 = vpack.c.b16 %v198, %v197
  %v238 = vpack.c.b16 %v200, %v199
  %v239 = vpack.c.b16 %v202, %v201
  %v240 = vpack.c.b16 %v204, %v203
  %v241 = vpack.c.b16 %v206, %v205
  %v242 = vpack.c.b16 %v208, %v207
  %v243 = vpack.c.b16 %v210, %v209
  %v244 = vpack.c.b16 %v212, %v211
  %v247 = vunpack.c.l.b16 %v79
  %v248 = vunpack.c.l.b16 %v80
  %v249 = vpack.c.b16 %v248, %v247
  %vm251 = vcmask 130048
  %v253 = vsel %vm251, %v213, 0
  %v256 = vsel %vm251, %v214, 0
  %v259 = vsel %vm251, %v215, 0
  %v262 = vsel %vm251, %v216, 0
  %v265 = vsel %vm251, %v217, 0
  %v268 = vsel %vm251, %v218, 0
  %v271 = vsel %vm251, %v219, 0
  %v274 = vsel %vm251, %v220, 0
  %v277 = vsel %vm251, %v221, 0
  %v280 = vsel %vm251, %v222, 0
  %v283 = vsel %vm251, %v223, 0
  %v286 = vsel %vm251, %v224, 0
  %v289 = vsel %vm251, %v225, 0
  %v292 = vsel %vm251, %v226, 0
  %v295 = vsel %vm251, %v227, 0
  %v298 = vsel %vm251, %v228, 0
  %v301 = vsel %vm251, %v229, 0
  %v304 = vsel %vm251, %v230, 0
  %v307 = vsel %vm251, %v231, 0
  %v310 = vsel %vm251, %v232, 0
  %v313 = vsel %vm251, %v233, 0
  %v316 = vsel %vm251, %v234, 0
  %v319 = vsel %vm251, %v235, 0
  %v322 = vsel %vm251, %v236, 0
  %v325 = vsel %vm251, %v237, 0
  %v328 = vsel %vm251, %v238, 0
  %v331 = vsel %vm251, %v239, 0
  %v334 = vsel %vm251, %v240, 0
  %v337 = vsel %vm251, %v241, 0
  %v340 = vsel %vm251, %v242, 0
  %v343 = vsel %vm251, %v243, 0
  %v346 = vsel %vm251, %v244, 0
  %348 = vmatpush.bf16.msra.mxu0 0
  %349 = vmatpush.bf16.msra.mxu0 0
  %350 = vmatpush.bf16.msra.mxu0 0
  %351 = vmatpush.bf16.msra.mxu0 0
  %352 = vmatpush.bf16.msra.mxu0 0
  %353 = vmatpush.bf16.msra.mxu0 0
  %354 = vmatpush.bf16.msra.mxu0 0
  %355 = vmatpush.bf16.msra.mxu0 %v249
  %356 = vmatmul.bf16.gmra.mxu0 %v253
  %v357 = vpop.f32.mrf.mxu0
  %v358 = vadd.f32 %v83, %v357
  %v359 = vpop.f32.mrf.mxu0
  %v360 = vadd.f32 %v83, %v359
  %361 = vmatmul.bf16.gmra.mxu0 %v256
  %v362 = vpop.f32.mrf.mxu0
  %v363 = vadd.f32 %v83, %v362
  %v364 = vpop.f32.mrf.mxu0
  %v365 = vadd.f32 %v83, %v364
  %366 = vmatmul.bf16.gmra.mxu0 %v259
  %v367 = vpop.f32.mrf.mxu0
  %v368 = vadd.f32 %v83, %v367
  %v369 = vpop.f32.mrf.mxu0
  %v370 = vadd.f32 %v83, %v369
  %371 = vmatmul.bf16.gmra.mxu0 %v262
  %v372 = vpop.f32.mrf.mxu0
  %v373 = vadd.f32 %v83, %v372
  %v374 = vpop.f32.mrf.mxu0
  %v375 = vadd.f32 %v83, %v374
  %376 = vmatmul.bf16.gmra.mxu0 %v265
  %v377 = vpop.f32.mrf.mxu0
  %v378 = vadd.f32 %v83, %v377
  %v379 = vpop.f32.mrf.mxu0
  %v380 = vadd.f32 %v83, %v379
  %381 = vmatmul.bf16.gmra.mxu0 %v268
  %v382 = vpop.f32.mrf.mxu0
  %v383 = vadd.f32 %v83, %v382
  %v384 = vpop.f32.mrf.mxu0
  %v385 = vadd.f32 %v83, %v384
  %386 = vmatmul.bf16.gmra.mxu0 %v271
  %v387 = vpop.f32.mrf.mxu0
  %v388 = vadd.f32 %v83, %v387
  %v389 = vpop.f32.mrf.mxu0
  %v390 = vadd.f32 %v83, %v389
  %391 = vmatmul.bf16.gmra.mxu0 %v274
  %v392 = vpop.f32.mrf.mxu0
  %v393 = vadd.f32 %v83, %v392
  %v394 = vpop.f32.mrf.mxu0
  %v395 = vadd.f32 %v83, %v394
  %396 = vmatmul.bf16.gmra.mxu0 %v277
  %v397 = vpop.f32.mrf.mxu0
  %v398 = vadd.f32 %v83, %v397
  %v399 = vpop.f32.mrf.mxu0
  %v400 = vadd.f32 %v83, %v399
  %401 = vmatmul.bf16.gmra.mxu0 %v280
  %v402 = vpop.f32.mrf.mxu0
  %v403 = vadd.f32 %v83, %v402
  %v404 = vpop.f32.mrf.mxu0
  %v405 = vadd.f32 %v83, %v404
  %406 = vmatmul.bf16.gmra.mxu0 %v283
  %v407 = vpop.f32.mrf.mxu0
  %v408 = vadd.f32 %v83, %v407
  %v409 = vpop.f32.mrf.mxu0
  %v410 = vadd.f32 %v83, %v409
  %411 = vmatmul.bf16.gmra.mxu0 %v286
  %v412 = vpop.f32.mrf.mxu0
  %v413 = vadd.f32 %v83, %v412
  %v414 = vpop.f32.mrf.mxu0
  %v415 = vadd.f32 %v83, %v414
  %416 = vmatmul.bf16.gmra.mxu0 %v289
  %v417 = vpop.f32.mrf.mxu0
  %v418 = vadd.f32 %v83, %v417
  %v419 = vpop.f32.mrf.mxu0
  %v420 = vadd.f32 %v83, %v419
  %421 = vmatmul.bf16.gmra.mxu0 %v292
  %v422 = vpop.f32.mrf.mxu0
  %v423 = vadd.f32 %v83, %v422
  %v424 = vpop.f32.mrf.mxu0
  %v425 = vadd.f32 %v83, %v424
  %426 = vmatmul.bf16.gmra.mxu0 %v295
  %v427 = vpop.f32.mrf.mxu0
  %v428 = vadd.f32 %v83, %v427
  %v429 = vpop.f32.mrf.mxu0
  %v430 = vadd.f32 %v83, %v429
  %431 = vmatmul.bf16.gmra.mxu0 %v298
  %v432 = vpop.f32.mrf.mxu0
  %v433 = vadd.f32 %v83, %v432
  %v434 = vpop.f32.mrf.mxu0
  %v435 = vadd.f32 %v83, %v434
  %436 = vmatmul.bf16.gmra.mxu0 %v301
  %v437 = vpop.f32.mrf.mxu0
  %v438 = vadd.f32 %v83, %v437
  %v439 = vpop.f32.mrf.mxu0
  %v440 = vadd.f32 %v83, %v439
  %441 = vmatmul.bf16.gmra.mxu0 %v304
  %v442 = vpop.f32.mrf.mxu0
  %v443 = vadd.f32 %v83, %v442
  %v444 = vpop.f32.mrf.mxu0
  %v445 = vadd.f32 %v83, %v444
  %446 = vmatmul.bf16.gmra.mxu0 %v307
  %v447 = vpop.f32.mrf.mxu0
  %v448 = vadd.f32 %v83, %v447
  %v449 = vpop.f32.mrf.mxu0
  %v450 = vadd.f32 %v83, %v449
  %451 = vmatmul.bf16.gmra.mxu0 %v310
  %v452 = vpop.f32.mrf.mxu0
  %v453 = vadd.f32 %v83, %v452
  %v454 = vpop.f32.mrf.mxu0
  %v455 = vadd.f32 %v83, %v454
  %456 = vmatmul.bf16.gmra.mxu0 %v313
  %v457 = vpop.f32.mrf.mxu0
  %v458 = vadd.f32 %v83, %v457
  %v459 = vpop.f32.mrf.mxu0
  %v460 = vadd.f32 %v83, %v459
  %461 = vmatmul.bf16.gmra.mxu0 %v316
  %v462 = vpop.f32.mrf.mxu0
  %v463 = vadd.f32 %v83, %v462
  %v464 = vpop.f32.mrf.mxu0
  %v465 = vadd.f32 %v83, %v464
  %466 = vmatmul.bf16.gmra.mxu0 %v319
  %v467 = vpop.f32.mrf.mxu0
  %v468 = vadd.f32 %v83, %v467
  %v469 = vpop.f32.mrf.mxu0
  %v470 = vadd.f32 %v83, %v469
  %471 = vmatmul.bf16.gmra.mxu0 %v322
  %v472 = vpop.f32.mrf.mxu0
  %v473 = vadd.f32 %v83, %v472
  %v474 = vpop.f32.mrf.mxu0
  %v475 = vadd.f32 %v83, %v474
  %476 = vmatmul.bf16.gmra.mxu0 %v325
  %v477 = vpop.f32.mrf.mxu0
  %v478 = vadd.f32 %v83, %v477
  %v479 = vpop.f32.mrf.mxu0
  %v480 = vadd.f32 %v83, %v479
  %481 = vmatmul.bf16.gmra.mxu0 %v328
  %v482 = vpop.f32.mrf.mxu0
  %v483 = vadd.f32 %v83, %v482
  %v484 = vpop.f32.mrf.mxu0
  %v485 = vadd.f32 %v83, %v484
  %486 = vmatmul.bf16.gmra.mxu0 %v331
  %v487 = vpop.f32.mrf.mxu0
  %v488 = vadd.f32 %v83, %v487
  %v489 = vpop.f32.mrf.mxu0
  %v490 = vadd.f32 %v83, %v489
  %491 = vmatmul.bf16.gmra.mxu0 %v334
  %v492 = vpop.f32.mrf.mxu0
  %v493 = vadd.f32 %v83, %v492
  %v494 = vpop.f32.mrf.mxu0
  %v495 = vadd.f32 %v83, %v494
  %496 = vmatmul.bf16.gmra.mxu0 %v337
  %v497 = vpop.f32.mrf.mxu0
  %v498 = vadd.f32 %v83, %v497
  %v499 = vpop.f32.mrf.mxu0
  %v500 = vadd.f32 %v83, %v499
  %501 = vmatmul.bf16.gmra.mxu0 %v340
  %v502 = vpop.f32.mrf.mxu0
  %v503 = vadd.f32 %v83, %v502
  %v504 = vpop.f32.mrf.mxu0
  %v505 = vadd.f32 %v83, %v504
  %506 = vmatmul.bf16.gmra.mxu0 %v343
  %v507 = vpop.f32.mrf.mxu0
  %v508 = vadd.f32 %v83, %v507
  %v509 = vpop.f32.mrf.mxu0
  %v510 = vadd.f32 %v83, %v509
  %511 = vmatmul.bf16.gmra.mxu0 %v346
  %v512 = vpop.f32.mrf.mxu0
  %v513 = vadd.f32 %v83, %v512
  %v514 = vpop.f32.mrf.mxu0
  %v515 = vadd.f32 %v83, %v514
  %516 = vdwg.mxu0
  %v517 = vmax.f32 %v358, 0.0
  %v518 = vmax.f32 %v360, 0.0
  %v519 = vmax.f32 %v363, 0.0
  %v520 = vmax.f32 %v365, 0.0
  %v521 = vmax.f32 %v368, 0.0
  %v522 = vmax.f32 %v370, 0.0
  %v523 = vmax.f32 %v373, 0.0
  %v524 = vmax.f32 %v375, 0.0
  %v525 = vmax.f32 %v378, 0.0
  %v526 = vmax.f32 %v380, 0.0
  %v527 = vmax.f32 %v383, 0.0
  %v528 = vmax.f32 %v385, 0.0
  %v529 = vmax.f32 %v388, 0.0
  %v530 = vmax.f32 %v390, 0.0
  %v531 = vmax.f32 %v393, 0.0
  %v532 = vmax.f32 %v395, 0.0
  %v533 = vmax.f32 %v398, 0.0
  %v534 = vmax.f32 %v400, 0.0
  %v535 = vmax.f32 %v403, 0.0
  %v536 = vmax.f32 %v405, 0.0
  %v537 = vmax.f32 %v408, 0.0
  %v538 = vmax.f32 %v410, 0.0
  %v539 = vmax.f32 %v413, 0.0
  %v540 = vmax.f32 %v415, 0.0
  %v541 = vmax.f32 %v418, 0.0
  %v542 = vmax.f32 %v420, 0.0
  %v543 = vmax.f32 %v423, 0.0
  %v544 = vmax.f32 %v425, 0.0
  %v545 = vmax.f32 %v428, 0.0
  %v546 = vmax.f32 %v430, 0.0
  %v547 = vmax.f32 %v433, 0.0
  %v548 = vmax.f32 %v435, 0.0
  %v549 = vmax.f32 %v438, 0.0
  %v550 = vmax.f32 %v440, 0.0
  %v551 = vmax.f32 %v443, 0.0
  %v552 = vmax.f32 %v445, 0.0
  %v553 = vmax.f32 %v448, 0.0
  %v554 = vmax.f32 %v450, 0.0
  %v555 = vmax.f32 %v453, 0.0
  %v556 = vmax.f32 %v455, 0.0
  %v557 = vmax.f32 %v458, 0.0
  %v558 = vmax.f32 %v460, 0.0
  %v559 = vmax.f32 %v463, 0.0
  %v560 = vmax.f32 %v465, 0.0
  %v561 = vmax.f32 %v468, 0.0
  %v562 = vmax.f32 %v470, 0.0
  %v563 = vmax.f32 %v473, 0.0
  %v564 = vmax.f32 %v475, 0.0
  %v565 = vmax.f32 %v478, 0.0
  %v566 = vmax.f32 %v480, 0.0
  %v567 = vmax.f32 %v483, 0.0
  %v568 = vmax.f32 %v485, 0.0
  %v569 = vmax.f32 %v488, 0.0
  %v570 = vmax.f32 %v490, 0.0
  %v571 = vmax.f32 %v493, 0.0
  %v572 = vmax.f32 %v495, 0.0
  %v573 = vmax.f32 %v498, 0.0
  %v574 = vmax.f32 %v500, 0.0
  %v575 = vmax.f32 %v503, 0.0
  %v576 = vmax.f32 %v505, 0.0
  %v577 = vmax.f32 %v508, 0.0
  %v578 = vmax.f32 %v510, 0.0
  %v579 = vmax.f32 %v513, 0.0
  %v580 = vmax.f32 %v515, 0.0
  %v581 = vpack.c.bf16 %v517, %v517
  %v582 = vpack.c.bf16 %v518, %v518
  %v583 = vpack.c.bf16 %v519, %v519
  %v584 = vpack.c.bf16 %v520, %v520
  %v585 = vpack.c.bf16 %v521, %v521
  %v586 = vpack.c.bf16 %v522, %v522
  %v587 = vpack.c.bf16 %v523, %v523
  %v588 = vpack.c.bf16 %v524, %v524
  %v589 = vpack.c.bf16 %v525, %v525
  %v590 = vpack.c.bf16 %v526, %v526
  %v591 = vpack.c.bf16 %v527, %v527
  %v592 = vpack.c.bf16 %v528, %v528
  %v593 = vpack.c.bf16 %v529, %v529
  %v594 = vpack.c.bf16 %v530, %v530
  %v595 = vpack.c.bf16 %v531, %v531
  %v596 = vpack.c.bf16 %v532, %v532
  %v597 = vpack.c.bf16 %v533, %v533
  %v598 = vpack.c.bf16 %v534, %v534
  %v599 = vpack.c.bf16 %v535, %v535
  %v600 = vpack.c.bf16 %v536, %v536
  %v601 = vpack.c.bf16 %v537, %v537
  %v602 = vpack.c.bf16 %v538, %v538
  %v603 = vpack.c.bf16 %v539, %v539
  %v604 = vpack.c.bf16 %v540, %v540
  %v605 = vpack.c.bf16 %v541, %v541
  %v606 = vpack.c.bf16 %v542, %v542
  %v607 = vpack.c.bf16 %v543, %v543
  %v608 = vpack.c.bf16 %v544, %v544
  %v609 = vpack.c.bf16 %v545, %v545
  %v610 = vpack.c.bf16 %v546, %v546
  %v611 = vpack.c.bf16 %v547, %v547
  %v612 = vpack.c.bf16 %v548, %v548
  %v613 = vpack.c.bf16 %v549, %v549
  %v614 = vpack.c.bf16 %v550, %v550
  %v615 = vpack.c.bf16 %v551, %v551
  %v616 = vpack.c.bf16 %v552, %v552
  %v617 = vpack.c.bf16 %v553, %v553
  %v618 = vpack.c.bf16 %v554, %v554
  %v619 = vpack.c.bf16 %v555, %v555
  %v620 = vpack.c.bf16 %v556, %v556
  %v621 = vpack.c.bf16 %v557, %v557
  %v622 = vpack.c.bf16 %v558, %v558
  %v623 = vpack.c.bf16 %v559, %v559
  %v624 = vpack.c.bf16 %v560, %v560
  %v625 = vpack.c.bf16 %v561, %v561
  %v626 = vpack.c.bf16 %v562, %v562
  %v627 = vpack.c.bf16 %v563, %v563
  %v628 = vpack.c.bf16 %v564, %v564
  %v629 = vpack.c.bf16 %v565, %v565
  %v630 = vpack.c.bf16 %v566, %v566
  %v631 = vpack.c.bf16 %v567, %v567
  %v632 = vpack.c.bf16 %v568, %v568
  %v633 = vpack.c.bf16 %v569, %v569
  %v634 = vpack.c.bf16 %v570, %v570
  %v635 = vpack.c.bf16 %v571, %v571
  %v636 = vpack.c.bf16 %v572, %v572
  %v637 = vpack.c.bf16 %v573, %v573
  %v638 = vpack.c.bf16 %v574, %v574
  %v639 = vpack.c.bf16 %v575, %v575
  %v640 = vpack.c.bf16 %v576, %v576
  %v641 = vpack.c.bf16 %v577, %v577
  %v642 = vpack.c.bf16 %v578, %v578
  %v643 = vpack.c.bf16 %v579, %v579
  %v644 = vpack.c.bf16 %v580, %v580
  %vm645 = vcmask 60416
  %646 = vst.msk [vmem:[%s3] sm:$0xf] %vm645, %v581
  %647 = vst.msk [vmem:[%s3 + $0x4] sm:$0xf] %vm645, %v582
  %648 = vst.msk [vmem:[%s3 + $0x8] sm:$0xf] %vm645, %v583
  %649 = vst.msk [vmem:[%s3 + $0xc] sm:$0xf] %vm645, %v584
  %650 = vst.msk [vmem:[%s3 + $0x10] sm:$0xf] %vm645, %v585
  %651 = vst.msk [vmem:[%s3 + $0x14] sm:$0xf] %vm645, %v586
  %652 = vst.msk [vmem:[%s3 + $0x18] sm:$0xf] %vm645, %v587
  %653 = vst.msk [vmem:[%s3 + $0x1c] sm:$0xf] %vm645, %v588
  %654 = vst.msk [vmem:[%s3 + $0x20] sm:$0xf] %vm645, %v589
  %655 = vst.msk [vmem:[%s3 + $0x24] sm:$0xf] %vm645, %v590
  %656 = vst.msk [vmem:[%s3 + $0x28] sm:$0xf] %vm645, %v591
  %657 = vst.msk [vmem:[%s3 + $0x2c] sm:$0xf] %vm645, %v592
  %658 = vst.msk [vmem:[%s3 + $0x30] sm:$0xf] %vm645, %v593
  %659 = vst.msk [vmem:[%s3 + $0x34] sm:$0xf] %vm645, %v594
  %660 = vst.msk [vmem:[%s3 + $0x38] sm:$0xf] %vm645, %v595
  %661 = vst.msk [vmem:[%s3 + $0x3c] sm:$0xf] %vm645, %v596
  %662 = vst.msk [vmem:[%s3 + $0x40] sm:$0xf] %vm645, %v597
  %663 = vst.msk [vmem:[%s3 + $0x44] sm:$0xf] %vm645, %v598
  %664 = vst.msk [vmem:[%s3 + $0x48] sm:$0xf] %vm645, %v599
  %665 = vst.msk [vmem:[%s3 + $0x4c] sm:$0xf] %vm645, %v600
  %666 = vst.msk [vmem:[%s3 + $0x50] sm:$0xf] %vm645, %v601
  %667 = vst.msk [vmem:[%s3 + $0x54] sm:$0xf] %vm645, %v602
  %668 = vst.msk [vmem:[%s3 + $0x58] sm:$0xf] %vm645, %v603
  %669 = vst.msk [vmem:[%s3 + $0x5c] sm:$0xf] %vm645, %v604
  %670 = vst.msk [vmem:[%s3 + $0x60] sm:$0xf] %vm645, %v605
  %671 = vst.msk [vmem:[%s3 + $0x64] sm:$0xf] %vm645, %v606
  %672 = vst.msk [vmem:[%s3 + $0x68] sm:$0xf] %vm645, %v607
  %673 = vst.msk [vmem:[%s3 + $0x6c] sm:$0xf] %vm645, %v608
  %674 = vst.msk [vmem:[%s3 + $0x70] sm:$0xf] %vm645, %v609
  %675 = vst.msk [vmem:[%s3 + $0x74] sm:$0xf] %vm645, %v610
  %676 = vst.msk [vmem:[%s3 + $0x78] sm:$0xf] %vm645, %v611
  %677 = vst.msk [vmem:[%s3 + $0x7c] sm:$0xf] %vm645, %v612
  %678 = vst.msk [vmem:[%s3 + $0x80] sm:$0xf] %vm645, %v613
  %679 = vst.msk [vmem:[%s3 + $0x84] sm:$0xf] %vm645, %v614
  %680 = vst.msk [vmem:[%s3 + $0x88] sm:$0xf] %vm645, %v615
  %681 = vst.msk [vmem:[%s3 + $0x8c] sm:$0xf] %vm645, %v616
  %682 = vst.msk [vmem:[%s3 + $0x90] sm:$0xf] %vm645, %v617
  %683 = vst.msk [vmem:[%s3 + $0x94] sm:$0xf] %vm645, %v618
  %684 = vst.msk [vmem:[%s3 + $0x98] sm:$0xf] %vm645, %v619
  %685 = vst.msk [vmem:[%s3 + $0x9c] sm:$0xf] %vm645, %v620
  %686 = vst.msk [vmem:[%s3 + $0xa0] sm:$0xf] %vm645, %v621
  %687 = vst.msk [vmem:[%s3 + $0xa4] sm:$0xf] %vm645, %v622
  %688 = vst.msk [vmem:[%s3 + $0xa8] sm:$0xf] %vm645, %v623
  %689 = vst.msk [vmem:[%s3 + $0xac] sm:$0xf] %vm645, %v624
  %690 = vst.msk [vmem:[%s3 + $0xb0] sm:$0xf] %vm645, %v625
  %691 = vst.msk [vmem:[%s3 + $0xb4] sm:$0xf] %vm645, %v626
  %692 = vst.msk [vmem:[%s3 + $0xb8] sm:$0xf] %vm645, %v627
  %693 = vst.msk [vmem:[%s3 + $0xbc] sm:$0xf] %vm645, %v628
  %694 = vst.msk [vmem:[%s3 + $0xc0] sm:$0xf] %vm645, %v629
  %695 = vst.msk [vmem:[%s3 + $0xc4] sm:$0xf] %vm645, %v630
  %696 = vst.msk [vmem:[%s3 + $0xc8] sm:$0xf] %vm645, %v631
  %697 = vst.msk [vmem:[%s3 + $0xcc] sm:$0xf] %vm645, %v632
  %698 = vst.msk [vmem:[%s3 + $0xd0] sm:$0xf] %vm645, %v633
  %699 = vst.msk [vmem:[%s3 + $0xd4] sm:$0xf] %vm645, %v634
  %700 = vst.msk [vmem:[%s3 + $0xd8] sm:$0xf] %vm645, %v635
  %701 = vst.msk [vmem:[%s3 + $0xdc] sm:$0xf] %vm645, %v636
  %702 = vst.msk [vmem:[%s3 + $0xe0] sm:$0xf] %vm645, %v637
  %703 = vst.msk [vmem:[%s3 + $0xe4] sm:$0xf] %vm645, %v638
  %704 = vst.msk [vmem:[%s3 + $0xe8] sm:$0xf] %vm645, %v639
  %705 = vst.msk [vmem:[%s3 + $0xec] sm:$0xf] %vm645, %v640
  %706 = vst.msk [vmem:[%s3 + $0xf0] sm:$0xf] %vm645, %v641
  %707 = vst.msk [vmem:[%s3 + $0xf4] sm:$0xf] %vm645, %v642
  %708 = vst.msk [vmem:[%s3 + $0xf8] sm:$0xf] %vm645, %v643
  %709 = vst.msk [vmem:[%s3 + $0xfc] sm:$0xf] %vm645, %v644
  // Predicated region
  $region14: #{conv_vae_forward.7} parent=0 // pred_check
    _
  $region15: #{conv_vae_forward.7} parent=0 // pred_check_branch
    %711 = sbr.rel (0) target = $region17
  $region16: #{conv_vae_forward.7} parent=0 // pred_region
    _
  $region17: #{conv_vae_forward.7} parent=0 // pred_fallthru
    _
  // Predicated region
  $region18: #{conv_vae_forward.7} parent=0 // pred_check
    _
  $region19: #{conv_vae_forward.7} parent=0 // pred_check_branch
    %713 = sbr.rel (0) target = $region21
  $region20: #{conv_vae_forward.7} parent=0 // pred_region
    _
  $region21: #{conv_vae_forward.7} parent=0 // pred_fallthru
    _

// kernel: conv_vae_forward.8
$region0: #{conv_vae_forward.8}
  #allocation0 [shape = 'u32[]', space=smem, size = 0x4, offset = 0x4, fixed_abs, tag = 'smem constant byte address 0x4 - core index']
  #allocation1 [shape = 'u32[72,128]{1,0:T(1,128)}', space=vmem, size = 0x9000, scoped, tag = 'internal scratch']
  %s0 = inlined_call_operand.vmem [shape: bf16[128,128], index: 0, kind: input, shape index: {}]
  %s1 = inlined_call_operand.vmem [shape: bf16[128,16], index: 1, kind: input, shape index: {}]
  %s2 = inlined_call_operand.vmem [shape: f32[1,16], index: 2, kind: input, shape index: {}]
  %s3 = inlined_call_operand.vmem [shape: bf16[128,16], index: 3, kind: output, shape index: {}]
  %s4 = sld [smem:[#allocation0]]
  $region22: #{conv_vae_forward.8} parent=0
    _
  %s6 = ssub.s32 1, %s4
  %s7 = scalar_select 0, %s6, %s4
  // Predicated region
  $region2: #{conv_vae_forward.8} parent=0 // pred_check
    _
  $region3: #{conv_vae_forward.8} parent=0 // pred_check_branch
    %9 = sbr.rel (0) target = $region5
  $region4: #{conv_vae_forward.8} parent=0 // pred_region
    _
  $region5: #{conv_vae_forward.8} parent=0 // pred_fallthru
    _
  // Predicated region
  $region6: #{conv_vae_forward.8} parent=0 // pred_check
    _
  $region7: #{conv_vae_forward.8} parent=0 // pred_check_branch
    %11 = sbr.rel (0) target = $region9
  $region8: #{conv_vae_forward.8} parent=0 // pred_region
    _
  $region9: #{conv_vae_forward.8} parent=0 // pred_fallthru
    _
  // Predicated region
  $region10: #{conv_vae_forward.8} parent=0 // pred_check
    _
  $region11: #{conv_vae_forward.8} parent=0 // pred_check_branch
    %13 = sbr.rel (0) target = $region13
  $region12: #{conv_vae_forward.8} parent=0 // pred_region
    _
  $region13: #{conv_vae_forward.8} parent=0 // pred_fallthru
    _
  %v14 = vld [vmem:[%s0] sm:$0xf]
  %v15 = vld [vmem:[%s0 + $0x4] sm:$0xf]
  %v16 = vld [vmem:[%s0 + $0x8] sm:$0xf]
  %v17 = vld [vmem:[%s0 + $0xc] sm:$0xf]
  %v18 = vld [vmem:[%s0 + $0x10] sm:$0xf]
  %v19 = vld [vmem:[%s0 + $0x14] sm:$0xf]
  %v20 = vld [vmem:[%s0 + $0x18] sm:$0xf]
  %v21 = vld [vmem:[%s0 + $0x1c] sm:$0xf]
  %v22 = vld [vmem:[%s0 + $0x20] sm:$0xf]
  %v23 = vld [vmem:[%s0 + $0x24] sm:$0xf]
  %v24 = vld [vmem:[%s0 + $0x28] sm:$0xf]
  %v25 = vld [vmem:[%s0 + $0x2c] sm:$0xf]
  %v26 = vld [vmem:[%s0 + $0x30] sm:$0xf]
  %v27 = vld [vmem:[%s0 + $0x34] sm:$0xf]
  %v28 = vld [vmem:[%s0 + $0x38] sm:$0xf]
  %v29 = vld [vmem:[%s0 + $0x3c] sm:$0xf]
  %v30 = vld [vmem:[%s1] sm:$0xf]
  %v31 = vld [vmem:[%s1 + $0x4] sm:$0xf]
  %v32 = vld [vmem:[%s1 + $0x8] sm:$0xf]
  %v33 = vld [vmem:[%s1 + $0xc] sm:$0xf]
  %v34 = vld [vmem:[%s1 + $0x10] sm:$0xf]
  %v35 = vld [vmem:[%s1 + $0x14] sm:$0xf]
  %v36 = vld [vmem:[%s1 + $0x18] sm:$0xf]
  %v37 = vld [vmem:[%s1 + $0x1c] sm:$0xf]
  %v38 = vld [vmem:[%s1 + $0x20] sm:$0xf]
  %v39 = vld [vmem:[%s1 + $0x24] sm:$0xf]
  %v40 = vld [vmem:[%s1 + $0x28] sm:$0xf]
  %v41 = vld [vmem:[%s1 + $0x2c] sm:$0xf]
  %v42 = vld [vmem:[%s1 + $0x30] sm:$0xf]
  %v43 = vld [vmem:[%s1 + $0x34] sm:$0xf]
  %v44 = vld [vmem:[%s1 + $0x38] sm:$0xf]
  %v45 = vld [vmem:[%s1 + $0x3c] sm:$0xf]
  %v46 = vld [vmem:[%s2] sm:$0x1]
  %v48 = vperm.slane %v46, 0
  %v66 = vunpack.c.l.b16 %v14
  %v67 = vunpack.c.l.b16 %v15
  %v68 = vunpack.c.l.b16 %v16
  %v69 = vunpack.c.l.b16 %v17
  %v70 = vunpack.c.l.b16 %v18
  %v71 = vunpack.c.l.b16 %v19
  %v72 = vunpack.c.l.b16 %v20
  %v73 = vunpack.c.l.b16 %v21
  %v74 = vunpack.c.l.b16 %v22
  %v75 = vunpack.c.l.b16 %v23
  %v76 = vunpack.c.l.b16 %v24
  %v77 = vunpack.c.l.b16 %v25
  %v78 = vunpack.c.l.b16 %v26
  %v79 = vunpack.c.l.b16 %v27
  %v80 = vunpack.c.l.b16 %v28
  %v81 = vunpack.c.l.b16 %v29
  %v82 = vpack.c.b16 %v67, %v66
  %v83 = vpack.c.b16 %v69, %v68
  %v84 = vpack.c.b16 %v71, %v70
  %v85 = vpack.c.b16 %v73, %v72
  %v86 = vpack.c.b16 %v75, %v74
  %v87 = vpack.c.b16 %v77, %v76
  %v88 = vpack.c.b16 %v79, %v78
  %v89 = vpack.c.b16 %v81, %v80
  %v114 = vunpack.c.l.b16 %v30
  %v115 = vunpack.c.l.b16 %v31
  %v116 = vunpack.c.l.b16 %v32
  %v117 = vunpack.c.l.b16 %v33
  %v118 = vunpack.c.l.b16 %v34
  %v119 = vunpack.c.l.b16 %v35
  %v120 = vunpack.c.l.b16 %v36
  %v121 = vunpack.c.l.b16 %v37
  %v122 = vunpack.c.l.b16 %v38
  %v123 = vunpack.c.l.b16 %v39
  %v124 = vunpack.c.l.b16 %v40
  %v125 = vunpack.c.l.b16 %v41
  %v126 = vunpack.c.l.b16 %v42
  %v127 = vunpack.c.l.b16 %v43
  %v128 = vunpack.c.l.b16 %v44
  %v129 = vunpack.c.l.b16 %v45
  %v130 = vpack.c.b16 %v115, %v114
  %v131 = vpack.c.b16 %v117, %v116
  %v132 = vpack.c.b16 %v119, %v118
  %v133 = vpack.c.b16 %v121, %v120
  %v134 = vpack.c.b16 %v123, %v122
  %v135 = vpack.c.b16 %v125, %v124
  %v136 = vpack.c.b16 %v127, %v126
  %v137 = vpack.c.b16 %v129, %v128
  %146 = vmatpush.bf16.msra.mxu0 %v137
  %147 = vmatpush.bf16.msra.mxu0 %v136
  %148 = vmatpush.bf16.msra.mxu0 %v135
  %149 = vmatpush.bf16.msra.mxu0 %v134
  %150 = vmatpush.bf16.msra.mxu0 %v133
  %151 = vmatpush.bf16.msra.mxu0 %v132
  %152 = vmatpush.bf16.msra.mxu0 %v131
  %153 = vmatpush.bf16.msra.mxu0 %v130
  %154 = vmatmul.bf16.gmra.mxu0 %v82
  %v155 = vpop.f32.mrf.mxu0
  %v156 = vadd.f32 %v48, %v155
  %v157 = vpop.f32.mrf.mxu0
  %v158 = vadd.f32 %v48, %v157
  %159 = vmatmul.bf16.gmra.mxu0 %v83
  %v160 = vpop.f32.mrf.mxu0
  %v161 = vadd.f32 %v48, %v160
  %v162 = vpop.f32.mrf.mxu0
  %v163 = vadd.f32 %v48, %v162
  %164 = vmatmul.bf16.gmra.mxu0 %v84
  %v165 = vpop.f32.mrf.mxu0
  %v166 = vadd.f32 %v48, %v165
  %v167 = vpop.f32.mrf.mxu0
  %v168 = vadd.f32 %v48, %v167
  %169 = vmatmul.bf16.gmra.mxu0 %v85
  %v170 = vpop.f32.mrf.mxu0
  %v171 = vadd.f32 %v48, %v170
  %v172 = vpop.f32.mrf.mxu0
  %v173 = vadd.f32 %v48, %v172
  %174 = vmatmul.bf16.gmra.mxu0 %v86
  %v175 = vpop.f32.mrf.mxu0
  %v176 = vadd.f32 %v48, %v175
  %v177 = vpop.f32.mrf.mxu0
  %v178 = vadd.f32 %v48, %v177
  %179 = vmatmul.bf16.gmra.mxu0 %v87
  %v180 = vpop.f32.mrf.mxu0
  %v181 = vadd.f32 %v48, %v180
  %v182 = vpop.f32.mrf.mxu0
  %v183 = vadd.f32 %v48, %v182
  %184 = vmatmul.bf16.gmra.mxu0 %v88
  %v185 = vpop.f32.mrf.mxu0
  %v186 = vadd.f32 %v48, %v185
  %v187 = vpop.f32.mrf.mxu0
  %v188 = vadd.f32 %v48, %v187
  %189 = vmatmul.bf16.gmra.mxu0 %v89
  %v190 = vpop.f32.mrf.mxu0
  %v191 = vadd.f32 %v48, %v190
  %v192 = vpop.f32.mrf.mxu0
  %v193 = vadd.f32 %v48, %v192
  %194 = vdwg.mxu0
  %v195 = vmax.f32 %v156, 0.0
  %v196 = vmax.f32 %v158, 0.0
  %v197 = vmax.f32 %v161, 0.0
  %v198 = vmax.f32 %v163, 0.0
  %v199 = vmax.f32 %v166, 0.0
  %v200 = vmax.f32 %v168, 0.0
  %v201 = vmax.f32 %v171, 0.0
  %v202 = vmax.f32 %v173, 0.0
  %v203 = vmax.f32 %v176, 0.0
  %v204 = vmax.f32 %v178, 0.0
  %v205 = vmax.f32 %v181, 0.0
  %v206 = vmax.f32 %v183, 0.0
  %v207 = vmax.f32 %v186, 0.0
  %v208 = vmax.f32 %v188, 0.0
  %v209 = vmax.f32 %v191, 0.0
  %v210 = vmax.f32 %v193, 0.0
  %v211 = vpack.c.bf16 %v195, %v195
  %v212 = vpack.c.bf16 %v196, %v196
  %v213 = vpack.c.bf16 %v197, %v197
  %v214 = vpack.c.bf16 %v198, %v198
  %v215 = vpack.c.bf16 %v199, %v199
  %v216 = vpack.c.bf16 %v200, %v200
  %v217 = vpack.c.bf16 %v201, %v201
  %v218 = vpack.c.bf16 %v202, %v202
  %v219 = vpack.c.bf16 %v203, %v203
  %v220 = vpack.c.bf16 %v204, %v204
  %v221 = vpack.c.bf16 %v205, %v205
  %v222 = vpack.c.bf16 %v206, %v206
  %v223 = vpack.c.bf16 %v207, %v207
  %v224 = vpack.c.bf16 %v208, %v208
  %v225 = vpack.c.bf16 %v209, %v209
  %v226 = vpack.c.bf16 %v210, %v210
  %vm227 = vcmask 125952
  %228 = vst.msk [vmem:[%s3] sm:$0xf] %vm227, %v211
  %229 = vst.msk [vmem:[%s3 + $0x4] sm:$0xf] %vm227, %v212
  %230 = vst.msk [vmem:[%s3 + $0x8] sm:$0xf] %vm227, %v213
  %231 = vst.msk [vmem:[%s3 + $0xc] sm:$0xf] %vm227, %v214
  %232 = vst.msk [vmem:[%s3 + $0x10] sm:$0xf] %vm227, %v215
  %233 = vst.msk [vmem:[%s3 + $0x14] sm:$0xf] %vm227, %v216
  %234 = vst.msk [vmem:[%s3 + $0x18] sm:$0xf] %vm227, %v217
  %235 = vst.msk [vmem:[%s3 + $0x1c] sm:$0xf] %vm227, %v218
  %236 = vst.msk [vmem:[%s3 + $0x20] sm:$0xf] %vm227, %v219
  %237 = vst.msk [vmem:[%s3 + $0x24] sm:$0xf] %vm227, %v220
  %238 = vst.msk [vmem:[%s3 + $0x28] sm:$0xf] %vm227, %v221
  %239 = vst.msk [vmem:[%s3 + $0x2c] sm:$0xf] %vm227, %v222
  %240 = vst.msk [vmem:[%s3 + $0x30] sm:$0xf] %vm227, %v223
  %241 = vst.msk [vmem:[%s3 + $0x34] sm:$0xf] %vm227, %v224
  %242 = vst.msk [vmem:[%s3 + $0x38] sm:$0xf] %vm227, %v225
  %243 = vst.msk [vmem:[%s3 + $0x3c] sm:$0xf] %vm227, %v226
  // Predicated region
  $region14: #{conv_vae_forward.8} parent=0 // pred_check
    _
  $region15: #{conv_vae_forward.8} parent=0 // pred_check_branch
    %245 = sbr.rel (0) target = $region17
  $region16: #{conv_vae_forward.8} parent=0 // pred_region
    _
  $region17: #{conv_vae_forward.8} parent=0 // pred_fallthru
    _
  // Predicated region
  $region18: #{conv_vae_forward.8} parent=0 // pred_check
    _
  $region19: #{conv_vae_forward.8} parent=0 // pred_check_branch
    %247 = sbr.rel (0) target = $region21
  $region20: #{conv_vae_forward.8} parent=0 // pred_region
    _
  $region21: #{conv_vae_forward.8} parent=0 // pred_fallthru
    _

// kernel: conv_vae_forward.9
$region0: #{conv_vae_forward.9}
  #allocation0 [shape = 'u32[]', space=smem, size = 0x4, offset = 0x4, fixed_abs, tag = 'smem constant byte address 0x4 - core index']
  #allocation1 [shape = 'u32[72,128]{1,0:T(1,128)}', space=vmem, size = 0x9000, scoped, tag = 'internal scratch']
  %s0 = inlined_call_operand.vmem [shape: bf16[32,256], index: 0, kind: input, shape index: {}]
  %s1 = inlined_call_operand.vmem [shape: bf16[256,32], index: 1, kind: input, shape index: {}]
  %s2 = inlined_call_operand.vmem [shape: f32[1,32], index: 2, kind: input, shape index: {}]
  %s3 = inlined_call_operand.vmem [shape: bf16[32,32], index: 3, kind: output, shape index: {}]
  %s4 = sld [smem:[#allocation0]]
  $region22: #{conv_vae_forward.9} parent=0
    _
  %s6 = ssub.s32 1, %s4
  %s7 = scalar_select 0, %s6, %s4
  // Predicated region
  $region2: #{conv_vae_forward.9} parent=0 // pred_check
    _
  $region3: #{conv_vae_forward.9} parent=0 // pred_check_branch
    %9 = sbr.rel (0) target = $region5
  $region4: #{conv_vae_forward.9} parent=0 // pred_region
    _
  $region5: #{conv_vae_forward.9} parent=0 // pred_fallthru
    _
  // Predicated region
  $region6: #{conv_vae_forward.9} parent=0 // pred_check
    _
  $region7: #{conv_vae_forward.9} parent=0 // pred_check_branch
    %11 = sbr.rel (0) target = $region9
  $region8: #{conv_vae_forward.9} parent=0 // pred_region
    _
  $region9: #{conv_vae_forward.9} parent=0 // pred_fallthru
    _
  // Predicated region
  $region10: #{conv_vae_forward.9} parent=0 // pred_check
    _
  $region11: #{conv_vae_forward.9} parent=0 // pred_check_branch
    %13 = sbr.rel (0) target = $region13
  $region12: #{conv_vae_forward.9} parent=0 // pred_region
    _
  $region13: #{conv_vae_forward.9} parent=0 // pred_fallthru
    _
  %v14 = vld [vmem:[%s0] sm:$0xff]
  %v15 = vld [vmem:[%s0 + $0x8] sm:$0xff]
  %v16 = vld [vmem:[%s0 + $0x10] sm:$0xff]
  %v17 = vld [vmem:[%s0 + $0x18] sm:$0xff]
  %v18 = vld [vmem:[%s1] sm:$0xf]
  %v19 = vld [vmem:[%s1 + $0x4] sm:$0xf]
  %v20 = vld [vmem:[%s1 + $0x8] sm:$0xf]
  %v21 = vld [vmem:[%s1 + $0xc] sm:$0xf]
  %v22 = vld [vmem:[%s1 + $0x10] sm:$0xf]
  %v23 = vld [vmem:[%s1 + $0x14] sm:$0xf]
  %v24 = vld [vmem:[%s1 + $0x18] sm:$0xf]
  %v25 = vld [vmem:[%s1 + $0x1c] sm:$0xf]
  %v26 = vld [vmem:[%s1 + $0x20] sm:$0xf]
  %v27 = vld [vmem:[%s1 + $0x24] sm:$0xf]
  %v28 = vld [vmem:[%s1 + $0x28] sm:$0xf]
  %v29 = vld [vmem:[%s1 + $0x2c] sm:$0xf]
  %v30 = vld [vmem:[%s1 + $0x30] sm:$0xf]
  %v31 = vld [vmem:[%s1 + $0x34] sm:$0xf]
  %v32 = vld [vmem:[%s1 + $0x38] sm:$0xf]
  %v33 = vld [vmem:[%s1 + $0x3c] sm:$0xf]
  %v34 = vld [vmem:[%s1 + $0x40] sm:$0xf]
  %v35 = vld [vmem:[%s1 + $0x44] sm:$0xf]
  %v36 = vld [vmem:[%s1 + $0x48] sm:$0xf]
  %v37 = vld [vmem:[%s1 + $0x4c] sm:$0xf]
  %v38 = vld [vmem:[%s1 + $0x50] sm:$0xf]
  %v39 = vld [vmem:[%s1 + $0x54] sm:$0xf]
  %v40 = vld [vmem:[%s1 + $0x58] sm:$0xf]
  %v41 = vld [vmem:[%s1 + $0x5c] sm:$0xf]
  %v42 = vld [vmem:[%s1 + $0x60] sm:$0xf]
  %v43 = vld [vmem:[%s1 + $0x64] sm:$0xf]
  %v44 = vld [vmem:[%s1 + $0x68] sm:$0xf]
  %v45 = vld [vmem:[%s1 + $0x6c] sm:$0xf]
  %v46 = vld [vmem:[%s1 + $0x70] sm:$0xf]
  %v47 = vld [vmem:[%s1 + $0x74] sm:$0xf]
  %v48 = vld [vmem:[%s1 + $0x78] sm:$0xf]
  %v49 = vld [vmem:[%s1 + $0x7c] sm:$0xf]
  %v50 = vld [vmem:[%s2] sm:$0x1]
  %v52 = vperm.slane %v50, 0
  %v58 = vunpack.c.l.b16 %v14
  %v59 = vunpack.c.h.b16 %v14
  %v60 = vunpack.c.l.b16 %v15
  %v61 = vunpack.c.h.b16 %v15
  %v62 = vunpack.c.l.b16 %v16
  %v63 = vunpack.c.h.b16 %v16
  %v64 = vunpack.c.l.b16 %v17
  %v65 = vunpack.c.h.b16 %v17
  %v66 = vpack.c.b16 %v60, %v58
  %v67 = vpack.c.b16 %v61, %v59
  %v68 = vpack.c.b16 %v64, %v62
  %v69 = vpack.c.b16 %v65, %v63
  %v106 = vunpack.c.l.b16 %v18
  %v107 = vunpack.c.l.b16 %v19
  %v108 = vunpack.c.l.b16 %v20
  %v109 = vunpack.c.l.b16 %v21
  %v110 = vunpack.c.l.b16 %v22
  %v111 = vunpack.c.l.b16 %v23
  %v112 = vunpack.c.l.b16 %v24
  %v113 = vunpack.c.l.b16 %v25
  %v114 = vunpack.c.l.b16 %v26
  %v115 = vunpack.c.l.b16 %v27
  %v116 = vunpack.c.l.b16 %v28
  %v117 = vunpack.c.l.b16 %v29
  %v118 = vunpack.c.l.b16 %v30
  %v119 = vunpack.c.l.b16 %v31
  %v120 = vunpack.c.l.b16 %v32
  %v121 = vunpack.c.l.b16 %v33
  %v122 = vunpack.c.l.b16 %v34
  %v123 = vunpack.c.l.b16 %v35
  %v124 = vunpack.c.l.b16 %v36
  %v125 = vunpack.c.l.b16 %v37
  %v126 = vunpack.c.l.b16 %v38
  %v127 = vunpack.c.l.b16 %v39
  %v128 = vunpack.c.l.b16 %v40
  %v129 = vunpack.c.l.b16 %v41
  %v130 = vunpack.c.l.b16 %v42
  %v131 = vunpack.c.l.b16 %v43
  %v132 = vunpack.c.l.b16 %v44
  %v133 = vunpack.c.l.b16 %v45
  %v134 = vunpack.c.l.b16 %v46
  %v135 = vunpack.c.l.b16 %v47
  %v136 = vunpack.c.l.b16 %v48
  %v137 = vunpack.c.l.b16 %v49
  %v138 = vpack.c.b16 %v107, %v106
  %v139 = vpack.c.b16 %v109, %v108
  %v140 = vpack.c.b16 %v111, %v110
  %v141 = vpack.c.b16 %v113, %v112
  %v142 = vpack.c.b16 %v115, %v114
  %v143 = vpack.c.b16 %v117, %v116
  %v144 = vpack.c.b16 %v119, %v118
  %v145 = vpack.c.b16 %v121, %v120
  %v146 = vpack.c.b16 %v123, %v122
  %v147 = vpack.c.b16 %v125, %v124
  %v148 = vpack.c.b16 %v127, %v126
  %v149 = vpack.c.b16 %v129, %v128
  %v150 = vpack.c.b16 %v131, %v130
  %v151 = vpack.c.b16 %v133, %v132
  %v152 = vpack.c.b16 %v135, %v134
  %v153 = vpack.c.b16 %v137, %v136
  %170 = vmatpush.bf16.msra.mxu0 %v145
  %171 = vmatpush.bf16.msra.mxu0 %v144
  %172 = vmatpush.bf16.msra.mxu0 %v143
  %173 = vmatpush.bf16.msra.mxu0 %v142
  %174 = vmatpush.bf16.msra.mxu0 %v141
  %175 = vmatpush.bf16.msra.mxu0 %v140
  %176 = vmatpush.bf16.msra.mxu0 %v139
  %177 = vmatpush.bf16.msra.mxu0 %v138
  %178 = vmatmul.bf16.gmra.mxu0 %v66
  %v179 = vpop.f32.mrf.mxu0
  %v180 = vadd.f32 %v52, %v179
  %v181 = vpop.f32.mrf.mxu0
  %v182 = vadd.f32 %v52, %v181
  %183 = vmatmul.bf16.gmra.mxu0 %v68
  %v184 = vpop.f32.mrf.mxu0
  %v185 = vadd.f32 %v52, %v184
  %v186 = vpop.f32.mrf.mxu0
  %v187 = vadd.f32 %v52, %v186
  %188 = vdwg.mxu0
  %189 = vmatpush.bf16.msra.mxu0 %v153
  %190 = vmatpush.bf16.msra.mxu0 %v152
  %191 = vmatpush.bf16.msra.mxu0 %v151
  %192 = vmatpush.bf16.msra.mxu0 %v150
  %193 = vmatpush.bf16.msra.mxu0 %v149
  %194 = vmatpush.bf16.msra.mxu0 %v148
  %195 = vmatpush.bf16.msra.mxu0 %v147
  %196 = vmatpush.bf16.msra.mxu0 %v146
  %197 = vmatmul.bf16.gmra.mxu0 %v67
  %v198 = vpop.f32.mrf.mxu0
  %v199 = vadd.f32 %v180, %v198
  %v200 = vpop.f32.mrf.mxu0
  %v201 = vadd.f32 %v182, %v200
  %202 = vmatmul.bf16.gmra.mxu0 %v69
  %v203 = vpop.f32.mrf.mxu0
  %v204 = vadd.f32 %v185, %v203
  %v205 = vpop.f32.mrf.mxu0
  %v206 = vadd.f32 %v187, %v205
  %207 = vdwg.mxu0
  %v208 = vmax.f32 %v199, 0.0
  %v209 = vmax.f32 %v201, 0.0
  %v210 = vmax.f32 %v204, 0.0
  %v211 = vmax.f32 %v206, 0.0
  %v212 = vpack.c.bf16 %v208, %v208
  %v213 = vpack.c.bf16 %v209, %v209
  %v214 = vpack.c.bf16 %v210, %v210
  %v215 = vpack.c.bf16 %v211, %v211
  %vm216 = vcmask 257024
  %217 = vst.msk [vmem:[%s3] sm:$0xf] %vm216, %v212
  %218 = vst.msk [vmem:[%s3 + $0x4] sm:$0xf] %vm216, %v213
  %219 = vst.msk [vmem:[%s3 + $0x8] sm:$0xf] %vm216, %v214
  %220 = vst.msk [vmem:[%s3 + $0xc] sm:$0xf] %vm216, %v215
  // Predicated region
  $region14: #{conv_vae_forward.9} parent=0 // pred_check
    _
  $region15: #{conv_vae_forward.9} parent=0 // pred_check_branch
    %222 = sbr.rel (0) target = $region17
  $region16: #{conv_vae_forward.9} parent=0 // pred_region
    _
  $region17: #{conv_vae_forward.9} parent=0 // pred_fallthru
    _
  // Predicated region
  $region18: #{conv_vae_forward.9} parent=0 // pred_check
    _
  $region19: #{conv_vae_forward.9} parent=0 // pred_check_branch
    %224 = sbr.rel (0) target = $region21
  $region20: #{conv_vae_forward.9} parent=0 // pred_region
    _
  $region21: #{conv_vae_forward.9} parent=0 // pred_fallthru
    _

// kernel: conv_vae_forward.10
$region0: #{conv_vae_forward.10}
  #allocation0 [shape = 'u32[]', space=smem, size = 0x4, offset = 0x4, fixed_abs, tag = 'smem constant byte address 0x4 - core index']
  #allocation1 [shape = 'u32[72,128]{1,0:T(1,128)}', space=vmem, size = 0x9000, scoped, tag = 'internal scratch']
  %s0 = inlined_call_operand.vmem [shape: bf16[2,512], index: 0, kind: input, shape index: {}]
  %s1 = inlined_call_operand.vmem [shape: f32[2,16], index: 1, kind: input, shape index: {}]
  %s2 = inlined_call_operand.vmem [shape: bf16[512,64], index: 2, kind: input, shape index: {}]
  %s3 = inlined_call_operand.vmem [shape: f32[1,64], index: 3, kind: input, shape index: {}]
  %s4 = inlined_call_operand.vmem [shape: bf16[64,128], index: 4, kind: input, shape index: {}]
  %s5 = inlined_call_operand.vmem [shape: f32[1,128], index: 5, kind: input, shape index: {}]
  %s6 = inlined_call_operand.vmem [shape: bf16[128,32], index: 6, kind: input, shape index: {}]
  %s7 = inlined_call_operand.vmem [shape: f32[1,32], index: 7, kind: input, shape index: {}]
  %s8 = inlined_call_operand.vmem [shape: bf16[16,64], index: 8, kind: input, shape index: {}]
  %s9 = inlined_call_operand.vmem [shape: f32[1,64], index: 9, kind: input, shape index: {}]
  %s10 = inlined_call_operand.vmem [shape: bf16[64,1024], index: 10, kind: input, shape index: {}]
  %s11 = inlined_call_operand.vmem [shape: f32[1,1024], index: 11, kind: input, shape index: {}]
  %s12 = inlined_call_operand.vmem [shape: f32[2,32], index: 12, kind: output, shape index: {0}]
  %s13 = inlined_call_operand.vmem [shape: bf16[2,1024], index: 13, kind: output, shape index: {1}]
  %14 = xla_tuple %s12, %s13
  %s15 = sld [smem:[#allocation0]]
  $region66: #{conv_vae_forward.10} parent=0
    _
  %s17 = ssub.s32 1, %s15
  %s18 = scalar_select 0, %s17, %s15
  // Predicated region
  $region2: #{conv_vae_forward.10} parent=0 // pred_check
    _
  $region3: #{conv_vae_forward.10} parent=0 // pred_check_branch
    %20 = sbr.rel (0) target = $region5
  $region4: #{conv_vae_forward.10} parent=0 // pred_region
    _
  $region5: #{conv_vae_forward.10} parent=0 // pred_fallthru
    _
  // Predicated region
  $region6: #{conv_vae_forward.10} parent=0 // pred_check
    _
  $region7: #{conv_vae_forward.10} parent=0 // pred_check_branch
    %22 = sbr.rel (0) target = $region9
  $region8: #{conv_vae_forward.10} parent=0 // pred_region
    _
  $region9: #{conv_vae_forward.10} parent=0 // pred_fallthru
    _
  // Predicated region
  $region10: #{conv_vae_forward.10} parent=0 // pred_check
    _
  $region11: #{conv_vae_forward.10} parent=0 // pred_check_branch
    %24 = sbr.rel (0) target = $region13
  $region12: #{conv_vae_forward.10} parent=0 // pred_region
    _
  $region13: #{conv_vae_forward.10} parent=0 // pred_fallthru
    _
  // Predicated region
  $region14: #{conv_vae_forward.10} parent=0 // pred_check
    _
  $region15: #{conv_vae_forward.10} parent=0 // pred_check_branch
    %26 = sbr.rel (0) target = $region17
  $region16: #{conv_vae_forward.10} parent=0 // pred_region
    _
  $region17: #{conv_vae_forward.10} parent=0 // pred_fallthru
    _
  // Predicated region
  $region18: #{conv_vae_forward.10} parent=0 // pred_check
    _
  $region19: #{conv_vae_forward.10} parent=0 // pred_check_branch
    %28 = sbr.rel (0) target = $region21
  $region20: #{conv_vae_forward.10} parent=0 // pred_region
    _
  $region21: #{conv_vae_forward.10} parent=0 // pred_fallthru
    _
  // Predicated region
  $region22: #{conv_vae_forward.10} parent=0 // pred_check
    _
  $region23: #{conv_vae_forward.10} parent=0 // pred_check_branch
    %30 = sbr.rel (0) target = $region25
  $region24: #{conv_vae_forward.10} parent=0 // pred_region
    _
  $region25: #{conv_vae_forward.10} parent=0 // pred_fallthru
    _
  // Predicated region
  $region26: #{conv_vae_forward.10} parent=0 // pred_check
    _
  $region27: #{conv_vae_forward.10} parent=0 // pred_check_branch
    %32 = sbr.rel (0) target = $region29
  $region28: #{conv_vae_forward.10} parent=0 // pred_region
    _
  $region29: #{conv_vae_forward.10} parent=0 // pred_fallthru
    _
  // Predicated region
  $region30: #{conv_vae_forward.10} parent=0 // pred_check
    _
  $region31: #{conv_vae_forward.10} parent=0 // pred_check_branch
    %34 = sbr.rel (0) target = $region33
  $region32: #{conv_vae_forward.10} parent=0 // pred_region
    _
  $region33: #{conv_vae_forward.10} parent=0 // pred_fallthru
    _
  // Predicated region
  $region34: #{conv_vae_forward.10} parent=0 // pred_check
    _
  $region35: #{conv_vae_forward.10} parent=0 // pred_check_branch
    %36 = sbr.rel (0) target = $region37
  $region36: #{conv_vae_forward.10} parent=0 // pred_region
    _
  $region37: #{conv_vae_forward.10} parent=0 // pred_fallthru
    _
  // Predicated region
  $region38: #{conv_vae_forward.10} parent=0 // pred_check
    _
  $region39: #{conv_vae_forward.10} parent=0 // pred_check_branch
    %38 = sbr.rel (0) target = $region41
  $region40: #{conv_vae_forward.10} parent=0 // pred_region
    _
  $region41: #{conv_vae_forward.10} parent=0 // pred_fallthru
    _
  // Predicated region
  $region42: #{conv_vae_forward.10} parent=0 // pred_check
    _
  $region43: #{conv_vae_forward.10} parent=0 // pred_check_branch
    %40 = sbr.rel (0) target = $region45
  $region44: #{conv_vae_forward.10} parent=0 // pred_region
    _
  $region45: #{conv_vae_forward.10} parent=0 // pred_fallthru
    _
  // Predicated region
  $region46: #{conv_vae_forward.10} parent=0 // pred_check
    _
  $region47: #{conv_vae_forward.10} parent=0 // pred_check_branch
    %42 = sbr.rel (0) target = $region49
  $region48: #{conv_vae_forward.10} parent=0 // pred_region
    _
  $region49: #{conv_vae_forward.10} parent=0 // pred_fallthru
    _
  %v44 = vld [vmem:[%s0] sm:$0xf]
  %v45 = vld [vmem:[%s2] sm:$0xf]
  %v46 = vld [vmem:[%s2 + $0x4] sm:$0xf]
  %v47 = vld [vmem:[%s2 + $0x8] sm:$0xf]
  %v48 = vld [vmem:[%s2 + $0xc] sm:$0xf]
  %v49 = vld [vmem:[%s2 + $0x10] sm:$0xf]
  %v50 = vld [vmem:[%s2 + $0x14] sm:$0xf]
  %v51 = vld [vmem:[%s2 + $0x18] sm:$0xf]
  %v52 = vld [vmem:[%s2 + $0x1c] sm:$0xf]
  %v53 = vld [vmem:[%s2 + $0x20] sm:$0xf]
  %v54 = vld [vmem:[%s2 + $0x24] sm:$0xf]
  %v55 = vld [vmem:[%s2 + $0x28] sm:$0xf]
  %v56 = vld [vmem:[%s2 + $0x2c] sm:$0xf]
  %v57 = vld [vmem:[%s2 + $0x30] sm:$0xf]
  %v58 = vld [vmem:[%s2 + $0x34] sm:$0xf]
  %v59 = vld [vmem:[%s2 + $0x38] sm:$0xf]
  %v60 = vld [vmem:[%s2 + $0x3c] sm:$0xf]
  %v61 = vld [vmem:[%s2 + $0x40] sm:$0xf]
  %v62 = vld [vmem:[%s2 + $0x44] sm:$0xf]
  %v63 = vld [vmem:[%s2 + $0x48] sm:$0xf]
  %v64 = vld [vmem:[%s2 + $0x4c] sm:$0xf]
  %v65 = vld [vmem:[%s2 + $0x50] sm:$0xf]
  %v66 = vld [vmem:[%s2 + $0x54] sm:$0xf]
  %v67 = vld [vmem:[%s2 + $0x58] sm:$0xf]
  %v68 = vld [vmem:[%s2 + $0x5c] sm:$0xf]
  %v69 = vld [vmem:[%s2 + $0x60] sm:$0xf]
  %v70 = vld [vmem:[%s2 + $0x64] sm:$0xf]
  %v71 = vld [vmem:[%s2 + $0x68] sm:$0xf]
  %v72 = vld [vmem:[%s2 + $0x6c] sm:$0xf]
  %v73 = vld [vmem:[%s2 + $0x70] sm:$0xf]
  %v74 = vld [vmem:[%s2 + $0x74] sm:$0xf]
  %v75 = vld [vmem:[%s2 + $0x78] sm:$0xf]
  %v76 = vld [vmem:[%s2 + $0x7c] sm:$0xf]
  %v77 = vld [vmem:[%s2 + $0x80] sm:$0xf]
  %v78 = vld [vmem:[%s2 + $0x84] sm:$0xf]
  %v79 = vld [vmem:[%s2 + $0x88] sm:$0xf]
  %v80 = vld [vmem:[%s2 + $0x8c] sm:$0xf]
  %v81 = vld [vmem:[%s2 + $0x90] sm:$0xf]
  %v82 = vld [vmem:[%s2 + $0x94] sm:$0xf]
  %v83 = vld [vmem:[%s2 + $0x98] sm:$0xf]
  %v84 = vld [vmem:[%s2 + $0x9c] sm:$0xf]
  %v85 = vld [vmem:[%s2 + $0xa0] sm:$0xf]
  %v86 = vld [vmem:[%s2 + $0xa4] sm:$0xf]
  %v87 = vld [vmem:[%s2 + $0xa8] sm:$0xf]
  %v88 = vld [vmem:[%s2 + $0xac] sm:$0xf]
  %v89 = vld [vmem:[%s2 + $0xb0] sm:$0xf]
  %v90 = vld [vmem:[%s2 + $0xb4] sm:$0xf]
  %v91 = vld [vmem:[%s2 + $0xb8] sm:$0xf]
  %v92 = vld [vmem:[%s2 + $0xbc] sm:$0xf]
  %v93 = vld [vmem:[%s2 + $0xc0] sm:$0xf]
  %v94 = vld [vmem:[%s2 + $0xc4] sm:$0xf]
  %v95 = vld [vmem:[%s2 + $0xc8] sm:$0xf]
  %v96 = vld [vmem:[%s2 + $0xcc] sm:$0xf]
  %v97 = vld [vmem:[%s2 + $0xd0] sm:$0xf]
  %v98 = vld [vmem:[%s2 + $0xd4] sm:$0xf]
  %v99 = vld [vmem:[%s2 + $0xd8] sm:$0xf]
  %v100 = vld [vmem:[%s2 + $0xdc] sm:$0xf]
  %v101 = vld [vmem:[%s2 + $0xe0] sm:$0xf]
  %v102 = vld [vmem:[%s2 + $0xe4] sm:$0xf]
  %v103 = vld [vmem:[%s2 + $0xe8] sm:$0xf]
  %v104 = vld [vmem:[%s2 + $0xec] sm:$0xf]
  %v105 = vld [vmem:[%s2 + $0xf0] sm:$0xf]
  %v106 = vld [vmem:[%s2 + $0xf4] sm:$0xf]
  %v107 = vld [vmem:[%s2 + $0xf8] sm:$0xf]
  %v108 = vld [vmem:[%s2 + $0xfc] sm:$0xf]
  %v109 = vld [vmem:[%s3] sm:$0x1]
  %v111 = vperm.slane %v109, 0
  %114 = vst [vmem:[#allocation1] ss:$9 sm:$0xff] %v44
  %v115 = vld [vmem:[#allocation1] sm:$0xff]
  %v116 = vld [vmem:[#allocation1 + $0x9] sm:$0xff]
  %v117 = vld [vmem:[#allocation1 + $0x12] sm:$0xff]
  %v118 = vld [vmem:[#allocation1 + $0x1b] sm:$0xff]
  %v187 = vunpack.c.l.b16 %v45
  %v188 = vunpack.c.l.b16 %v46
  %v189 = vunpack.c.l.b16 %v47
  %v190 = vunpack.c.l.b16 %v48
  %v191 = vunpack.c.l.b16 %v49
  %v192 = vunpack.c.l.b16 %v50
  %v193 = vunpack.c.l.b16 %v51
  %v194 = vunpack.c.l.b16 %v52
  %v195 = vunpack.c.l.b16 %v53
  %v196 = vunpack.c.l.b16 %v54
  %v197 = vunpack.c.l.b16 %v55
  %v198 = vunpack.c.l.b16 %v56
  %v199 = vunpack.c.l.b16 %v57
  %v200 = vunpack.c.l.b16 %v58
  %v201 = vunpack.c.l.b16 %v59
  %v202 = vunpack.c.l.b16 %v60
  %v203 = vunpack.c.l.b16 %v61
  %v204 = vunpack.c.l.b16 %v62
  %v205 = vunpack.c.l.b16 %v63
  %v206 = vunpack.c.l.b16 %v64
  %v207 = vunpack.c.l.b16 %v65
  %v208 = vunpack.c.l.b16 %v66
  %v209 = vunpack.c.l.b16 %v67
  %v210 = vunpack.c.l.b16 %v68
  %v211 = vunpack.c.l.b16 %v69
  %v212 = vunpack.c.l.b16 %v70
  %v213 = vunpack.c.l.b16 %v71
  %v214 = vunpack.c.l.b16 %v72
  %v215 = vunpack.c.l.b16 %v73
  %v216 = vunpack.c.l.b16 %v74
  %v217 = vunpack.c.l.b16 %v75
  %v218 = vunpack.c.l.b16 %v76
  %v219 = vunpack.c.l.b16 %v77
  %v220 = vunpack.c.l.b16 %v78
  %v221 = vunpack.c.l.b16 %v79
  %v222 = vunpack.c.l.b16 %v80
  %v223 = vunpack.c.l.b16 %v81
  %v224 = vunpack.c.l.b16 %v82
  %v225 = vunpack.c.l.b16 %v83
  %v226 = vunpack.c.l.b16 %v84
  %v227 = vunpack.c.l.b16 %v85
  %v228 = vunpack.c.l.b16 %v86
  %v229 = vunpack.c.l.b16 %v87
  %v230 = vunpack.c.l.b16 %v88
  %v231 = vunpack.c.l.b16 %v89
  %v232 = vunpack.c.l.b16 %v90
  %v233 = vunpack.c.l.b16 %v91
  %v234 = vunpack.c.l.b16 %v92
  %v235 = vunpack.c.l.b16 %v93
  %v236 = vunpack.c.l.b16 %v94
  %v237 = vunpack.c.l.b16 %v95
  %v238 = vunpack.c.l.b16 %v96
  %v239 = vunpack.c.l.b16 %v97
  %v240 = vunpack.c.l.b16 %v98
  %v241 = vunpack.c.l.b16 %v99
  %v242 = vunpack.c.l.b16 %v100
  %v243 = vunpack.c.l.b16 %v101
  %v244 = vunpack.c.l.b16 %v102
  %v245 = vunpack.c.l.b16 %v103
  %v246 = vunpack.c.l.b16 %v104
  %v247 = vunpack.c.l.b16 %v105
  %v248 = vunpack.c.l.b16 %v106
  %v249 = vunpack.c.l.b16 %v107
  %v250 = vunpack.c.l.b16 %v108
  %v251 = vpack.c.b16 %v188, %v187
  %v252 = vpack.c.b16 %v190, %v189
  %v253 = vpack.c.b16 %v192, %v191
  %v254 = vpack.c.b16 %v194, %v193
  %v255 = vpack.c.b16 %v196, %v195
  %v256 = vpack.c.b16 %v198, %v197
  %v257 = vpack.c.b16 %v200, %v199
  %v258 = vpack.c.b16 %v202, %v201
  %v259 = vpack.c.b16 %v204, %v203
  %v260 = vpack.c.b16 %v206, %v205
  %v261 = vpack.c.b16 %v208, %v207
  %v262 = vpack.c.b16 %v210, %v209
  %v263 = vpack.c.b16 %v212, %v211
  %v264 = vpack.c.b16 %v214, %v213
  %v265 = vpack.c.b16 %v216, %v215
  %v266 = vpack.c.b16 %v218, %v217
  %v267 = vpack.c.b16 %v220, %v219
  %v268 = vpack.c.b16 %v222, %v221
  %v269 = vpack.c.b16 %v224, %v223
  %v270 = vpack.c.b16 %v226, %v225
  %v271 = vpack.c.b16 %v228, %v227
  %v272 = vpack.c.b16 %v230, %v229
  %v273 = vpack.c.b16 %v232, %v231
  %v274 = vpack.c.b16 %v234, %v233
  %v275 = vpack.c.b16 %v236, %v235
  %v276 = vpack.c.b16 %v238, %v237
  %v277 = vpack.c.b16 %v240, %v239
  %v278 = vpack.c.b16 %v242, %v241
  %v279 = vpack.c.b16 %v244, %v243
  %v280 = vpack.c.b16 %v246, %v245
  %v281 = vpack.c.b16 %v248, %v247
  %v282 = vpack.c.b16 %v250, %v249
  %315 = vmatpush.bf16.msra.mxu0 %v258
  %316 = vmatpush.bf16.msra.mxu0 %v257
  %317 = vmatpush.bf16.msra.mxu0 %v256
  %318 = vmatpush.bf16.msra.mxu0 %v255
  %319 = vmatpush.bf16.msra.mxu0 %v254
  %320 = vmatpush.bf16.msra.mxu0 %v253
  %321 = vmatpush.bf16.msra.mxu0 %v252
  %322 = vmatpush.bf16.msra.mxu0 %v251
  %323 = vmatmul.bf16.gmra.mxu0 %v115
  %v324 = vpop.f32.mrf.mxu0
  %v325 = vadd.f32 %v111, %v324
  %v326 = vpop.f32.mrf.mxu0
  %327 = vdwg.mxu0
  %328 = vmatpush.bf16.msra.mxu0 %v266
  %329 = vmatpush.bf16.msra.mxu0 %v265
  %330 = vmatpush.bf16.msra.mxu0 %v264
  %331 = vmatpush.bf16.msra.mxu0 %v263
  %332 = vmatpush.bf16.msra.mxu0 %v262
  %333 = vmatpush.bf16.msra.mxu0 %v261
  %334 = vmatpush.bf16.msra.mxu0 %v260
  %335 = vmatpush.bf16.msra.mxu0 %v259
  %336 = vmatmul.bf16.gmra.mxu0 %v116
  %v337 = vpop.f32.mrf.mxu0
  %v338 = vadd.f32 %v325, %v337
  %v339 = vpop.f32.mrf.mxu0
  %340 = vdwg.mxu0
  %341 = vmatpush.bf16.msra.mxu0 %v274
  %342 = vmatpush.bf16.msra.mxu0 %v273
  %343 = vmatpush.bf16.msra.mxu0 %v272
  %344 = vmatpush.bf16.msra.mxu0 %v271
  %345 = vmatpush.bf16.msra.mxu0 %v270
  %346 = vmatpush.bf16.msra.mxu0 %v269
  %347 = vmatpush.bf16.msra.mxu0 %v268
  %348 = vmatpush.bf16.msra.mxu0 %v267
  %349 = vmatmul.bf16.gmra.mxu0 %v117
  %v350 = vpop.f32.mrf.mxu0
  %v351 = vadd.f32 %v338, %v350
  %v352 = vpop.f32.mrf.mxu0
  %353 = vdwg.mxu0
  %354 = vmatpush.bf16.msra.mxu0 %v282
  %355 = vmatpush.bf16.msra.mxu0 %v281
  %356 = vmatpush.bf16.msra.mxu0 %v280
  %357 = vmatpush.bf16.msra.mxu0 %v279
  %358 = vmatpush.bf16.msra.mxu0 %v278
  %359 = vmatpush.bf16.msra.mxu0 %v277
  %360 = vmatpush.bf16.msra.mxu0 %v276
  %361 = vmatpush.bf16.msra.mxu0 %v275
  %362 = vmatmul.bf16.gmra.mxu0 %v118
  %v363 = vpop.f32.mrf.mxu0
  %v364 = vadd.f32 %v351, %v363
  %v365 = vpop.f32.mrf.mxu0
  %366 = vdwg.mxu0
  %v367 = vmax.f32 %v364, 0.0
  %v368 = vpack.c.bf16 %v367, %v367
  %v369 = vld [vmem:[%s4] sm:$0xf]
  %v370 = vld [vmem:[%s4 + $0x4] sm:$0xf]
  %v371 = vld [vmem:[%s4 + $0x8] sm:$0xf]
  %v372 = vld [vmem:[%s4 + $0xc] sm:$0xf]
  %v373 = vld [vmem:[%s4 + $0x10] sm:$0xf]
  %v374 = vld [vmem:[%s4 + $0x14] sm:$0xf]
  %v375 = vld [vmem:[%s4 + $0x18] sm:$0xf]
  %v376 = vld [vmem:[%s4 + $0x1c] sm:$0xf]
  %v377 = vld [vmem:[%s5] sm:$0x1]
  %v379 = vperm.slane %v377, 0
  %v389 = vunpack.c.l.b16 %v369
  %v390 = vunpack.c.l.b16 %v370
  %v391 = vunpack.c.l.b16 %v371
  %v392 = vunpack.c.l.b16 %v372
  %v393 = vunpack.c.l.b16 %v373
  %v394 = vunpack.c.l.b16 %v374
  %v395 = vunpack.c.l.b16 %v375
  %v396 = vunpack.c.l.b16 %v376
  %v397 = vpack.c.b16 %v390, %v389
  %v398 = vpack.c.b16 %v392, %v391
  %v399 = vpack.c.b16 %v394, %v393
  %v400 = vpack.c.b16 %v396, %v395
  %vm405 = vcmask 523264
  %v407 = vsel %vm405, %v368, 0
  %409 = vmatpush.bf16.msra.mxu0 0
  %410 = vmatpush.bf16.msra.mxu0 0
  %411 = vmatpush.bf16.msra.mxu0 0
  %412 = vmatpush.bf16.msra.mxu0 0
  %413 = vmatpush.bf16.msra.mxu0 %v400
  %414 = vmatpush.bf16.msra.mxu0 %v399
  %415 = vmatpush.bf16.msra.mxu0 %v398
  %416 = vmatpush.bf16.msra.mxu0 %v397
  %417 = vmatmul.bf16.gmra.mxu0 %v407
  %v418 = vpop.f32.mrf.mxu0
  %v419 = vadd.f32 %v379, %v418
  %v420 = vpop.f32.mrf.mxu0
  %421 = vdwg.mxu0
  %v422 = vpack.c.bf16 %v419, %v419
  %v423 = vld [vmem:[%s6] sm:$0xf]
  %v424 = vld [vmem:[%s6 + $0x4] sm:$0xf]
  %v425 = vld [vmem:[%s6 + $0x8] sm:$0xf]
  %v426 = vld [vmem:[%s6 + $0xc] sm:$0xf]
  %v427 = vld [vmem:[%s6 + $0x10] sm:$0xf]
  %v428 = vld [vmem:[%s6 + $0x14] sm:$0xf]
  %v429 = vld [vmem:[%s6 + $0x18] sm:$0xf]
  %v430 = vld [vmem:[%s6 + $0x1c] sm:$0xf]
  %v431 = vld [vmem:[%s6 + $0x20] sm:$0xf]
  %v432 = vld [vmem:[%s6 + $0x24] sm:$0xf]
  %v433 = vld [vmem:[%s6 + $0x28] sm:$0xf]
  %v434 = vld [vmem:[%s6 + $0x2c] sm:$0xf]
  %v435 = vld [vmem:[%s6 + $0x30] sm:$0xf]
  %v436 = vld [vmem:[%s6 + $0x34] sm:$0xf]
  %v437 = vld [vmem:[%s6 + $0x38] sm:$0xf]
  %v438 = vld [vmem:[%s6 + $0x3c] sm:$0xf]
  %v439 = vld [vmem:[%s7] sm:$0x1]
  %v441 = vperm.slane %v439, 0
  %v459 = vunpack.c.l.b16 %v423
  %v460 = vunpack.c.l.b16 %v424
  %v461 = vunpack.c.l.b16 %v425
  %v462 = vunpack.c.l.b16 %v426
  %v463 = vunpack.c.l.b16 %v427
  %v464 = vunpack.c.l.b16 %v428
  %v465 = vunpack.c.l.b16 %v429
  %v466 = vunpack.c.l.b16 %v430
  %v467 = vunpack.c.l.b16 %v431
  %v468 = vunpack.c.l.b16 %v432
  %v469 = vunpack.c.l.b16 %v433
  %v470 = vunpack.c.l.b16 %v434
  %v471 = vunpack.c.l.b16 %v435
  %v472 = vunpack.c.l.b16 %v436
  %v473 = vunpack.c.l.b16 %v437
  %v474 = vunpack.c.l.b16 %v438
  %v475 = vpack.c.b16 %v460, %v459
  %v476 = vpack.c.b16 %v462, %v461
  %v477 = vpack.c.b16 %v464, %v463
  %v478 = vpack.c.b16 %v466, %v465
  %v479 = vpack.c.b16 %v468, %v467
  %v480 = vpack.c.b16 %v470, %v469
  %v481 = vpack.c.b16 %v472, %v471
  %v482 = vpack.c.b16 %v474, %v473
  %491 = vmatpush.bf16.msra.mxu0 %v482
  %492 = vmatpush.bf16.msra.mxu0 %v481
  %493 = vmatpush.bf16.msra.mxu0 %v480
  %494 = vmatpush.bf16.msra.mxu0 %v479
  %495 = vmatpush.bf16.msra.mxu0 %v478
  %496 = vmatpush.bf16.msra.mxu0 %v477
  %497 = vmatpush.bf16.msra.mxu0 %v476
  %498 = vmatpush.bf16.msra.mxu0 %v475
  %499 = vmatmul.bf16.gmra.mxu0 %v422
  %v500 = vpop.f32.mrf.mxu0
  %v501 = vadd.f32 %v441, %v500
  %v502 = vpop.f32.mrf.mxu0
  %503 = vdwg.mxu0
  %vm504 = vcmask 254976
  %505 = vst.msk [vmem:[%s12] sm:$0x3] %vm504, %v501
  %v506 = vld [vmem:[%s1] sm:$0x3]
  %v507 = vmul.f32 %v501, 0.5
  %v508 = vmul.f32 %v507, 1.442695
  %v509 = vpow.pop %v508
  %511 = vrot.lane.b32.xlu0 %v509, 112
  %v512 = vpop.permute.xlu0 %511
  %v514 = vmul.f32 %v506, %v512
  %v515 = vadd.f32 %v501, %v514
  %v516 = vpack.c.bf16 %v515, %v515
  %v517 = vld [vmem:[%s8] sm:$0xf]
  %v518 = vld [vmem:[%s8 + $0x4] sm:$0xf]
  %v519 = vld [vmem:[%s9] sm:$0x1]
  %v521 = vperm.slane %v519, 0
  %v525 = vunpack.c.l.b16 %v517
  %v526 = vunpack.c.l.b16 %v518
  %v527 = vpack.c.b16 %v526, %v525
  %vm529 = vcmask 130048
  %v531 = vsel %vm529, %v516, 0
  %533 = vmatpush.bf16.msra.mxu0 0
  %534 = vmatpush.bf16.msra.mxu0 0
  %535 = vmatpush.bf16.msra.mxu0 0
  %536 = vmatpush.bf16.msra.mxu0 0
  %537 = vmatpush.bf16.msra.mxu0 0
  %538 = vmatpush.bf16.msra.mxu0 0
  %539 = vmatpush.bf16.msra.mxu0 0
  %540 = vmatpush.bf16.msra.mxu0 %v527
  %541 = vmatmul.bf16.gmra.mxu0 %v531
  %v542 = vpop.f32.mrf.mxu0
  %v543 = vadd.f32 %v521, %v542
  %v544 = vpop.f32.mrf.mxu0
  %545 = vdwg.mxu0
  %v546 = vpack.c.bf16 %v543, %v543
  %v547 = vld [vmem:[%s10] sm:$0xff]
  %v548 = vld [vmem:[%s10 + $0x8] sm:$0xff]
  %v549 = vld [vmem:[%s10 + $0x10] sm:$0xff]
  %v550 = vld [vmem:[%s10 + $0x18] sm:$0xff]
  %v551 = vld [vmem:[%s10 + $0x20] sm:$0xff]
  %v552 = vld [vmem:[%s10 + $0x28] sm:$0xff]
  %v553 = vld [vmem:[%s10 + $0x30] sm:$0xff]
  %v554 = vld [vmem:[%s10 + $0x38] sm:$0xff]
  %v555 = vld [vmem:[%s10 + $0x40] sm:$0xff]
  %v556 = vld [vmem:[%s10 + $0x48] sm:$0xff]
  %v557 = vld [vmem:[%s10 + $0x50] sm:$0xff]
  %v558 = vld [vmem:[%s10 + $0x58] sm:$0xff]
  %v559 = vld [vmem:[%s10 + $0x60] sm:$0xff]
  %v560 = vld [vmem:[%s10 + $0x68] sm:$0xff]
  %v561 = vld [vmem:[%s10 + $0x70] sm:$0xff]
  %v562 = vld [vmem:[%s10 + $0x78] sm:$0xff]
  %v563 = vld [vmem:[%s10 + $0x80] sm:$0xff]
  %v564 = vld [vmem:[%s10 + $0x88] sm:$0xff]
  %v565 = vld [vmem:[%s10 + $0x90] sm:$0xff]
  %v566 = vld [vmem:[%s10 + $0x98] sm:$0xff]
  %v567 = vld [vmem:[%s10 + $0xa0] sm:$0xff]
  %v568 = vld [vmem:[%s10 + $0xa8] sm:$0xff]
  %v569 = vld [vmem:[%s10 + $0xb0] sm:$0xff]
  %v570 = vld [vmem:[%s10 + $0xb8] sm:$0xff]
  %v571 = vld [vmem:[%s10 + $0xc0] sm:$0xff]
  %v572 = vld [vmem:[%s10 + $0xc8] sm:$0xff]
  %v573 = vld [vmem:[%s10 + $0xd0] sm:$0xff]
  %v574 = vld [vmem:[%s10 + $0xd8] sm:$0xff]
  %v575 = vld [vmem:[%s10 + $0xe0] sm:$0xff]
  %v576 = vld [vmem:[%s10 + $0xe8] sm:$0xff]
  %v577 = vld [vmem:[%s10 + $0xf0] sm:$0xff]
  %v578 = vld [vmem:[%s10 + $0xf8] sm:$0xff]
  %v579 = vld [vmem:[%s11] sm:$0xff]
  %v581 = vperm.slane %v579, 0
  %v582 = vperm.slane %v579, 1
  %v583 = vperm.slane %v579, 2
  %v584 = vperm.slane %v579, 3
  %v585 = vperm.slane %v579, 4
  %v586 = vperm.slane %v579, 5
  %v587 = vperm.slane %v579, 6
  %v588 = vperm.slane %v579, 7
  %v629 = vunpack.c.l.b16 %v547
  %v630 = vunpack.c.h.b16 %v547
  %v631 = vunpack.c.l.b16 %v548
  %v632 = vunpack.c.h.b16 %v548
  %v633 = vunpack.c.l.b16 %v549
  %v634 = vunpack.c.h.b16 %v549
  %v635 = vunpack.c.l.b16 %v550
  %v636 = vunpack.c.h.b16 %v550
  %v637 = vunpack.c.l.b16 %v551
  %v638 = vunpack.c.h.b16 %v551
  %v639 = vunpack.c.l.b16 %v552
  %v640 = vunpack.c.h.b16 %v552
  %v641 = vunpack.c.l.b16 %v553
  %v642 = vunpack.c.h.b16 %v553
  %v643 = vunpack.c.l.b16 %v554
  %v644 = vunpack.c.h.b16 %v554
  %v645 = vunpack.c.l.b16 %v555
  %v646 = vunpack.c.h.b16 %v555
  %v647 = vunpack.c.l.b16 %v556
  %v648 = vunpack.c.h.b16 %v556
  %v649 = vunpack.c.l.b16 %v557
  %v650 = vunpack.c.h.b16 %v557
  %v651 = vunpack.c.l.b16 %v558
  %v652 = vunpack.c.h.b16 %v558
  %v653 = vunpack.c.l.b16 %v559
  %v654 = vunpack.c.h.b16 %v559
  %v655 = vunpack.c.l.b16 %v560
  %v656 = vunpack.c.h.b16 %v560
  %v657 = vunpack.c.l.b16 %v561
  %v658 = vunpack.c.h.b16 %v561
  %v659 = vunpack.c.l.b16 %v562
  %v660 = vunpack.c.h.b16 %v562
  %v661 = vunpack.c.l.b16 %v563
  %v662 = vunpack.c.h.b16 %v563
  %v663 = vunpack.c.l.b16 %v564
  %v664 = vunpack.c.h.b16 %v564
  %v665 = vunpack.c.l.b16 %v565
  %v666 = vunpack.c.h.b16 %v565
  %v667 = vunpack.c.l.b16 %v566
  %v668 = vunpack.c.h.b16 %v566
  %v669 = vunpack.c.l.b16 %v567
  %v670 = vunpack.c.h.b16 %v567
  %v671 = vunpack.c.l.b16 %v568
  %v672 = vunpack.c.h.b16 %v568
  %v673 = vunpack.c.l.b16 %v569
  %v674 = vunpack.c.h.b16 %v569
  %v675 = vunpack.c.l.b16 %v570
  %v676 = vunpack.c.h.b16 %v570
  %v677 = vunpack.c.l.b16 %v571
  %v678 = vunpack.c.h.b16 %v571
  %v679 = vunpack.c.l.b16 %v572
  %v680 = vunpack.c.h.b16 %v572
  %v681 = vunpack.c.l.b16 %v573
  %v682 = vunpack.c.h.b16 %v573
  %v683 = vunpack.c.l.b16 %v574
  %v684 = vunpack.c.h.b16 %v574
  %v685 = vunpack.c.l.b16 %v575
  %v686 = vunpack.c.h.b16 %v575
  %v687 = vunpack.c.l.b16 %v576
  %v688 = vunpack.c.h.b16 %v576
  %v689 = vunpack.c.l.b16 %v577
  %v690 = vunpack.c.h.b16 %v577
  %v691 = vunpack.c.l.b16 %v578
  %v692 = vunpack.c.h.b16 %v578
  %v693 = vpack.c.b16 %v637, %v629
  %v694 = vpack.c.b16 %v638, %v630
  %v695 = vpack.c.b16 %v639, %v631
  %v696 = vpack.c.b16 %v640, %v632
  %v697 = vpack.c.b16 %v641, %v633
  %v698 = vpack.c.b16 %v642, %v634
  %v699 = vpack.c.b16 %v643, %v635
  %v700 = vpack.c.b16 %v644, %v636
  %v701 = vpack.c.b16 %v653, %v645
  %v702 = vpack.c.b16 %v654, %v646
  %v703 = vpack.c.b16 %v655, %v647
  %v704 = vpack.c.b16 %v656, %v648
  %v705 = vpack.c.b16 %v657, %v649
  %v706 = vpack.c.b16 %v658, %v650
  %v707 = vpack.c.b16 %v659, %v651
  %v708 = vpack.c.b16 %v660, %v652
  %v709 = vpack.c.b16 %v669, %v661
  %v710 = vpack.c.b16 %v670, %v662
  %v711 = vpack.c.b16 %v671, %v663
  %v712 = vpack.c.b16 %v672, %v664
  %v713 = vpack.c.b16 %v673, %v665
  %v714 = vpack.c.b16 %v674, %v666
  %v715 = vpack.c.b16 %v675, %v667
  %v716 = vpack.c.b16 %v676, %v668
  %v717 = vpack.c.b16 %v685, %v677
  %v718 = vpack.c.b16 %v686, %v678
  %v719 = vpack.c.b16 %v687, %v679
  %v720 = vpack.c.b16 %v688, %v680
  %v721 = vpack.c.b16 %v689, %v681
  %v722 = vpack.c.b16 %v690, %v682
  %v723 = vpack.c.b16 %v691, %v683
  %v724 = vpack.c.b16 %v692, %v684
  %v758 = vsel %vm405, %v546, 0
  %760 = vmatpush.bf16.msra.mxu0 0
  %761 = vmatpush.bf16.msra.mxu0 0
  %762 = vmatpush.bf16.msra.mxu0 0
  %763 = vmatpush.bf16.msra.mxu0 0
  %764 = vmatpush.bf16.msra.mxu0 %v717
  %765 = vmatpush.bf16.msra.mxu0 %v709
  %766 = vmatpush.bf16.msra.mxu0 %v701
  %767 = vmatpush.bf16.msra.mxu0 %v693
  %768 = vmatmul.bf16.gmra.mxu0 %v758
  %v769 = vpop.f32.mrf.mxu0
  %v770 = vadd.f32 %v581, %v769
  %v771 = vpop.f32.mrf.mxu0
  %772 = vdwg.mxu0
  %773 = vmatpush.bf16.msra.mxu0 0
  %774 = vmatpush.bf16.msra.mxu0 0
  %775 = vmatpush.bf16.msra.mxu0 0
  %776 = vmatpush.bf16.msra.mxu0 0
  %777 = vmatpush.bf16.msra.mxu0 %v718
  %778 = vmatpush.bf16.msra.mxu0 %v710
  %779 = vmatpush.bf16.msra.mxu0 %v702
  %780 = vmatpush.bf16.msra.mxu0 %v694
  %781 = vmatmul.bf16.gmra.mxu0 %v758
  %v782 = vpop.f32.mrf.mxu0
  %v783 = vadd.f32 %v582, %v782
  %v784 = vpop.f32.mrf.mxu0
  %785 = vdwg.mxu0
  %786 = vmatpush.bf16.msra.mxu0 0
  %787 = vmatpush.bf16.msra.mxu0 0
  %788 = vmatpush.bf16.msra.mxu0 0
  %789 = vmatpush.bf16.msra.mxu0 0
  %790 = vmatpush.bf16.msra.mxu0 %v719
  %791 = vmatpush.bf16.msra.mxu0 %v711
  %792 = vmatpush.bf16.msra.mxu0 %v703
  %793 = vmatpush.bf16.msra.mxu0 %v695
  %794 = vmatmul.bf16.gmra.mxu0 %v758
  %v795 = vpop.f32.mrf.mxu0
  %v796 = vadd.f32 %v583, %v795
  %v797 = vpop.f32.mrf.mxu0
  %798 = vdwg.mxu0
  %799 = vmatpush.bf16.msra.mxu0 0
  %800 = vmatpush.bf16.msra.mxu0 0
  %801 = vmatpush.bf16.msra.mxu0 0
  %802 = vmatpush.bf16.msra.mxu0 0
  %803 = vmatpush.bf16.msra.mxu0 %v720
  %804 = vmatpush.bf16.msra.mxu0 %v712
  %805 = vmatpush.bf16.msra.mxu0 %v704
  %806 = vmatpush.bf16.msra.mxu0 %v696
  %807 = vmatmul.bf16.gmra.mxu0 %v758
  %v808 = vpop.f32.mrf.mxu0
  %v809 = vadd.f32 %v584, %v808
  %v810 = vpop.f32.mrf.mxu0
  %811 = vdwg.mxu0
  %812 = vmatpush.bf16.msra.mxu0 0
  %813 = vmatpush.bf16.msra.mxu0 0
  %814 = vmatpush.bf16.msra.mxu0 0
  %815 = vmatpush.bf16.msra.mxu0 0
  %816 = vmatpush.bf16.msra.mxu0 %v721
  %817 = vmatpush.bf16.msra.mxu0 %v713
  %818 = vmatpush.bf16.msra.mxu0 %v705
  %819 = vmatpush.bf16.msra.mxu0 %v697
  %820 = vmatmul.bf16.gmra.mxu0 %v758
  %v821 = vpop.f32.mrf.mxu0
  %v822 = vadd.f32 %v585, %v821
  %v823 = vpop.f32.mrf.mxu0
  %824 = vdwg.mxu0
  %825 = vmatpush.bf16.msra.mxu0 0
  %826 = vmatpush.bf16.msra.mxu0 0
  %827 = vmatpush.bf16.msra.mxu0 0
  %828 = vmatpush.bf16.msra.mxu0 0
  %829 = vmatpush.bf16.msra.mxu0 %v722
  %830 = vmatpush.bf16.msra.mxu0 %v714
  %831 = vmatpush.bf16.msra.mxu0 %v706
  %832 = vmatpush.bf16.msra.mxu0 %v698
  %833 = vmatmul.bf16.gmra.mxu0 %v758
  %v834 = vpop.f32.mrf.mxu0
  %v835 = vadd.f32 %v586, %v834
  %v836 = vpop.f32.mrf.mxu0
  %837 = vdwg.mxu0
  %838 = vmatpush.bf16.msra.mxu0 0
  %839 = vmatpush.bf16.msra.mxu0 0
  %840 = vmatpush.bf16.msra.mxu0 0
  %841 = vmatpush.bf16.msra.mxu0 0
  %842 = vmatpush.bf16.msra.mxu0 %v723
  %843 = vmatpush.bf16.msra.mxu0 %v715
  %844 = vmatpush.bf16.msra.mxu0 %v707
  %845 = vmatpush.bf16.msra.mxu0 %v699
  %846 = vmatmul.bf16.gmra.mxu0 %v758
  %v847 = vpop.f32.mrf.mxu0
  %v848 = vadd.f32 %v587, %v847
  %v849 = vpop.f32.mrf.mxu0
  %850 = vdwg.mxu0
  %851 = vmatpush.bf16.msra.mxu0 0
  %852 = vmatpush.bf16.msra.mxu0 0
  %853 = vmatpush.bf16.msra.mxu0 0
  %854 = vmatpush.bf16.msra.mxu0 0
  %855 = vmatpush.bf16.msra.mxu0 %v724
  %856 = vmatpush.bf16.msra.mxu0 %v716
  %857 = vmatpush.bf16.msra.mxu0 %v708
  %858 = vmatpush.bf16.msra.mxu0 %v700
  %859 = vmatmul.bf16.gmra.mxu0 %v758
  %v860 = vpop.f32.mrf.mxu0
  %v861 = vadd.f32 %v588, %v860
  %v862 = vpop.f32.mrf.mxu0
  %863 = vdwg.mxu0
  %v864 = vmax.f32 %v770, 0.0
  %v865 = vmax.f32 %v783, 0.0
  %v866 = vmax.f32 %v796, 0.0
  %v867 = vmax.f32 %v809, 0.0
  %v868 = vmax.f32 %v822, 0.0
  %v869 = vmax.f32 %v835, 0.0
  %v870 = vmax.f32 %v848, 0.0
  %v871 = vmax.f32 %v861, 0.0
  %v872 = vpack.c.bf16 %v865, %v864
  %v873 = vpack.c.bf16 %v867, %v866
  %v874 = vpack.c.bf16 %v869, %v868
  %v875 = vpack.c.bf16 %v871, %v870
  %v880 = vrot.slane %v872, 3
  %v881 = vrot.slane %v873, 6
  %v882 = vrot.slane %v873, 1
  %v883 = vrot.slane %v874, 4
  %v884 = vrot.slane %v874, 7
  %v885 = vrot.slane %v875, 2
  %v886 = vrot.slane %v875, 5
  %vm887 = vcmask 1040384
  %v890 = vsel %vm887, %v872, %v880
  %vm891 = vcmask 1042434
  %v894 = vsel %vm891, %v881, %v882
  %vm895 = vcmask 1041408
  %v896 = vsel %vm895, %v890, %v894
  %vm897 = vcmask 1044484
  %v900 = vsel %vm897, %v883, %v884
  %vm901 = vcmask 1046534
  %v904 = vsel %vm901, %v885, %v886
  %vm905 = vcmask 1045508
  %v906 = vsel %vm905, %v900, %v904
  %vm907 = vcmask 1043456
  %v908 = vsel %vm907, %v896, %v906
  %910 = vst [vmem:[%s13] sm:$0xff] %v908
  // Predicated region
  $region50: #{conv_vae_forward.10} parent=0 // pred_check
    _
  $region51: #{conv_vae_forward.10} parent=0 // pred_check_branch
    %912 = sbr.rel (0) target = $region53
  $region52: #{conv_vae_forward.10} parent=0 // pred_region
    _
  $region53: #{conv_vae_forward.10} parent=0 // pred_fallthru
    _
  // Predicated region
  $region54: #{conv_vae_forward.10} parent=0 // pred_check
    _
  $region55: #{conv_vae_forward.10} parent=0 // pred_check_branch
    %914 = sbr.rel (0) target = $region57
  $region56: #{conv_vae_forward.10} parent=0 // pred_region
    _
  $region57: #{conv_vae_forward.10} parent=0 // pred_fallthru
    _
  // Predicated region
  $region58: #{conv_vae_forward.10} parent=0 // pred_check
    _
  $region59: #{conv_vae_forward.10} parent=0 // pred_check_branch
    %916 = sbr.rel (0) target = $region61
  $region60: #{conv_vae_forward.10} parent=0 // pred_region
    _
  $region61: #{conv_vae_forward.10} parent=0 // pred_fallthru
    _
  // Predicated region
  $region62: #{conv_vae_forward.10} parent=0 // pred_check
    _
  $region63: #{conv_vae_forward.10} parent=0 // pred_check_branch
    %918 = sbr.rel (0) target = $region65
  $region64: #{conv_vae_forward.10} parent=0 // pred_region
    _
  $region65: #{conv_vae_forward.10} parent=0 // pred_fallthru
    _

// kernel: conv_vae_forward.11
$region0: #{conv_vae_forward.11}
  #allocation0 [shape = 'u32[]', space=smem, size = 0x4, offset = 0x4, fixed_abs, tag = 'smem constant byte address 0x4 - core index']
  #allocation1 [shape = 'u32[72,128]{1,0:T(1,128)}', space=vmem, size = 0x9000, scoped, tag = 'internal scratch']
  %s0 = inlined_call_operand.vmem [shape: bf16[32,576], index: 0, kind: input, shape index: {}]
  %s1 = inlined_call_operand.vmem [shape: bf16[576,128], index: 1, kind: input, shape index: {}]
  %s2 = inlined_call_operand.vmem [shape: f32[1,128], index: 2, kind: input, shape index: {}]
  %s3 = inlined_call_operand.vmem [shape: bf16[32,128], index: 3, kind: output, shape index: {}]
  %s4 = sld [smem:[#allocation0]]
  $region22: #{conv_vae_forward.11} parent=0
    _
  %s6 = ssub.s32 1, %s4
  %s7 = scalar_select 0, %s6, %s4
  // Predicated region
  $region2: #{conv_vae_forward.11} parent=0 // pred_check
    _
  $region3: #{conv_vae_forward.11} parent=0 // pred_check_branch
    %9 = sbr.rel (0) target = $region5
  $region4: #{conv_vae_forward.11} parent=0 // pred_region
    _
  $region5: #{conv_vae_forward.11} parent=0 // pred_fallthru
    _
  // Predicated region
  $region6: #{conv_vae_forward.11} parent=0 // pred_check
    _
  $region7: #{conv_vae_forward.11} parent=0 // pred_check_branch
    %11 = sbr.rel (0) target = $region9
  $region8: #{conv_vae_forward.11} parent=0 // pred_region
    _
  $region9: #{conv_vae_forward.11} parent=0 // pred_fallthru
    _
  // Predicated region
  $region10: #{conv_vae_forward.11} parent=0 // pred_check
    _
  $region11: #{conv_vae_forward.11} parent=0 // pred_check_branch
    %13 = sbr.rel (0) target = $region13
  $region12: #{conv_vae_forward.11} parent=0 // pred_region
    _
  $region13: #{conv_vae_forward.11} parent=0 // pred_fallthru
    _
  %v15 = vld [vmem:[%s0] sm:$0xff]
  %v16 = vld [vmem:[%s0 + $0x8] sm:$0xff]
  %v17 = vld [vmem:[%s0 + $0x10] sm:$0xf]
  %v18 = vld [vmem:[%s0 + $0x14] sm:$0xff]
  %v19 = vld [vmem:[%s0 + $0x1c] sm:$0xff]
  %v20 = vld [vmem:[%s0 + $0x24] sm:$0xf]
  %v21 = vld [vmem:[%s0 + $0x28] sm:$0xff]
  %v22 = vld [vmem:[%s0 + $0x30] sm:$0xff]
  %v23 = vld [vmem:[%s0 + $0x38] sm:$0xf]
  %v24 = vld [vmem:[%s0 + $0x3c] sm:$0xff]
  %v25 = vld [vmem:[%s0 + $0x44] sm:$0xff]
  %v26 = vld [vmem:[%s0 + $0x4c] sm:$0xf]
  %v27 = vld [vmem:[%s1] sm:$0xf]
  %v28 = vld [vmem:[%s1 + $0x4] sm:$0xf]
  %v29 = vld [vmem:[%s1 + $0x8] sm:$0xf]
  %v30 = vld [vmem:[%s1 + $0xc] sm:$0xf]
  %v31 = vld [vmem:[%s1 + $0x10] sm:$0xf]
  %v32 = vld [vmem:[%s1 + $0x14] sm:$0xf]
  %v33 = vld [vmem:[%s1 + $0x18] sm:$0xf]
  %v34 = vld [vmem:[%s1 + $0x1c] sm:$0xf]
  %v35 = vld [vmem:[%s1 + $0x20] sm:$0xf]
  %v36 = vld [vmem:[%s1 + $0x24] sm:$0xf]
  %v37 = vld [vmem:[%s1 + $0x28] sm:$0xf]
  %v38 = vld [vmem:[%s1 + $0x2c] sm:$0xf]
  %v39 = vld [vmem:[%s1 + $0x30] sm:$0xf]
  %v40 = vld [vmem:[%s1 + $0x34] sm:$0xf]
  %v41 = vld [vmem:[%s1 + $0x38] sm:$0xf]
  %v42 = vld [vmem:[%s1 + $0x3c] sm:$0xf]
  %v43 = vld [vmem:[%s1 + $0x40] sm:$0xf]
  %v44 = vld [vmem:[%s1 + $0x44] sm:$0xf]
  %v45 = vld [vmem:[%s1 + $0x48] sm:$0xf]
  %v46 = vld [vmem:[%s1 + $0x4c] sm:$0xf]
  %v47 = vld [vmem:[%s1 + $0x50] sm:$0xf]
  %v48 = vld [vmem:[%s1 + $0x54] sm:$0xf]
  %v49 = vld [vmem:[%s1 + $0x58] sm:$0xf]
  %v50 = vld [vmem:[%s1 + $0x5c] sm:$0xf]
  %v51 = vld [vmem:[%s1 + $0x60] sm:$0xf]
  %v52 = vld [vmem:[%s1 + $0x64] sm:$0xf]
  %v53 = vld [vmem:[%s1 + $0x68] sm:$0xf]
  %v54 = vld [vmem:[%s1 + $0x6c] sm:$0xf]
  %v55 = vld [vmem:[%s1 + $0x70] sm:$0xf]
  %v56 = vld [vmem:[%s1 + $0x74] sm:$0xf]
  %v57 = vld [vmem:[%s1 + $0x78] sm:$0xf]
  %v58 = vld [vmem:[%s1 + $0x7c] sm:$0xf]
  %v59 = vld [vmem:[%s1 + $0x80] sm:$0xf]
  %v60 = vld [vmem:[%s1 + $0x84] sm:$0xf]
  %v61 = vld [vmem:[%s1 + $0x88] sm:$0xf]
  %v62 = vld [vmem:[%s1 + $0x8c] sm:$0xf]
  %v63 = vld [vmem:[%s1 + $0x90] sm:$0xf]
  %v64 = vld [vmem:[%s1 + $0x94] sm:$0xf]
  %v65 = vld [vmem:[%s1 + $0x98] sm:$0xf]
  %v66 = vld [vmem:[%s1 + $0x9c] sm:$0xf]
  %v67 = vld [vmem:[%s1 + $0xa0] sm:$0xf]
  %v68 = vld [vmem:[%s1 + $0xa4] sm:$0xf]
  %v69 = vld [vmem:[%s1 + $0xa8] sm:$0xf]
  %v70 = vld [vmem:[%s1 + $0xac] sm:$0xf]
  %v71 = vld [vmem:[%s1 + $0xb0] sm:$0xf]
  %v72 = vld [vmem:[%s1 + $0xb4] sm:$0xf]
  %v73 = vld [vmem:[%s1 + $0xb8] sm:$0xf]
  %v74 = vld [vmem:[%s1 + $0xbc] sm:$0xf]
  %v75 = vld [vmem:[%s1 + $0xc0] sm:$0xf]
  %v76 = vld [vmem:[%s1 + $0xc4] sm:$0xf]
  %v77 = vld [vmem:[%s1 + $0xc8] sm:$0xf]
  %v78 = vld [vmem:[%s1 + $0xcc] sm:$0xf]
  %v79 = vld [vmem:[%s1 + $0xd0] sm:$0xf]
  %v80 = vld [vmem:[%s1 + $0xd4] sm:$0xf]
  %v81 = vld [vmem:[%s1 + $0xd8] sm:$0xf]
  %v82 = vld [vmem:[%s1 + $0xdc] sm:$0xf]
  %v83 = vld [vmem:[%s1 + $0xe0] sm:$0xf]
  %v84 = vld [vmem:[%s1 + $0xe4] sm:$0xf]
  %v85 = vld [vmem:[%s1 + $0xe8] sm:$0xf]
  %v86 = vld [vmem:[%s1 + $0xec] sm:$0xf]
  %v87 = vld [vmem:[%s1 + $0xf0] sm:$0xf]
  %v88 = vld [vmem:[%s1 + $0xf4] sm:$0xf]
  %v89 = vld [vmem:[%s1 + $0xf8] sm:$0xf]
  %v90 = vld [vmem:[%s1 + $0xfc] sm:$0xf]
  %v91 = vld [vmem:[%s1 + $0x100] sm:$0xf]
  %v92 = vld [vmem:[%s1 + $0x104] sm:$0xf]
  %v93 = vld [vmem:[%s1 + $0x108] sm:$0xf]
  %v94 = vld [vmem:[%s1 + $0x10c] sm:$0xf]
  %v95 = vld [vmem:[%s1 + $0x110] sm:$0xf]
  %v96 = vld [vmem:[%s1 + $0x114] sm:$0xf]
  %v97 = vld [vmem:[%s1 + $0x118] sm:$0xf]
  %v98 = vld [vmem:[%s1 + $0x11c] sm:$0xf]
  %v99 = vld [vmem:[%s2] sm:$0x1]
  %v101 = vperm.slane %v99, 0
  %v115 = vunpack.c.l.b16 %v15
  %v116 = vunpack.c.h.b16 %v15
  %v117 = vunpack.c.l.b16 %v16
  %v118 = vunpack.c.h.b16 %v16
  %v119 = vunpack.c.l.b16 %v17
  %v120 = vunpack.c.l.b16 %v18
  %v121 = vunpack.c.h.b16 %v18
  %v122 = vunpack.c.l.b16 %v19
  %v123 = vunpack.c.h.b16 %v19
  %v124 = vunpack.c.l.b16 %v20
  %v125 = vunpack.c.l.b16 %v21
  %v126 = vunpack.c.h.b16 %v21
  %v127 = vunpack.c.l.b16 %v22
  %v128 = vunpack.c.h.b16 %v22
  %v129 = vunpack.c.l.b16 %v23
  %v130 = vunpack.c.l.b16 %v24
  %v131 = vunpack.c.h.b16 %v24
  %v132 = vunpack.c.l.b16 %v25
  %v133 = vunpack.c.h.b16 %v25
  %v134 = vunpack.c.l.b16 %v26
  %v135 = vpack.c.b16 %v120, %v115
  %v136 = vpack.c.b16 %v121, %v116
  %v137 = vpack.c.b16 %v122, %v117
  %v138 = vpack.c.b16 %v123, %v118
  %v139 = vpack.c.b16 %v124, %v119
  %v140 = vpack.c.b16 %v130, %v125
  %v141 = vpack.c.b16 %v131, %v126
  %v142 = vpack.c.b16 %v132, %v127
  %v143 = vpack.c.b16 %v133, %v128
  %v144 = vpack.c.b16 %v134, %v129
  %v225 = vunpack.c.l.b16 %v27
  %v226 = vunpack.c.l.b16 %v28
  %v227 = vunpack.c.l.b16 %v29
  %v228 = vunpack.c.l.b16 %v30
  %v229 = vunpack.c.l.b16 %v31
  %v230 = vunpack.c.l.b16 %v32
  %v231 = vunpack.c.l.b16 %v33
  %v232 = vunpack.c.l.b16 %v34
  %v233 = vunpack.c.l.b16 %v35
  %v234 = vunpack.c.l.b16 %v36
  %v235 = vunpack.c.l.b16 %v37
  %v236 = vunpack.c.l.b16 %v38
  %v237 = vunpack.c.l.b16 %v39
  %v238 = vunpack.c.l.b16 %v40
  %v239 = vunpack.c.l.b16 %v41
  %v240 = vunpack.c.l.b16 %v42
  %v241 = vunpack.c.l.b16 %v43
  %v242 = vunpack.c.l.b16 %v44
  %v243 = vunpack.c.l.b16 %v45
  %v244 = vunpack.c.l.b16 %v46
  %v245 = vunpack.c.l.b16 %v47
  %v246 = vunpack.c.l.b16 %v48
  %v247 = vunpack.c.l.b16 %v49
  %v248 = vunpack.c.l.b16 %v50
  %v249 = vunpack.c.l.b16 %v51
  %v250 = vunpack.c.l.b16 %v52
  %v251 = vunpack.c.l.b16 %v53
  %v252 = vunpack.c.l.b16 %v54
  %v253 = vunpack.c.l.b16 %v55
  %v254 = vunpack.c.l.b16 %v56
  %v255 = vunpack.c.l.b16 %v57
  %v256 = vunpack.c.l.b16 %v58
  %v257 = vunpack.c.l.b16 %v59
  %v258 = vunpack.c.l.b16 %v60
  %v259 = vunpack.c.l.b16 %v61
  %v260 = vunpack.c.l.b16 %v62
  %v261 = vunpack.c.l.b16 %v63
  %v262 = vunpack.c.l.b16 %v64
  %v263 = vunpack.c.l.b16 %v65
  %v264 = vunpack.c.l.b16 %v66
  %v265 = vunpack.c.l.b16 %v67
  %v266 = vunpack.c.l.b16 %v68
  %v267 = vunpack.c.l.b16 %v69
  %v268 = vunpack.c.l.b16 %v70
  %v269 = vunpack.c.l.b16 %v71
  %v270 = vunpack.c.l.b16 %v72
  %v271 = vunpack.c.l.b16 %v73
  %v272 = vunpack.c.l.b16 %v74
  %v273 = vunpack.c.l.b16 %v75
  %v274 = vunpack.c.l.b16 %v76
  %v275 = vunpack.c.l.b16 %v77
  %v276 = vunpack.c.l.b16 %v78
  %v277 = vunpack.c.l.b16 %v79
  %v278 = vunpack.c.l.b16 %v80
  %v279 = vunpack.c.l.b16 %v81
  %v280 = vunpack.c.l.b16 %v82
  %v281 = vunpack.c.l.b16 %v83
  %v282 = vunpack.c.l.b16 %v84
  %v283 = vunpack.c.l.b16 %v85
  %v284 = vunpack.c.l.b16 %v86
  %v285 = vunpack.c.l.b16 %v87
  %v286 = vunpack.c.l.b16 %v88
  %v287 = vunpack.c.l.b16 %v89
  %v288 = vunpack.c.l.b16 %v90
  %v289 = vunpack.c.l.b16 %v91
  %v290 = vunpack.c.l.b16 %v92
  %v291 = vunpack.c.l.b16 %v93
  %v292 = vunpack.c.l.b16 %v94
  %v293 = vunpack.c.l.b16 %v95
  %v294 = vunpack.c.l.b16 %v96
  %v295 = vunpack.c.l.b16 %v97
  %v296 = vunpack.c.l.b16 %v98
  %v297 = vpack.c.b16 %v226, %v225
  %v298 = vpack.c.b16 %v228, %v227
  %v299 = vpack.c.b16 %v230, %v229
  %v300 = vpack.c.b16 %v232, %v231
  %v301 = vpack.c.b16 %v234, %v233
  %v302 = vpack.c.b16 %v236, %v235
  %v303 = vpack.c.b16 %v238, %v237
  %v304 = vpack.c.b16 %v240, %v239
  %v305 = vpack.c.b16 %v242, %v241
  %v306 = vpack.c.b16 %v244, %v243
  %v307 = vpack.c.b16 %v246, %v245
  %v308 = vpack.c.b16 %v248, %v247
  %v309 = vpack.c.b16 %v250, %v249
  %v310 = vpack.c.b16 %v252, %v251
  %v311 = vpack.c.b16 %v254, %v253
  %v312 = vpack.c.b16 %v256, %v255
  %v313 = vpack.c.b16 %v258, %v257
  %v314 = vpack.c.b16 %v260, %v259
  %v315 = vpack.c.b16 %v262, %v261
  %v316 = vpack.c.b16 %v264, %v263
  %v317 = vpack.c.b16 %v266, %v265
  %v318 = vpack.c.b16 %v268, %v267
  %v319 = vpack.c.b16 %v270, %v269
  %v320 = vpack.c.b16 %v272, %v271
  %v321 = vpack.c.b16 %v274, %v273
  %v322 = vpack.c.b16 %v276, %v275
  %v323 = vpack.c.b16 %v278, %v277
  %v324 = vpack.c.b16 %v280, %v279
  %v325 = vpack.c.b16 %v282, %v281
  %v326 = vpack.c.b16 %v284, %v283
  %v327 = vpack.c.b16 %v286, %v285
  %v328 = vpack.c.b16 %v288, %v287
  %v329 = vpack.c.b16 %v290, %v289
  %v330 = vpack.c.b16 %v292, %v291
  %v331 = vpack.c.b16 %v294, %v293
  %v332 = vpack.c.b16 %v296, %v295
  %vm369 = vcmask 523264
  %v371 = vsel %vm369, %v139, 0
  %v374 = vsel %vm369, %v144, 0
  %376 = vmatpush.bf16.msra.mxu0 %v304
  %377 = vmatpush.bf16.msra.mxu0 %v303
  %378 = vmatpush.bf16.msra.mxu0 %v302
  %379 = vmatpush.bf16.msra.mxu0 %v301
  %380 = vmatpush.bf16.msra.mxu0 %v300
  %381 = vmatpush.bf16.msra.mxu0 %v299
  %382 = vmatpush.bf16.msra.mxu0 %v298
  %383 = vmatpush.bf16.msra.mxu0 %v297
  %384 = vmatmul.bf16.gmra.mxu0 %v135
  %v385 = vpop.f32.mrf.mxu0
  %v386 = vadd.f32 %v101, %v385
  %v387 = vpop.f32.mrf.mxu0
  %v388 = vadd.f32 %v101, %v387
  %389 = vmatmul.bf16.gmra.mxu0 %v140
  %v390 = vpop.f32.mrf.mxu0
  %v391 = vadd.f32 %v101, %v390
  %v392 = vpop.f32.mrf.mxu0
  %v393 = vadd.f32 %v101, %v392
  %394 = vdwg.mxu0
  %395 = vmatpush.bf16.msra.mxu0 %v312
  %396 = vmatpush.bf16.msra.mxu0 %v311
  %397 = vmatpush.bf16.msra.mxu0 %v310
  %398 = vmatpush.bf16.msra.mxu0 %v309
  %399 = vmatpush.bf16.msra.mxu0 %v308
  %400 = vmatpush.bf16.msra.mxu0 %v307
  %401 = vmatpush.bf16.msra.mxu0 %v306
  %402 = vmatpush.bf16.msra.mxu0 %v305
  %403 = vmatmul.bf16.gmra.mxu0 %v136
  %v404 = vpop.f32.mrf.mxu0
  %v405 = vadd.f32 %v386, %v404
  %v406 = vpop.f32.mrf.mxu0
  %v407 = vadd.f32 %v388, %v406
  %408 = vmatmul.bf16.gmra.mxu0 %v141
  %v409 = vpop.f32.mrf.mxu0
  %v410 = vadd.f32 %v391, %v409
  %v411 = vpop.f32.mrf.mxu0
  %v412 = vadd.f32 %v393, %v411
  %413 = vdwg.mxu0
  %414 = vmatpush.bf16.msra.mxu0 %v320
  %415 = vmatpush.bf16.msra.mxu0 %v319
  %416 = vmatpush.bf16.msra.mxu0 %v318
  %417 = vmatpush.bf16.msra.mxu0 %v317
  %418 = vmatpush.bf16.msra.mxu0 %v316
  %419 = vmatpush.bf16.msra.mxu0 %v315
  %420 = vmatpush.bf16.msra.mxu0 %v314
  %421 = vmatpush.bf16.msra.mxu0 %v313
  %422 = vmatmul.bf16.gmra.mxu0 %v137
  %v423 = vpop.f32.mrf.mxu0
  %v424 = vadd.f32 %v405, %v423
  %v425 = vpop.f32.mrf.mxu0
  %v426 = vadd.f32 %v407, %v425
  %427 = vmatmul.bf16.gmra.mxu0 %v142
  %v428 = vpop.f32.mrf.mxu0
  %v429 = vadd.f32 %v410, %v428
  %v430 = vpop.f32.mrf.mxu0
  %v431 = vadd.f32 %v412, %v430
  %432 = vdwg.mxu0
  %433 = vmatpush.bf16.msra.mxu0 %v328
  %434 = vmatpush.bf16.msra.mxu0 %v327
  %435 = vmatpush.bf16.msra.mxu0 %v326
  %436 = vmatpush.bf16.msra.mxu0 %v325
  %437 = vmatpush.bf16.msra.mxu0 %v324
  %438 = vmatpush.bf16.msra.mxu0 %v323
  %439 = vmatpush.bf16.msra.mxu0 %v322
  %440 = vmatpush.bf16.msra.mxu0 %v321
  %441 = vmatmul.bf16.gmra.mxu0 %v138
  %v442 = vpop.f32.mrf.mxu0
  %v443 = vadd.f32 %v424, %v442
  %v444 = vpop.f32.mrf.mxu0
  %v445 = vadd.f32 %v426, %v444
  %446 = vmatmul.bf16.gmra.mxu0 %v143
  %v447 = vpop.f32.mrf.mxu0
  %v448 = vadd.f32 %v429, %v447
  %v449 = vpop.f32.mrf.mxu0
  %v450 = vadd.f32 %v431, %v449
  %451 = vdwg.mxu0
  %452 = vmatpush.bf16.msra.mxu0 0
  %453 = vmatpush.bf16.msra.mxu0 0
  %454 = vmatpush.bf16.msra.mxu0 0
  %455 = vmatpush.bf16.msra.mxu0 0
  %456 = vmatpush.bf16.msra.mxu0 %v332
  %457 = vmatpush.bf16.msra.mxu0 %v331
  %458 = vmatpush.bf16.msra.mxu0 %v330
  %459 = vmatpush.bf16.msra.mxu0 %v329
  %460 = vmatmul.bf16.gmra.mxu0 %v371
  %v461 = vpop.f32.mrf.mxu0
  %v462 = vadd.f32 %v443, %v461
  %v463 = vpop.f32.mrf.mxu0
  %v464 = vadd.f32 %v445, %v463
  %465 = vmatmul.bf16.gmra.mxu0 %v374
  %v466 = vpop.f32.mrf.mxu0
  %v467 = vadd.f32 %v448, %v466
  %v468 = vpop.f32.mrf.mxu0
  %v469 = vadd.f32 %v450, %v468
  %470 = vdwg.mxu0
  %v471 = vmax.f32 %v462, 0.0
  %v472 = vmax.f32 %v464, 0.0
  %v473 = vmax.f32 %v467, 0.0
  %v474 = vmax.f32 %v469, 0.0
  %v475 = vpack.c.bf16 %v471, %v471
  %v476 = vpack.c.bf16 %v472, %v472
  %v477 = vpack.c.bf16 %v473, %v473
  %v478 = vpack.c.bf16 %v474, %v474
  %479 = vst [vmem:[%s3] sm:$0xf] %v475
  %480 = vst [vmem:[%s3 + $0x4] sm:$0xf] %v476
  %481 = vst [vmem:[%s3 + $0x8] sm:$0xf] %v477
  %482 = vst [vmem:[%s3 + $0xc] sm:$0xf] %v478
  // Predicated region
  $region14: #{conv_vae_forward.11} parent=0 // pred_check
    _
  $region15: #{conv_vae_forward.11} parent=0 // pred_check_branch
    %484 = sbr.rel (0) target = $region17
  $region16: #{conv_vae_forward.11} parent=0 // pred_region
    _
  $region17: #{conv_vae_forward.11} parent=0 // pred_fallthru
    _
  // Predicated region
  $region18: #{conv_vae_forward.11} parent=0 // pred_check
    _
  $region19: #{conv_vae_forward.11} parent=0 // pred_check_branch
    %486 = sbr.rel (0) target = $region21
  $region20: #{conv_vae_forward.11} parent=0 // pred_region
    _
  $region21: #{conv_vae_forward.11} parent=0 // pred_fallthru
    _

// kernel: conv_vae_forward.12
$region0: #{conv_vae_forward.12}
  #allocation0 [shape = 'u32[]', space=smem, size = 0x4, offset = 0x4, fixed_abs, tag = 'smem constant byte address 0x4 - core index']
  #allocation1 [shape = 'u32[72,128]{1,0:T(1,128)}', space=vmem, size = 0x9000, scoped, tag = 'internal scratch']
  %s0 = inlined_call_operand.vmem [shape: bf16[128,288], index: 0, kind: input, shape index: {}]
  %s1 = inlined_call_operand.vmem [shape: bf16[288,64], index: 1, kind: input, shape index: {}]
  %s2 = inlined_call_operand.vmem [shape: f32[1,64], index: 2, kind: input, shape index: {}]
  %s3 = inlined_call_operand.vmem [shape: bf16[128,64], index: 3, kind: output, shape index: {}]
  %s4 = sld [smem:[#allocation0]]
  $region22: #{conv_vae_forward.12} parent=0
    _
  %s6 = ssub.s32 1, %s4
  %s7 = scalar_select 0, %s6, %s4
  // Predicated region
  $region2: #{conv_vae_forward.12} parent=0 // pred_check
    _
  $region3: #{conv_vae_forward.12} parent=0 // pred_check_branch
    %9 = sbr.rel (0) target = $region5
  $region4: #{conv_vae_forward.12} parent=0 // pred_region
    _
  $region5: #{conv_vae_forward.12} parent=0 // pred_fallthru
    _
  // Predicated region
  $region6: #{conv_vae_forward.12} parent=0 // pred_check
    _
  $region7: #{conv_vae_forward.12} parent=0 // pred_check_branch
    %11 = sbr.rel (0) target = $region9
  $region8: #{conv_vae_forward.12} parent=0 // pred_region
    _
  $region9: #{conv_vae_forward.12} parent=0 // pred_fallthru
    _
  // Predicated region
  $region10: #{conv_vae_forward.12} parent=0 // pred_check
    _
  $region11: #{conv_vae_forward.12} parent=0 // pred_check_branch
    %13 = sbr.rel (0) target = $region13
  $region12: #{conv_vae_forward.12} parent=0 // pred_region
    _
  $region13: #{conv_vae_forward.12} parent=0 // pred_fallthru
    _
  %v15 = vld [vmem:[%s0] sm:$0xff]
  %v16 = vld [vmem:[%s0 + $0x8] sm:$0xf]
  %v17 = vld [vmem:[%s0 + $0xc] sm:$0xff]
  %v18 = vld [vmem:[%s0 + $0x14] sm:$0xf]
  %v19 = vld [vmem:[%s0 + $0x18] sm:$0xff]
  %v20 = vld [vmem:[%s0 + $0x20] sm:$0xf]
  %v21 = vld [vmem:[%s0 + $0x24] sm:$0xff]
  %v22 = vld [vmem:[%s0 + $0x2c] sm:$0xf]
  %v23 = vld [vmem:[%s0 + $0x30] sm:$0xff]
  %v24 = vld [vmem:[%s0 + $0x38] sm:$0xf]
  %v25 = vld [vmem:[%s0 + $0x3c] sm:$0xff]
  %v26 = vld [vmem:[%s0 + $0x44] sm:$0xf]
  %v27 = vld [vmem:[%s0 + $0x48] sm:$0xff]
  %v28 = vld [vmem:[%s0 + $0x50] sm:$0xf]
  %v29 = vld [vmem:[%s0 + $0x54] sm:$0xff]
  %v30 = vld [vmem:[%s0 + $0x5c] sm:$0xf]
  %v31 = vld [vmem:[%s0 + $0x60] sm:$0xff]
  %v32 = vld [vmem:[%s0 + $0x68] sm:$0xf]
  %v33 = vld [vmem:[%s0 + $0x6c] sm:$0xff]
  %v34 = vld [vmem:[%s0 + $0x74] sm:$0xf]
  %v35 = vld [vmem:[%s0 + $0x78] sm:$0xff]
  %v36 = vld [vmem:[%s0 + $0x80] sm:$0xf]
  %v37 = vld [vmem:[%s0 + $0x84] sm:$0xff]
  %v38 = vld [vmem:[%s0 + $0x8c] sm:$0xf]
  %v39 = vld [vmem:[%s0 + $0x90] sm:$0xff]
  %v40 = vld [vmem:[%s0 + $0x98] sm:$0xf]
  %v41 = vld [vmem:[%s0 + $0x9c] sm:$0xff]
  %v42 = vld [vmem:[%s0 + $0xa4] sm:$0xf]
  %v43 = vld [vmem:[%s0 + $0xa8] sm:$0xff]
  %v44 = vld [vmem:[%s0 + $0xb0] sm:$0xf]
  %v45 = vld [vmem:[%s0 + $0xb4] sm:$0xff]
  %v46 = vld [vmem:[%s0 + $0xbc] sm:$0xf]
  %v47 = vld [vmem:[%s1] sm:$0xf]
  %v48 = vld [vmem:[%s1 + $0x4] sm:$0xf]
  %v49 = vld [vmem:[%s1 + $0x8] sm:$0xf]
  %v50 = vld [vmem:[%s1 + $0xc] sm:$0xf]
  %v51 = vld [vmem:[%s1 + $0x10] sm:$0xf]
  %v52 = vld [vmem:[%s1 + $0x14] sm:$0xf]
  %v53 = vld [vmem:[%s1 + $0x18] sm:$0xf]
  %v54 = vld [vmem:[%s1 + $0x1c] sm:$0xf]
  %v55 = vld [vmem:[%s1 + $0x20] sm:$0xf]
  %v56 = vld [vmem:[%s1 + $0x24] sm:$0xf]
  %v57 = vld [vmem:[%s1 + $0x28] sm:$0xf]
  %v58 = vld [vmem:[%s1 + $0x2c] sm:$0xf]
  %v59 = vld [vmem:[%s1 + $0x30] sm:$0xf]
  %v60 = vld [vmem:[%s1 + $0x34] sm:$0xf]
  %v61 = vld [vmem:[%s1 + $0x38] sm:$0xf]
  %v62 = vld [vmem:[%s1 + $0x3c] sm:$0xf]
  %v63 = vld [vmem:[%s1 + $0x40] sm:$0xf]
  %v64 = vld [vmem:[%s1 + $0x44] sm:$0xf]
  %v65 = vld [vmem:[%s1 + $0x48] sm:$0xf]
  %v66 = vld [vmem:[%s1 + $0x4c] sm:$0xf]
  %v67 = vld [vmem:[%s1 + $0x50] sm:$0xf]
  %v68 = vld [vmem:[%s1 + $0x54] sm:$0xf]
  %v69 = vld [vmem:[%s1 + $0x58] sm:$0xf]
  %v70 = vld [vmem:[%s1 + $0x5c] sm:$0xf]
  %v71 = vld [vmem:[%s1 + $0x60] sm:$0xf]
  %v72 = vld [vmem:[%s1 + $0x64] sm:$0xf]
  %v73 = vld [vmem:[%s1 + $0x68] sm:$0xf]
  %v74 = vld [vmem:[%s1 + $0x6c] sm:$0xf]
  %v75 = vld [vmem:[%s1 + $0x70] sm:$0xf]
  %v76 = vld [vmem:[%s1 + $0x74] sm:$0xf]
  %v77 = vld [vmem:[%s1 + $0x78] sm:$0xf]
  %v78 = vld [vmem:[%s1 + $0x7c] sm:$0xf]
  %v79 = vld [vmem:[%s1 + $0x80] sm:$0xf]
  %v80 = vld [vmem:[%s1 + $0x84] sm:$0xf]
  %v81 = vld [vmem:[%s1 + $0x88] sm:$0xf]
  %v82 = vld [vmem:[%s1 + $0x8c] sm:$0xf]
  %v83 = vld [vmem:[%s2] sm:$0x1]
  %v85 = vperm.slane %v83, 0
  %v119 = vunpack.c.l.b16 %v15
  %v120 = vunpack.c.h.b16 %v15
  %v121 = vunpack.c.l.b16 %v16
  %v122 = vunpack.c.l.b16 %v17
  %v123 = vunpack.c.h.b16 %v17
  %v124 = vunpack.c.l.b16 %v18
  %v125 = vunpack.c.l.b16 %v19
  %v126 = vunpack.c.h.b16 %v19
  %v127 = vunpack.c.l.b16 %v20
  %v128 = vunpack.c.l.b16 %v21
  %v129 = vunpack.c.h.b16 %v21
  %v130 = vunpack.c.l.b16 %v22
  %v131 = vunpack.c.l.b16 %v23
  %v132 = vunpack.c.h.b16 %v23
  %v133 = vunpack.c.l.b16 %v24
  %v134 = vunpack.c.l.b16 %v25
  %v135 = vunpack.c.h.b16 %v25
  %v136 = vunpack.c.l.b16 %v26
  %v137 = vunpack.c.l.b16 %v27
  %v138 = vunpack.c.h.b16 %v27
  %v139 = vunpack.c.l.b16 %v28
  %v140 = vunpack.c.l.b16 %v29
  %v141 = vunpack.c.h.b16 %v29
  %v142 = vunpack.c.l.b16 %v30
  %v143 = vunpack.c.l.b16 %v31
  %v144 = vunpack.c.h.b16 %v31
  %v145 = vunpack.c.l.b16 %v32
  %v146 = vunpack.c.l.b16 %v33
  %v147 = vunpack.c.h.b16 %v33
  %v148 = vunpack.c.l.b16 %v34
  %v149 = vunpack.c.l.b16 %v35
  %v150 = vunpack.c.h.b16 %v35
  %v151 = vunpack.c.l.b16 %v36
  %v152 = vunpack.c.l.b16 %v37
  %v153 = vunpack.c.h.b16 %v37
  %v154 = vunpack.c.l.b16 %v38
  %v155 = vunpack.c.l.b16 %v39
  %v156 = vunpack.c.h.b16 %v39
  %v157 = vunpack.c.l.b16 %v40
  %v158 = vunpack.c.l.b16 %v41
  %v159 = vunpack.c.h.b16 %v41
  %v160 = vunpack.c.l.b16 %v42
  %v161 = vunpack.c.l.b16 %v43
  %v162 = vunpack.c.h.b16 %v43
  %v163 = vunpack.c.l.b16 %v44
  %v164 = vunpack.c.l.b16 %v45
  %v165 = vunpack.c.h.b16 %v45
  %v166 = vunpack.c.l.b16 %v46
  %v167 = vpack.c.b16 %v122, %v119
  %v168 = vpack.c.b16 %v123, %v120
  %v169 = vpack.c.b16 %v124, %v121
  %v170 = vpack.c.b16 %v128, %v125
  %v171 = vpack.c.b16 %v129, %v126
  %v172 = vpack.c.b16 %v130, %v127
  %v173 = vpack.c.b16 %v134, %v131
  %v174 = vpack.c.b16 %v135, %v132
  %v175 = vpack.c.b16 %v136, %v133
  %v176 = vpack.c.b16 %v140, %v137
  %v177 = vpack.c.b16 %v141, %v138
  %v178 = vpack.c.b16 %v142, %v139
  %v179 = vpack.c.b16 %v146, %v143
  %v180 = vpack.c.b16 %v147, %v144
  %v181 = vpack.c.b16 %v148, %v145
  %v182 = vpack.c.b16 %v152, %v149
  %v183 = vpack.c.b16 %v153, %v150
  %v184 = vpack.c.b16 %v154, %v151
  %v185 = vpack.c.b16 %v158, %v155
  %v186 = vpack.c.b16 %v159, %v156
  %v187 = vpack.c.b16 %v160, %v157
  %v188 = vpack.c.b16 %v164, %v161
  %v189 = vpack.c.b16 %v165, %v162
  %v190 = vpack.c.b16 %v166, %v163
  %v243 = vunpack.c.l.b16 %v47
  %v244 = vunpack.c.l.b16 %v48
  %v245 = vunpack.c.l.b16 %v49
  %v246 = vunpack.c.l.b16 %v50
  %v247 = vunpack.c.l.b16 %v51
  %v248 = vunpack.c.l.b16 %v52
  %v249 = vunpack.c.l.b16 %v53
  %v250 = vunpack.c.l.b16 %v54
  %v251 = vunpack.c.l.b16 %v55
  %v252 = vunpack.c.l.b16 %v56
  %v253 = vunpack.c.l.b16 %v57
  %v254 = vunpack.c.l.b16 %v58
  %v255 = vunpack.c.l.b16 %v59
  %v256 = vunpack.c.l.b16 %v60
  %v257 = vunpack.c.l.b16 %v61
  %v258 = vunpack.c.l.b16 %v62
  %v259 = vunpack.c.l.b16 %v63
  %v260 = vunpack.c.l.b16 %v64
  %v261 = vunpack.c.l.b16 %v65
  %v262 = vunpack.c.l.b16 %v66
  %v263 = vunpack.c.l.b16 %v67
  %v264 = vunpack.c.l.b16 %v68
  %v265 = vunpack.c.l.b16 %v69
  %v266 = vunpack.c.l.b16 %v70
  %v267 = vunpack.c.l.b16 %v71
  %v268 = vunpack.c.l.b16 %v72
  %v269 = vunpack.c.l.b16 %v73
  %v270 = vunpack.c.l.b16 %v74
  %v271 = vunpack.c.l.b16 %v75
  %v272 = vunpack.c.l.b16 %v76
  %v273 = vunpack.c.l.b16 %v77
  %v274 = vunpack.c.l.b16 %v78
  %v275 = vunpack.c.l.b16 %v79
  %v276 = vunpack.c.l.b16 %v80
  %v277 = vunpack.c.l.b16 %v81
  %v278 = vunpack.c.l.b16 %v82
  %v279 = vpack.c.b16 %v244, %v243
  %v280 = vpack.c.b16 %v246, %v245
  %v281 = vpack.c.b16 %v248, %v247
  %v282 = vpack.c.b16 %v250, %v249
  %v283 = vpack.c.b16 %v252, %v251
  %v284 = vpack.c.b16 %v254, %v253
  %v285 = vpack.c.b16 %v256, %v255
  %v286 = vpack.c.b16 %v258, %v257
  %v287 = vpack.c.b16 %v260, %v259
  %v288 = vpack.c.b16 %v262, %v261
  %v289 = vpack.c.b16 %v264, %v263
  %v290 = vpack.c.b16 %v266, %v265
  %v291 = vpack.c.b16 %v268, %v267
  %v292 = vpack.c.b16 %v270, %v269
  %v293 = vpack.c.b16 %v272, %v271
  %v294 = vpack.c.b16 %v274, %v273
  %v295 = vpack.c.b16 %v276, %v275
  %v296 = vpack.c.b16 %v278, %v277
  %vm315 = vcmask 261120
  %v317 = vsel %vm315, %v169, 0
  %v320 = vsel %vm315, %v172, 0
  %v323 = vsel %vm315, %v175, 0
  %v326 = vsel %vm315, %v178, 0
  %v329 = vsel %vm315, %v181, 0
  %v332 = vsel %vm315, %v184, 0
  %v335 = vsel %vm315, %v187, 0
  %v338 = vsel %vm315, %v190, 0
  %340 = vmatpush.bf16.msra.mxu0 %v286
  %341 = vmatpush.bf16.msra.mxu0 %v285
  %342 = vmatpush.bf16.msra.mxu0 %v284
  %343 = vmatpush.bf16.msra.mxu0 %v283
  %344 = vmatpush.bf16.msra.mxu0 %v282
  %345 = vmatpush.bf16.msra.mxu0 %v281
  %346 = vmatpush.bf16.msra.mxu0 %v280
  %347 = vmatpush.bf16.msra.mxu0 %v279
  %348 = vmatmul.bf16.gmra.mxu0 %v167
  %v349 = vpop.f32.mrf.mxu0
  %v350 = vadd.f32 %v85, %v349
  %v351 = vpop.f32.mrf.mxu0
  %v352 = vadd.f32 %v85, %v351
  %353 = vmatmul.bf16.gmra.mxu0 %v170
  %v354 = vpop.f32.mrf.mxu0
  %v355 = vadd.f32 %v85, %v354
  %v356 = vpop.f32.mrf.mxu0
  %v357 = vadd.f32 %v85, %v356
  %358 = vmatmul.bf16.gmra.mxu0 %v173
  %v359 = vpop.f32.mrf.mxu0
  %v360 = vadd.f32 %v85, %v359
  %v361 = vpop.f32.mrf.mxu0
  %v362 = vadd.f32 %v85, %v361
  %363 = vmatmul.bf16.gmra.mxu0 %v176
  %v364 = vpop.f32.mrf.mxu0
  %v365 = vadd.f32 %v85, %v364
  %v366 = vpop.f32.mrf.mxu0
  %v367 = vadd.f32 %v85, %v366
  %368 = vmatmul.bf16.gmra.mxu0 %v179
  %v369 = vpop.f32.mrf.mxu0
  %v370 = vadd.f32 %v85, %v369
  %v371 = vpop.f32.mrf.mxu0
  %v372 = vadd.f32 %v85, %v371
  %373 = vmatmul.bf16.gmra.mxu0 %v182
  %v374 = vpop.f32.mrf.mxu0
  %v375 = vadd.f32 %v85, %v374
  %v376 = vpop.f32.mrf.mxu0
  %v377 = vadd.f32 %v85, %v376
  %378 = vmatmul.bf16.gmra.mxu0 %v185
  %v379 = vpop.f32.mrf.mxu0
  %v380 = vadd.f32 %v85, %v379
  %v381 = vpop.f32.mrf.mxu0
  %v382 = vadd.f32 %v85, %v381
  %383 = vmatmul.bf16.gmra.mxu0 %v188
  %v384 = vpop.f32.mrf.mxu0
  %v385 = vadd.f32 %v85, %v384
  %v386 = vpop.f32.mrf.mxu0
  %v387 = vadd.f32 %v85, %v386
  %388 = vdwg.mxu0
  %389 = vmatpush.bf16.msra.mxu0 %v294
  %390 = vmatpush.bf16.msra.mxu0 %v293
  %391 = vmatpush.bf16.msra.mxu0 %v292
  %392 = vmatpush.bf16.msra.mxu0 %v291
  %393 = vmatpush.bf16.msra.mxu0 %v290
  %394 = vmatpush.bf16.msra.mxu0 %v289
  %395 = vmatpush.bf16.msra.mxu0 %v288
  %396 = vmatpush.bf16.msra.mxu0 %v287
  %397 = vmatmul.bf16.gmra.mxu0 %v168
  %v398 = vpop.f32.mrf.mxu0
  %v399 = vadd.f32 %v350, %v398
  %v400 = vpop.f32.mrf.mxu0
  %v401 = vadd.f32 %v352, %v400
  %402 = vmatmul.bf16.gmra.mxu0 %v171
  %v403 = vpop.f32.mrf.mxu0
  %v404 = vadd.f32 %v355, %v403
  %v405 = vpop.f32.mrf.mxu0
  %v406 = vadd.f32 %v357, %v405
  %407 = vmatmul.bf16.gmra.mxu0 %v174
  %v408 = vpop.f32.mrf.mxu0
  %v409 = vadd.f32 %v360, %v408
  %v410 = vpop.f32.mrf.mxu0
  %v411 = vadd.f32 %v362, %v410
  %412 = vmatmul.bf16.gmra.mxu0 %v177
  %v413 = vpop.f32.mrf.mxu0
  %v414 = vadd.f32 %v365, %v413
  %v415 = vpop.f32.mrf.mxu0
  %v416 = vadd.f32 %v367, %v415
  %417 = vmatmul.bf16.gmra.mxu0 %v180
  %v418 = vpop.f32.mrf.mxu0
  %v419 = vadd.f32 %v370, %v418
  %v420 = vpop.f32.mrf.mxu0
  %v421 = vadd.f32 %v372, %v420
  %422 = vmatmul.bf16.gmra.mxu0 %v183
  %v423 = vpop.f32.mrf.mxu0
  %v424 = vadd.f32 %v375, %v423
  %v425 = vpop.f32.mrf.mxu0
  %v426 = vadd.f32 %v377, %v425
  %427 = vmatmul.bf16.gmra.mxu0 %v186
  %v428 = vpop.f32.mrf.mxu0
  %v429 = vadd.f32 %v380, %v428
  %v430 = vpop.f32.mrf.mxu0
  %v431 = vadd.f32 %v382, %v430
  %432 = vmatmul.bf16.gmra.mxu0 %v189
  %v433 = vpop.f32.mrf.mxu0
  %v434 = vadd.f32 %v385, %v433
  %v435 = vpop.f32.mrf.mxu0
  %v436 = vadd.f32 %v387, %v435
  %437 = vdwg.mxu0
  %438 = vmatpush.bf16.msra.mxu0 0
  %439 = vmatpush.bf16.msra.mxu0 0
  %440 = vmatpush.bf16.msra.mxu0 0
  %441 = vmatpush.bf16.msra.mxu0 0
  %442 = vmatpush.bf16.msra.mxu0 0
  %443 = vmatpush.bf16.msra.mxu0 0
  %444 = vmatpush.bf16.msra.mxu0 %v296
  %445 = vmatpush.bf16.msra.mxu0 %v295
  %446 = vmatmul.bf16.gmra.mxu0 %v317
  %v447 = vpop.f32.mrf.mxu0
  %v448 = vadd.f32 %v399, %v447
  %v449 = vpop.f32.mrf.mxu0
  %v450 = vadd.f32 %v401, %v449
  %451 = vmatmul.bf16.gmra.mxu0 %v320
  %v452 = vpop.f32.mrf.mxu0
  %v453 = vadd.f32 %v404, %v452
  %v454 = vpop.f32.mrf.mxu0
  %v455 = vadd.f32 %v406, %v454
  %456 = vmatmul.bf16.gmra.mxu0 %v323
  %v457 = vpop.f32.mrf.mxu0
  %v458 = vadd.f32 %v409, %v457
  %v459 = vpop.f32.mrf.mxu0
  %v460 = vadd.f32 %v411, %v459
  %461 = vmatmul.bf16.gmra.mxu0 %v326
  %v462 = vpop.f32.mrf.mxu0
  %v463 = vadd.f32 %v414, %v462
  %v464 = vpop.f32.mrf.mxu0
  %v465 = vadd.f32 %v416, %v464
  %466 = vmatmul.bf16.gmra.mxu0 %v329
  %v467 = vpop.f32.mrf.mxu0
  %v468 = vadd.f32 %v419, %v467
  %v469 = vpop.f32.mrf.mxu0
  %v470 = vadd.f32 %v421, %v469
  %471 = vmatmul.bf16.gmra.mxu0 %v332
  %v472 = vpop.f32.mrf.mxu0
  %v473 = vadd.f32 %v424, %v472
  %v474 = vpop.f32.mrf.mxu0
  %v475 = vadd.f32 %v426, %v474
  %476 = vmatmul.bf16.gmra.mxu0 %v335
  %v477 = vpop.f32.mrf.mxu0
  %v478 = vadd.f32 %v429, %v477
  %v479 = vpop.f32.mrf.mxu0
  %v480 = vadd.f32 %v431, %v479
  %481 = vmatmul.bf16.gmra.mxu0 %v338
  %v482 = vpop.f32.mrf.mxu0
  %v483 = vadd.f32 %v434, %v482
  %v484 = vpop.f32.mrf.mxu0
  %v485 = vadd.f32 %v436, %v484
  %486 = vdwg.mxu0
  %v487 = vmax.f32 %v448, 0.0
  %v488 = vmax.f32 %v450, 0.0
  %v489 = vmax.f32 %v453, 0.0
  %v490 = vmax.f32 %v455, 0.0
  %v491 = vmax.f32 %v458, 0.0
  %v492 = vmax.f32 %v460, 0.0
  %v493 = vmax.f32 %v463, 0.0
  %v494 = vmax.f32 %v465, 0.0
  %v495 = vmax.f32 %v468, 0.0
  %v496 = vmax.f32 %v470, 0.0
  %v497 = vmax.f32 %v473, 0.0
  %v498 = vmax.f32 %v475, 0.0
  %v499 = vmax.f32 %v478, 0.0
  %v500 = vmax.f32 %v480, 0.0
  %v501 = vmax.f32 %v483, 0.0
  %v502 = vmax.f32 %v485, 0.0
  %v503 = vpack.c.bf16 %v487, %v487
  %v504 = vpack.c.bf16 %v488, %v488
  %v505 = vpack.c.bf16 %v489, %v489
  %v506 = vpack.c.bf16 %v490, %v490
  %v507 = vpack.c.bf16 %v491, %v491
  %v508 = vpack.c.bf16 %v492, %v492
  %v509 = vpack.c.bf16 %v493, %v493
  %v510 = vpack.c.bf16 %v494, %v494
  %v511 = vpack.c.bf16 %v495, %v495
  %v512 = vpack.c.bf16 %v496, %v496
  %v513 = vpack.c.bf16 %v497, %v497
  %v514 = vpack.c.bf16 %v498, %v498
  %v515 = vpack.c.bf16 %v499, %v499
  %v516 = vpack.c.bf16 %v500, %v500
  %v517 = vpack.c.bf16 %v501, %v501
  %v518 = vpack.c.bf16 %v502, %v502
  %vm519 = vcmask 519168
  %520 = vst.msk [vmem:[%s3] sm:$0xf] %vm519, %v503
  %521 = vst.msk [vmem:[%s3 + $0x4] sm:$0xf] %vm519, %v504
  %522 = vst.msk [vmem:[%s3 + $0x8] sm:$0xf] %vm519, %v505
  %523 = vst.msk [vmem:[%s3 + $0xc] sm:$0xf] %vm519, %v506
  %524 = vst.msk [vmem:[%s3 + $0x10] sm:$0xf] %vm519, %v507
  %525 = vst.msk [vmem:[%s3 + $0x14] sm:$0xf] %vm519, %v508
  %526 = vst.msk [vmem:[%s3 + $0x18] sm:$0xf] %vm519, %v509
  %527 = vst.msk [vmem:[%s3 + $0x1c] sm:$0xf] %vm519, %v510
  %528 = vst.msk [vmem:[%s3 + $0x20] sm:$0xf] %vm519, %v511
  %529 = vst.msk [vmem:[%s3 + $0x24] sm:$0xf] %vm519, %v512
  %530 = vst.msk [vmem:[%s3 + $0x28] sm:$0xf] %vm519, %v513
  %531 = vst.msk [vmem:[%s3 + $0x2c] sm:$0xf] %vm519, %v514
  %532 = vst.msk [vmem:[%s3 + $0x30] sm:$0xf] %vm519, %v515
  %533 = vst.msk [vmem:[%s3 + $0x34] sm:$0xf] %vm519, %v516
  %534 = vst.msk [vmem:[%s3 + $0x38] sm:$0xf] %vm519, %v517
  %535 = vst.msk [vmem:[%s3 + $0x3c] sm:$0xf] %vm519, %v518
  // Predicated region
  $region14: #{conv_vae_forward.12} parent=0 // pred_check
    _
  $region15: #{conv_vae_forward.12} parent=0 // pred_check_branch
    %537 = sbr.rel (0) target = $region17
  $region16: #{conv_vae_forward.12} parent=0 // pred_region
    _
  $region17: #{conv_vae_forward.12} parent=0 // pred_fallthru
    _
  // Predicated region
  $region18: #{conv_vae_forward.12} parent=0 // pred_check
    _
  $region19: #{conv_vae_forward.12} parent=0 // pred_check_branch
    %539 = sbr.rel (0) target = $region21
  $region20: #{conv_vae_forward.12} parent=0 // pred_region
    _
  $region21: #{conv_vae_forward.12} parent=0 // pred_fallthru
    _

// kernel: conv_vae_forward.13
$region0: #{conv_vae_forward.13}
  #allocation0 [shape = 'u32[]', space=smem, size = 0x4, offset = 0x4, fixed_abs, tag = 'smem constant byte address 0x4 - core index']
  #allocation1 [shape = 'u32[72,128]{1,0:T(1,128)}', space=vmem, size = 0x9000, scoped, tag = 'internal scratch']
  %s0 = inlined_call_operand.vmem [shape: bf16[512,144], index: 0, kind: input, shape index: {}]
  %s1 = inlined_call_operand.vmem [shape: bf16[144,4], index: 1, kind: input, shape index: {}]
  %s2 = inlined_call_operand.vmem [shape: f32[1,4], index: 2, kind: input, shape index: {}]
  %s3 = inlined_call_operand.vmem [shape: f32[512,4], index: 3, kind: output, shape index: {}]
  %s4 = sld [smem:[#allocation0]]
  $region22: #{conv_vae_forward.13} parent=0
    _
  %s6 = ssub.s32 1, %s4
  %s7 = scalar_select 0, %s6, %s4
  // Predicated region
  $region2: #{conv_vae_forward.13} parent=0 // pred_check
    _
  $region3: #{conv_vae_forward.13} parent=0 // pred_check_branch
    %9 = sbr.rel (0) target = $region5
  $region4: #{conv_vae_forward.13} parent=0 // pred_region
    _
  $region5: #{conv_vae_forward.13} parent=0 // pred_fallthru
    _
  // Predicated region
  $region6: #{conv_vae_forward.13} parent=0 // pred_check
    _
  $region7: #{conv_vae_forward.13} parent=0 // pred_check_branch
    %11 = sbr.rel (0) target = $region9
  $region8: #{conv_vae_forward.13} parent=0 // pred_region
    _
  $region9: #{conv_vae_forward.13} parent=0 // pred_fallthru
    _
  // Predicated region
  $region10: #{conv_vae_forward.13} parent=0 // pred_check
    _
  $region11: #{conv_vae_forward.13} parent=0 // pred_check_branch
    %13 = sbr.rel (0) target = $region13
  $region12: #{conv_vae_forward.13} parent=0 // pred_region
    _
  $region13: #{conv_vae_forward.13} parent=0 // pred_fallthru
    _
  %v15 = vld [vmem:[%s0] sm:$0xff]
  %v16 = vld [vmem:[%s0 + $0x8] sm:$0xff]
  %v17 = vld [vmem:[%s0 + $0x10] sm:$0xff]
  %v18 = vld [vmem:[%s0 + $0x18] sm:$0xff]
  %v19 = vld [vmem:[%s0 + $0x20] sm:$0xff]
  %v20 = vld [vmem:[%s0 + $0x28] sm:$0xff]
  %v21 = vld [vmem:[%s0 + $0x30] sm:$0xff]
  %v22 = vld [vmem:[%s0 + $0x38] sm:$0xff]
  %v23 = vld [vmem:[%s0 + $0x40] sm:$0xff]
  %v24 = vld [vmem:[%s0 + $0x48] sm:$0xff]
  %v25 = vld [vmem:[%s0 + $0x50] sm:$0xff]
  %v26 = vld [vmem:[%s0 + $0x58] sm:$0xff]
  %v27 = vld [vmem:[%s0 + $0x60] sm:$0xff]
  %v28 = vld [vmem:[%s0 + $0x68] sm:$0xff]
  %v29 = vld [vmem:[%s0 + $0x70] sm:$0xff]
  %v30 = vld [vmem:[%s0 + $0x78] sm:$0xff]
  %v31 = vld [vmem:[%s0 + $0x80] sm:$0xff]
  %v32 = vld [vmem:[%s0 + $0x88] sm:$0xff]
  %v33 = vld [vmem:[%s0 + $0x90] sm:$0xff]
  %v34 = vld [vmem:[%s0 + $0x98] sm:$0xff]
  %v35 = vld [vmem:[%s0 + $0xa0] sm:$0xff]
  %v36 = vld [vmem:[%s0 + $0xa8] sm:$0xff]
  %v37 = vld [vmem:[%s0 + $0xb0] sm:$0xff]
  %v38 = vld [vmem:[%s0 + $0xb8] sm:$0xff]
  %v39 = vld [vmem:[%s0 + $0xc0] sm:$0xff]
  %v40 = vld [vmem:[%s0 + $0xc8] sm:$0xff]
  %v41 = vld [vmem:[%s0 + $0xd0] sm:$0xff]
  %v42 = vld [vmem:[%s0 + $0xd8] sm:$0xff]
  %v43 = vld [vmem:[%s0 + $0xe0] sm:$0xff]
  %v44 = vld [vmem:[%s0 + $0xe8] sm:$0xff]
  %v45 = vld [vmem:[%s0 + $0xf0] sm:$0xff]
  %v46 = vld [vmem:[%s0 + $0xf8] sm:$0xff]
  %v47 = vld [vmem:[%s0 + $0x100] sm:$0xff]
  %v48 = vld [vmem:[%s0 + $0x108] sm:$0xff]
  %v49 = vld [vmem:[%s0 + $0x110] sm:$0xff]
  %v50 = vld [vmem:[%s0 + $0x118] sm:$0xff]
  %v51 = vld [vmem:[%s0 + $0x120] sm:$0xff]
  %v52 = vld [vmem:[%s0 + $0x128] sm:$0xff]
  %v53 = vld [vmem:[%s0 + $0x130] sm:$0xff]
  %v54 = vld [vmem:[%s0 + $0x138] sm:$0xff]
  %v55 = vld [vmem:[%s0 + $0x140] sm:$0xff]
  %v56 = vld [vmem:[%s0 + $0x148] sm:$0xff]
  %v57 = vld [vmem:[%s0 + $0x150] sm:$0xff]
  %v58 = vld [vmem:[%s0 + $0x158] sm:$0xff]
  %v59 = vld [vmem:[%s0 + $0x160] sm:$0xff]
  %v60 = vld [vmem:[%s0 + $0x168] sm:$0xff]
  %v61 = vld [vmem:[%s0 + $0x170] sm:$0xff]
  %v62 = vld [vmem:[%s0 + $0x178] sm:$0xff]
  %v63 = vld [vmem:[%s0 + $0x180] sm:$0xff]
  %v64 = vld [vmem:[%s0 + $0x188] sm:$0xff]
  %v65 = vld [vmem:[%s0 + $0x190] sm:$0xff]
  %v66 = vld [vmem:[%s0 + $0x198] sm:$0xff]
  %v67 = vld [vmem:[%s0 + $0x1a0] sm:$0xff]
  %v68 = vld [vmem:[%s0 + $0x1a8] sm:$0xff]
  %v69 = vld [vmem:[%s0 + $0x1b0] sm:$0xff]
  %v70 = vld [vmem:[%s0 + $0x1b8] sm:$0xff]
  %v71 = vld [vmem:[%s0 + $0x1c0] sm:$0xff]
  %v72 = vld [vmem:[%s0 + $0x1c8] sm:$0xff]
  %v73 = vld [vmem:[%s0 + $0x1d0] sm:$0xff]
  %v74 = vld [vmem:[%s0 + $0x1d8] sm:$0xff]
  %v75 = vld [vmem:[%s0 + $0x1e0] sm:$0xff]
  %v76 = vld [vmem:[%s0 + $0x1e8] sm:$0xff]
  %v77 = vld [vmem:[%s0 + $0x1f0] sm:$0xff]
  %v78 = vld [vmem:[%s0 + $0x1f8] sm:$0xff]
  %v79 = vld [vmem:[%s1] sm:$0xf]
  %v80 = vld [vmem:[%s1 + $0x4] sm:$0xf]
  %v81 = vld [vmem:[%s1 + $0x8] sm:$0xf]
  %v82 = vld [vmem:[%s1 + $0xc] sm:$0xf]
  %v83 = vld [vmem:[%s1 + $0x10] sm:$0xf]
  %v84 = vld [vmem:[%s1 + $0x14] sm:$0xf]
  %v85 = vld [vmem:[%s1 + $0x18] sm:$0xf]
  %v86 = vld [vmem:[%s1 + $0x1c] sm:$0xf]
  %v87 = vld [vmem:[%s1 + $0x20] sm:$0xf]
  %v88 = vld [vmem:[%s1 + $0x24] sm:$0xf]
  %v89 = vld [vmem:[%s1 + $0x28] sm:$0xf]
  %v90 = vld [vmem:[%s1 + $0x2c] sm:$0xf]
  %v91 = vld [vmem:[%s1 + $0x30] sm:$0xf]
  %v92 = vld [vmem:[%s1 + $0x34] sm:$0xf]
  %v93 = vld [vmem:[%s1 + $0x38] sm:$0xf]
  %v94 = vld [vmem:[%s1 + $0x3c] sm:$0xf]
  %v95 = vld [vmem:[%s1 + $0x40] sm:$0xf]
  %v96 = vld [vmem:[%s1 + $0x44] sm:$0xf]
  %v97 = vld [vmem:[%s2] sm:$0x1]
  %v99 = vperm.slane %v97, 0
  %v165 = vunpack.c.l.b16 %v15
  %v166 = vunpack.c.h.b16 %v15
  %v167 = vunpack.c.l.b16 %v16
  %v168 = vunpack.c.h.b16 %v16
  %v169 = vunpack.c.l.b16 %v17
  %v170 = vunpack.c.h.b16 %v17
  %v171 = vunpack.c.l.b16 %v18
  %v172 = vunpack.c.h.b16 %v18
  %v173 = vunpack.c.l.b16 %v19
  %v174 = vunpack.c.h.b16 %v19
  %v175 = vunpack.c.l.b16 %v20
  %v176 = vunpack.c.h.b16 %v20
  %v177 = vunpack.c.l.b16 %v21
  %v178 = vunpack.c.h.b16 %v21
  %v179 = vunpack.c.l.b16 %v22
  %v180 = vunpack.c.h.b16 %v22
  %v181 = vunpack.c.l.b16 %v23
  %v182 = vunpack.c.h.b16 %v23
  %v183 = vunpack.c.l.b16 %v24
  %v184 = vunpack.c.h.b16 %v24
  %v185 = vunpack.c.l.b16 %v25
  %v186 = vunpack.c.h.b16 %v25
  %v187 = vunpack.c.l.b16 %v26
  %v188 = vunpack.c.h.b16 %v26
  %v189 = vunpack.c.l.b16 %v27
  %v190 = vunpack.c.h.b16 %v27
  %v191 = vunpack.c.l.b16 %v28
  %v192 = vunpack.c.h.b16 %v28
  %v193 = vunpack.c.l.b16 %v29
  %v194 = vunpack.c.h.b16 %v29
  %v195 = vunpack.c.l.b16 %v30
  %v196 = vunpack.c.h.b16 %v30
  %v197 = vunpack.c.l.b16 %v31
  %v198 = vunpack.c.h.b16 %v31
  %v199 = vunpack.c.l.b16 %v32
  %v200 = vunpack.c.h.b16 %v32
  %v201 = vunpack.c.l.b16 %v33
  %v202 = vunpack.c.h.b16 %v33
  %v203 = vunpack.c.l.b16 %v34
  %v204 = vunpack.c.h.b16 %v34
  %v205 = vunpack.c.l.b16 %v35
  %v206 = vunpack.c.h.b16 %v35
  %v207 = vunpack.c.l.b16 %v36
  %v208 = vunpack.c.h.b16 %v36
  %v209 = vunpack.c.l.b16 %v37
  %v210 = vunpack.c.h.b16 %v37
  %v211 = vunpack.c.l.b16 %v38
  %v212 = vunpack.c.h.b16 %v38
  %v213 = vunpack.c.l.b16 %v39
  %v214 = vunpack.c.h.b16 %v39
  %v215 = vunpack.c.l.b16 %v40
  %v216 = vunpack.c.h.b16 %v40
  %v217 = vunpack.c.l.b16 %v41
  %v218 = vunpack.c.h.b16 %v41
  %v219 = vunpack.c.l.b16 %v42
  %v220 = vunpack.c.h.b16 %v42
  %v221 = vunpack.c.l.b16 %v43
  %v222 = vunpack.c.h.b16 %v43
  %v223 = vunpack.c.l.b16 %v44
  %v224 = vunpack.c.h.b16 %v44
  %v225 = vunpack.c.l.b16 %v45
  %v226 = vunpack.c.h.b16 %v45
  %v227 = vunpack.c.l.b16 %v46
  %v228 = vunpack.c.h.b16 %v46
  %v229 = vunpack.c.l.b16 %v47
  %v230 = vunpack.c.h.b16 %v47
  %v231 = vunpack.c.l.b16 %v48
  %v232 = vunpack.c.h.b16 %v48
  %v233 = vunpack.c.l.b16 %v49
  %v234 = vunpack.c.h.b16 %v49
  %v235 = vunpack.c.l.b16 %v50
  %v236 = vunpack.c.h.b16 %v50
  %v237 = vunpack.c.l.b16 %v51
  %v238 = vunpack.c.h.b16 %v51
  %v239 = vunpack.c.l.b16 %v52
  %v240 = vunpack.c.h.b16 %v52
  %v241 = vunpack.c.l.b16 %v53
  %v242 = vunpack.c.h.b16 %v53
  %v243 = vunpack.c.l.b16 %v54
  %v244 = vunpack.c.h.b16 %v54
  %v245 = vunpack.c.l.b16 %v55
  %v246 = vunpack.c.h.b16 %v55
  %v247 = vunpack.c.l.b16 %v56
  %v248 = vunpack.c.h.b16 %v56
  %v249 = vunpack.c.l.b16 %v57
  %v250 = vunpack.c.h.b16 %v57
  %v251 = vunpack.c.l.b16 %v58
  %v252 = vunpack.c.h.b16 %v58
  %v253 = vunpack.c.l.b16 %v59
  %v254 = vunpack.c.h.b16 %v59
  %v255 = vunpack.c.l.b16 %v60
  %v256 = vunpack.c.h.b16 %v60
  %v257 = vunpack.c.l.b16 %v61
  %v258 = vunpack.c.h.b16 %v61
  %v259 = vunpack.c.l.b16 %v62
  %v260 = vunpack.c.h.b16 %v62
  %v261 = vunpack.c.l.b16 %v63
  %v262 = vunpack.c.h.b16 %v63
  %v263 = vunpack.c.l.b16 %v64
  %v264 = vunpack.c.h.b16 %v64
  %v265 = vunpack.c.l.b16 %v65
  %v266 = vunpack.c.h.b16 %v65
  %v267 = vunpack.c.l.b16 %v66
  %v268 = vunpack.c.h.b16 %v66
  %v269 = vunpack.c.l.b16 %v67
  %v270 = vunpack.c.h.b16 %v67
  %v271 = vunpack.c.l.b16 %v68
  %v272 = vunpack.c.h.b16 %v68
  %v273 = vunpack.c.l.b16 %v69
  %v274 = vunpack.c.h.b16 %v69
  %v275 = vunpack.c.l.b16 %v70
  %v276 = vunpack.c.h.b16 %v70
  %v277 = vunpack.c.l.b16 %v71
  %v278 = vunpack.c.h.b16 %v71
  %v279 = vunpack.c.l.b16 %v72
  %v280 = vunpack.c.h.b16 %v72
  %v281 = vunpack.c.l.b16 %v73
  %v282 = vunpack.c.h.b16 %v73
  %v283 = vunpack.c.l.b16 %v74
  %v284 = vunpack.c.h.b16 %v74
  %v285 = vunpack.c.l.b16 %v75
  %v286 = vunpack.c.h.b16 %v75
  %v287 = vunpack.c.l.b16 %v76
  %v288 = vunpack.c.h.b16 %v76
  %v289 = vunpack.c.l.b16 %v77
  %v290 = vunpack.c.h.b16 %v77
  %v291 = vunpack.c.l.b16 %v78
  %v292 = vunpack.c.h.b16 %v78
  %v293 = vpack.c.b16 %v167, %v165
  %v294 = vpack.c.b16 %v168, %v166
  %v295 = vpack.c.b16 %v171, %v169
  %v296 = vpack.c.b16 %v172, %v170
  %v297 = vpack.c.b16 %v175, %v173
  %v298 = vpack.c.b16 %v176, %v174
  %v299 = vpack.c.b16 %v179, %v177
  %v300 = vpack.c.b16 %v180, %v178
  %v301 = vpack.c.b16 %v183, %v181
  %v302 = vpack.c.b16 %v184, %v182
  %v303 = vpack.c.b16 %v187, %v185
  %v304 = vpack.c.b16 %v188, %v186
  %v305 = vpack.c.b16 %v191, %v189
  %v306 = vpack.c.b16 %v192, %v190
  %v307 = vpack.c.b16 %v195, %v193
  %v308 = vpack.c.b16 %v196, %v194
  %v309 = vpack.c.b16 %v199, %v197
  %v310 = vpack.c.b16 %v200, %v198
  %v311 = vpack.c.b16 %v203, %v201
  %v312 = vpack.c.b16 %v204, %v202
  %v313 = vpack.c.b16 %v207, %v205
  %v314 = vpack.c.b16 %v208, %v206
  %v315 = vpack.c.b16 %v211, %v209
  %v316 = vpack.c.b16 %v212, %v210
  %v317 = vpack.c.b16 %v215, %v213
  %v318 = vpack.c.b16 %v216, %v214
  %v319 = vpack.c.b16 %v219, %v217
  %v320 = vpack.c.b16 %v220, %v218
  %v321 = vpack.c.b16 %v223, %v221
  %v322 = vpack.c.b16 %v224, %v222
  %v323 = vpack.c.b16 %v227, %v225
  %v324 = vpack.c.b16 %v228, %v226
  %v325 = vpack.c.b16 %v231, %v229
  %v326 = vpack.c.b16 %v232, %v230
  %v327 = vpack.c.b16 %v235, %v233
  %v328 = vpack.c.b16 %v236, %v234
  %v329 = vpack.c.b16 %v239, %v237
  %v330 = vpack.c.b16 %v240, %v238
  %v331 = vpack.c.b16 %v243, %v241
  %v332 = vpack.c.b16 %v244, %v242
  %v333 = vpack.c.b16 %v247, %v245
  %v334 = vpack.c.b16 %v248, %v246
  %v335 = vpack.c.b16 %v251, %v249
  %v336 = vpack.c.b16 %v252, %v250
  %v337 = vpack.c.b16 %v255, %v253
  %v338 = vpack.c.b16 %v256, %v254
  %v339 = vpack.c.b16 %v259, %v257
  %v340 = vpack.c.b16 %v260, %v258
  %v341 = vpack.c.b16 %v263, %v261
  %v342 = vpack.c.b16 %v264, %v262
  %v343 = vpack.c.b16 %v267, %v265
  %v344 = vpack.c.b16 %v268, %v266
  %v345 = vpack.c.b16 %v271, %v269
  %v346 = vpack.c.b16 %v272, %v270
  %v347 = vpack.c.b16 %v275, %v273
  %v348 = vpack.c.b16 %v276, %v274
  %v349 = vpack.c.b16 %v279, %v277
  %v350 = vpack.c.b16 %v280, %v278
  %v351 = vpack.c.b16 %v283, %v281
  %v352 = vpack.c.b16 %v284, %v282
  %v353 = vpack.c.b16 %v287, %v285
  %v354 = vpack.c.b16 %v288, %v286
  %v355 = vpack.c.b16 %v291, %v289
  %v356 = vpack.c.b16 %v292, %v290
  %v407 = vunpack.c.l.b16 %v79
  %v408 = vunpack.c.l.b16 %v80
  %v409 = vunpack.c.l.b16 %v81
  %v410 = vunpack.c.l.b16 %v82
  %v411 = vunpack.c.l.b16 %v83
  %v412 = vunpack.c.l.b16 %v84
  %v413 = vunpack.c.l.b16 %v85
  %v414 = vunpack.c.l.b16 %v86
  %v415 = vunpack.c.l.b16 %v87
  %v416 = vunpack.c.l.b16 %v88
  %v417 = vunpack.c.l.b16 %v89
  %v418 = vunpack.c.l.b16 %v90
  %v419 = vunpack.c.l.b16 %v91
  %v420 = vunpack.c.l.b16 %v92
  %v421 = vunpack.c.l.b16 %v93
  %v422 = vunpack.c.l.b16 %v94
  %v423 = vunpack.c.l.b16 %v95
  %v424 = vunpack.c.l.b16 %v96
  %v425 = vpack.c.b16 %v408, %v407
  %v426 = vpack.c.b16 %v410, %v409
  %v427 = vpack.c.b16 %v412, %v411
  %v428 = vpack.c.b16 %v414, %v413
  %v429 = vpack.c.b16 %v416, %v415
  %v430 = vpack.c.b16 %v418, %v417
  %v431 = vpack.c.b16 %v420, %v419
  %v432 = vpack.c.b16 %v422, %v421
  %v433 = vpack.c.b16 %v424, %v423
  %vm443 = vcmask 130048
  %v445 = vsel %vm443, %v294, 0
  %v448 = vsel %vm443, %v296, 0
  %v451 = vsel %vm443, %v298, 0
  %v454 = vsel %vm443, %v300, 0
  %v457 = vsel %vm443, %v302, 0
  %v460 = vsel %vm443, %v304, 0
  %v463 = vsel %vm443, %v306, 0
  %v466 = vsel %vm443, %v308, 0
  %v469 = vsel %vm443, %v310, 0
  %v472 = vsel %vm443, %v312, 0
  %v475 = vsel %vm443, %v314, 0
  %v478 = vsel %vm443, %v316, 0
  %v481 = vsel %vm443, %v318, 0
  %v484 = vsel %vm443, %v320, 0
  %v487 = vsel %vm443, %v322, 0
  %v490 = vsel %vm443, %v324, 0
  %v493 = vsel %vm443, %v326, 0
  %v496 = vsel %vm443, %v328, 0
  %v499 = vsel %vm443, %v330, 0
  %v502 = vsel %vm443, %v332, 0
  %v505 = vsel %vm443, %v334, 0
  %v508 = vsel %vm443, %v336, 0
  %v511 = vsel %vm443, %v338, 0
  %v514 = vsel %vm443, %v340, 0
  %v517 = vsel %vm443, %v342, 0
  %v520 = vsel %vm443, %v344, 0
  %v523 = vsel %vm443, %v346, 0
  %v526 = vsel %vm443, %v348, 0
  %v529 = vsel %vm443, %v350, 0
  %v532 = vsel %vm443, %v352, 0
  %v535 = vsel %vm443, %v354, 0
  %v538 = vsel %vm443, %v356, 0
  %540 = vmatpush.bf16.msra.mxu0 %v432
  %541 = vmatpush.bf16.msra.mxu0 %v431
  %542 = vmatpush.bf16.msra.mxu0 %v430
  %543 = vmatpush.bf16.msra.mxu0 %v429
  %544 = vmatpush.bf16.msra.mxu0 %v428
  %545 = vmatpush.bf16.msra.mxu0 %v427
  %546 = vmatpush.bf16.msra.mxu0 %v426
  %547 = vmatpush.bf16.msra.mxu0 %v425
  %548 = vmatmul.bf16.gmra.mxu0 %v293
  %v549 = vpop.f32.mrf.mxu0
  %v550 = vadd.f32 %v99, %v549
  %v551 = vpop.f32.mrf.mxu0
  %v552 = vadd.f32 %v99, %v551
  %553 = vmatmul.bf16.gmra.mxu0 %v295
  %v554 = vpop.f32.mrf.mxu0
  %v555 = vadd.f32 %v99, %v554
  %v556 = vpop.f32.mrf.mxu0
  %v557 = vadd.f32 %v99, %v556
  %558 = vmatmul.bf16.gmra.mxu0 %v297
  %v559 = vpop.f32.mrf.mxu0
  %v560 = vadd.f32 %v99, %v559
  %v561 = vpop.f32.mrf.mxu0
  %v562 = vadd.f32 %v99, %v561
  %563 = vmatmul.bf16.gmra.mxu0 %v299
  %v564 = vpop.f32.mrf.mxu0
  %v565 = vadd.f32 %v99, %v564
  %v566 = vpop.f32.mrf.mxu0
  %v567 = vadd.f32 %v99, %v566
  %568 = vmatmul.bf16.gmra.mxu0 %v301
  %v569 = vpop.f32.mrf.mxu0
  %v570 = vadd.f32 %v99, %v569
  %v571 = vpop.f32.mrf.mxu0
  %v572 = vadd.f32 %v99, %v571
  %573 = vmatmul.bf16.gmra.mxu0 %v303
  %v574 = vpop.f32.mrf.mxu0
  %v575 = vadd.f32 %v99, %v574
  %v576 = vpop.f32.mrf.mxu0
  %v577 = vadd.f32 %v99, %v576
  %578 = vmatmul.bf16.gmra.mxu0 %v305
  %v579 = vpop.f32.mrf.mxu0
  %v580 = vadd.f32 %v99, %v579
  %v581 = vpop.f32.mrf.mxu0
  %v582 = vadd.f32 %v99, %v581
  %583 = vmatmul.bf16.gmra.mxu0 %v307
  %v584 = vpop.f32.mrf.mxu0
  %v585 = vadd.f32 %v99, %v584
  %v586 = vpop.f32.mrf.mxu0
  %v587 = vadd.f32 %v99, %v586
  %588 = vmatmul.bf16.gmra.mxu0 %v309
  %v589 = vpop.f32.mrf.mxu0
  %v590 = vadd.f32 %v99, %v589
  %v591 = vpop.f32.mrf.mxu0
  %v592 = vadd.f32 %v99, %v591
  %593 = vmatmul.bf16.gmra.mxu0 %v311
  %v594 = vpop.f32.mrf.mxu0
  %v595 = vadd.f32 %v99, %v594
  %v596 = vpop.f32.mrf.mxu0
  %v597 = vadd.f32 %v99, %v596
  %598 = vmatmul.bf16.gmra.mxu0 %v313
  %v599 = vpop.f32.mrf.mxu0
  %v600 = vadd.f32 %v99, %v599
  %v601 = vpop.f32.mrf.mxu0
  %v602 = vadd.f32 %v99, %v601
  %603 = vmatmul.bf16.gmra.mxu0 %v315
  %v604 = vpop.f32.mrf.mxu0
  %v605 = vadd.f32 %v99, %v604
  %v606 = vpop.f32.mrf.mxu0
  %v607 = vadd.f32 %v99, %v606
  %608 = vmatmul.bf16.gmra.mxu0 %v317
  %v609 = vpop.f32.mrf.mxu0
  %v610 = vadd.f32 %v99, %v609
  %v611 = vpop.f32.mrf.mxu0
  %v612 = vadd.f32 %v99, %v611
  %613 = vmatmul.bf16.gmra.mxu0 %v319
  %v614 = vpop.f32.mrf.mxu0
  %v615 = vadd.f32 %v99, %v614
  %v616 = vpop.f32.mrf.mxu0
  %v617 = vadd.f32 %v99, %v616
  %618 = vmatmul.bf16.gmra.mxu0 %v321
  %v619 = vpop.f32.mrf.mxu0
  %v620 = vadd.f32 %v99, %v619
  %v621 = vpop.f32.mrf.mxu0
  %v622 = vadd.f32 %v99, %v621
  %623 = vmatmul.bf16.gmra.mxu0 %v323
  %v624 = vpop.f32.mrf.mxu0
  %v625 = vadd.f32 %v99, %v624
  %v626 = vpop.f32.mrf.mxu0
  %v627 = vadd.f32 %v99, %v626
  %628 = vmatmul.bf16.gmra.mxu0 %v325
  %v629 = vpop.f32.mrf.mxu0
  %v630 = vadd.f32 %v99, %v629
  %v631 = vpop.f32.mrf.mxu0
  %v632 = vadd.f32 %v99, %v631
  %633 = vmatmul.bf16.gmra.mxu0 %v327
  %v634 = vpop.f32.mrf.mxu0
  %v635 = vadd.f32 %v99, %v634
  %v636 = vpop.f32.mrf.mxu0
  %v637 = vadd.f32 %v99, %v636
  %638 = vmatmul.bf16.gmra.mxu0 %v329
  %v639 = vpop.f32.mrf.mxu0
  %v640 = vadd.f32 %v99, %v639
  %v641 = vpop.f32.mrf.mxu0
  %v642 = vadd.f32 %v99, %v641
  %643 = vmatmul.bf16.gmra.mxu0 %v331
  %v644 = vpop.f32.mrf.mxu0
  %v645 = vadd.f32 %v99, %v644
  %v646 = vpop.f32.mrf.mxu0
  %v647 = vadd.f32 %v99, %v646
  %648 = vmatmul.bf16.gmra.mxu0 %v333
  %v649 = vpop.f32.mrf.mxu0
  %v650 = vadd.f32 %v99, %v649
  %v651 = vpop.f32.mrf.mxu0
  %v652 = vadd.f32 %v99, %v651
  %653 = vmatmul.bf16.gmra.mxu0 %v335
  %v654 = vpop.f32.mrf.mxu0
  %v655 = vadd.f32 %v99, %v654
  %v656 = vpop.f32.mrf.mxu0
  %v657 = vadd.f32 %v99, %v656
  %658 = vmatmul.bf16.gmra.mxu0 %v337
  %v659 = vpop.f32.mrf.mxu0
  %v660 = vadd.f32 %v99, %v659
  %v661 = vpop.f32.mrf.mxu0
  %v662 = vadd.f32 %v99, %v661
  %663 = vmatmul.bf16.gmra.mxu0 %v339
  %v664 = vpop.f32.mrf.mxu0
  %v665 = vadd.f32 %v99, %v664
  %v666 = vpop.f32.mrf.mxu0
  %v667 = vadd.f32 %v99, %v666
  %668 = vmatmul.bf16.gmra.mxu0 %v341
  %v669 = vpop.f32.mrf.mxu0
  %v670 = vadd.f32 %v99, %v669
  %v671 = vpop.f32.mrf.mxu0
  %v672 = vadd.f32 %v99, %v671
  %673 = vmatmul.bf16.gmra.mxu0 %v343
  %v674 = vpop.f32.mrf.mxu0
  %v675 = vadd.f32 %v99, %v674
  %v676 = vpop.f32.mrf.mxu0
  %v677 = vadd.f32 %v99, %v676
  %678 = vmatmul.bf16.gmra.mxu0 %v345
  %v679 = vpop.f32.mrf.mxu0
  %v680 = vadd.f32 %v99, %v679
  %v681 = vpop.f32.mrf.mxu0
  %v682 = vadd.f32 %v99, %v681
  %683 = vmatmul.bf16.gmra.mxu0 %v347
  %v684 = vpop.f32.mrf.mxu0
  %v685 = vadd.f32 %v99, %v684
  %v686 = vpop.f32.mrf.mxu0
  %v687 = vadd.f32 %v99, %v686
  %688 = vmatmul.bf16.gmra.mxu0 %v349
  %v689 = vpop.f32.mrf.mxu0
  %v690 = vadd.f32 %v99, %v689
  %v691 = vpop.f32.mrf.mxu0
  %v692 = vadd.f32 %v99, %v691
  %693 = vmatmul.bf16.gmra.mxu0 %v351
  %v694 = vpop.f32.mrf.mxu0
  %v695 = vadd.f32 %v99, %v694
  %v696 = vpop.f32.mrf.mxu0
  %v697 = vadd.f32 %v99, %v696
  %698 = vmatmul.bf16.gmra.mxu0 %v353
  %v699 = vpop.f32.mrf.mxu0
  %v700 = vadd.f32 %v99, %v699
  %v701 = vpop.f32.mrf.mxu0
  %v702 = vadd.f32 %v99, %v701
  %703 = vmatmul.bf16.gmra.mxu0 %v355
  %v704 = vpop.f32.mrf.mxu0
  %v705 = vadd.f32 %v99, %v704
  %v706 = vpop.f32.mrf.mxu0
  %v707 = vadd.f32 %v99, %v706
  %708 = vdwg.mxu0
  %709 = vmatpush.bf16.msra.mxu0 0
  %710 = vmatpush.bf16.msra.mxu0 0
  %711 = vmatpush.bf16.msra.mxu0 0
  %712 = vmatpush.bf16.msra.mxu0 0
  %713 = vmatpush.bf16.msra.mxu0 0
  %714 = vmatpush.bf16.msra.mxu0 0
  %715 = vmatpush.bf16.msra.mxu0 0
  %716 = vmatpush.bf16.msra.mxu0 %v433
  %717 = vmatmul.bf16.gmra.mxu0 %v445
  %v718 = vpop.f32.mrf.mxu0
  %v719 = vadd.f32 %v550, %v718
  %v720 = vpop.f32.mrf.mxu0
  %v721 = vadd.f32 %v552, %v720
  %722 = vmatmul.bf16.gmra.mxu0 %v448
  %v723 = vpop.f32.mrf.mxu0
  %v724 = vadd.f32 %v555, %v723
  %v725 = vpop.f32.mrf.mxu0
  %v726 = vadd.f32 %v557, %v725
  %727 = vmatmul.bf16.gmra.mxu0 %v451
  %v728 = vpop.f32.mrf.mxu0
  %v729 = vadd.f32 %v560, %v728
  %v730 = vpop.f32.mrf.mxu0
  %v731 = vadd.f32 %v562, %v730
  %732 = vmatmul.bf16.gmra.mxu0 %v454
  %v733 = vpop.f32.mrf.mxu0
  %v734 = vadd.f32 %v565, %v733
  %v735 = vpop.f32.mrf.mxu0
  %v736 = vadd.f32 %v567, %v735
  %737 = vmatmul.bf16.gmra.mxu0 %v457
  %v738 = vpop.f32.mrf.mxu0
  %v739 = vadd.f32 %v570, %v738
  %v740 = vpop.f32.mrf.mxu0
  %v741 = vadd.f32 %v572, %v740
  %742 = vmatmul.bf16.gmra.mxu0 %v460
  %v743 = vpop.f32.mrf.mxu0
  %v744 = vadd.f32 %v575, %v743
  %v745 = vpop.f32.mrf.mxu0
  %v746 = vadd.f32 %v577, %v745
  %747 = vmatmul.bf16.gmra.mxu0 %v463
  %v748 = vpop.f32.mrf.mxu0
  %v749 = vadd.f32 %v580, %v748
  %v750 = vpop.f32.mrf.mxu0
  %v751 = vadd.f32 %v582, %v750
  %752 = vmatmul.bf16.gmra.mxu0 %v466
  %v753 = vpop.f32.mrf.mxu0
  %v754 = vadd.f32 %v585, %v753
  %v755 = vpop.f32.mrf.mxu0
  %v756 = vadd.f32 %v587, %v755
  %757 = vmatmul.bf16.gmra.mxu0 %v469
  %v758 = vpop.f32.mrf.mxu0
  %v759 = vadd.f32 %v590, %v758
  %v760 = vpop.f32.mrf.mxu0
  %v761 = vadd.f32 %v592, %v760
  %762 = vmatmul.bf16.gmra.mxu0 %v472
  %v763 = vpop.f32.mrf.mxu0
  %v764 = vadd.f32 %v595, %v763
  %v765 = vpop.f32.mrf.mxu0
  %v766 = vadd.f32 %v597, %v765
  %767 = vmatmul.bf16.gmra.mxu0 %v475
  %v768 = vpop.f32.mrf.mxu0
  %v769 = vadd.f32 %v600, %v768
  %v770 = vpop.f32.mrf.mxu0
  %v771 = vadd.f32 %v602, %v770
  %772 = vmatmul.bf16.gmra.mxu0 %v478
  %v773 = vpop.f32.mrf.mxu0
  %v774 = vadd.f32 %v605, %v773
  %v775 = vpop.f32.mrf.mxu0
  %v776 = vadd.f32 %v607, %v775
  %777 = vmatmul.bf16.gmra.mxu0 %v481
  %v778 = vpop.f32.mrf.mxu0
  %v779 = vadd.f32 %v610, %v778
  %v780 = vpop.f32.mrf.mxu0
  %v781 = vadd.f32 %v612, %v780
  %782 = vmatmul.bf16.gmra.mxu0 %v484
  %v783 = vpop.f32.mrf.mxu0
  %v784 = vadd.f32 %v615, %v783
  %v785 = vpop.f32.mrf.mxu0
  %v786 = vadd.f32 %v617, %v785
  %787 = vmatmul.bf16.gmra.mxu0 %v487
  %v788 = vpop.f32.mrf.mxu0
  %v789 = vadd.f32 %v620, %v788
  %v790 = vpop.f32.mrf.mxu0
  %v791 = vadd.f32 %v622, %v790
  %792 = vmatmul.bf16.gmra.mxu0 %v490
  %v793 = vpop.f32.mrf.mxu0
  %v794 = vadd.f32 %v625, %v793
  %v795 = vpop.f32.mrf.mxu0
  %v796 = vadd.f32 %v627, %v795
  %797 = vmatmul.bf16.gmra.mxu0 %v493
  %v798 = vpop.f32.mrf.mxu0
  %v799 = vadd.f32 %v630, %v798
  %v800 = vpop.f32.mrf.mxu0
  %v801 = vadd.f32 %v632, %v800
  %802 = vmatmul.bf16.gmra.mxu0 %v496
  %v803 = vpop.f32.mrf.mxu0
  %v804 = vadd.f32 %v635, %v803
  %v805 = vpop.f32.mrf.mxu0
  %v806 = vadd.f32 %v637, %v805
  %807 = vmatmul.bf16.gmra.mxu0 %v499
  %v808 = vpop.f32.mrf.mxu0
  %v809 = vadd.f32 %v640, %v808
  %v810 = vpop.f32.mrf.mxu0
  %v811 = vadd.f32 %v642, %v810
  %812 = vmatmul.bf16.gmra.mxu0 %v502
  %v813 = vpop.f32.mrf.mxu0
  %v814 = vadd.f32 %v645, %v813
  %v815 = vpop.f32.mrf.mxu0
  %v816 = vadd.f32 %v647, %v815
  %817 = vmatmul.bf16.gmra.mxu0 %v505
  %v818 = vpop.f32.mrf.mxu0
  %v819 = vadd.f32 %v650, %v818
  %v820 = vpop.f32.mrf.mxu0
  %v821 = vadd.f32 %v652, %v820
  %822 = vmatmul.bf16.gmra.mxu0 %v508
  %v823 = vpop.f32.mrf.mxu0
  %v824 = vadd.f32 %v655, %v823
  %v825 = vpop.f32.mrf.mxu0
  %v826 = vadd.f32 %v657, %v825
  %827 = vmatmul.bf16.gmra.mxu0 %v511
  %v828 = vpop.f32.mrf.mxu0
  %v829 = vadd.f32 %v660, %v828
  %v830 = vpop.f32.mrf.mxu0
  %v831 = vadd.f32 %v662, %v830
  %832 = vmatmul.bf16.gmra.mxu0 %v514
  %v833 = vpop.f32.mrf.mxu0
  %v834 = vadd.f32 %v665, %v833
  %v835 = vpop.f32.mrf.mxu0
  %v836 = vadd.f32 %v667, %v835
  %837 = vmatmul.bf16.gmra.mxu0 %v517
  %v838 = vpop.f32.mrf.mxu0
  %v839 = vadd.f32 %v670, %v838
  %v840 = vpop.f32.mrf.mxu0
  %v841 = vadd.f32 %v672, %v840
  %842 = vmatmul.bf16.gmra.mxu0 %v520
  %v843 = vpop.f32.mrf.mxu0
  %v844 = vadd.f32 %v675, %v843
  %v845 = vpop.f32.mrf.mxu0
  %v846 = vadd.f32 %v677, %v845
  %847 = vmatmul.bf16.gmra.mxu0 %v523
  %v848 = vpop.f32.mrf.mxu0
  %v849 = vadd.f32 %v680, %v848
  %v850 = vpop.f32.mrf.mxu0
  %v851 = vadd.f32 %v682, %v850
  %852 = vmatmul.bf16.gmra.mxu0 %v526
  %v853 = vpop.f32.mrf.mxu0
  %v854 = vadd.f32 %v685, %v853
  %v855 = vpop.f32.mrf.mxu0
  %v856 = vadd.f32 %v687, %v855
  %857 = vmatmul.bf16.gmra.mxu0 %v529
  %v858 = vpop.f32.mrf.mxu0
  %v859 = vadd.f32 %v690, %v858
  %v860 = vpop.f32.mrf.mxu0
  %v861 = vadd.f32 %v692, %v860
  %862 = vmatmul.bf16.gmra.mxu0 %v532
  %v863 = vpop.f32.mrf.mxu0
  %v864 = vadd.f32 %v695, %v863
  %v865 = vpop.f32.mrf.mxu0
  %v866 = vadd.f32 %v697, %v865
  %867 = vmatmul.bf16.gmra.mxu0 %v535
  %v868 = vpop.f32.mrf.mxu0
  %v869 = vadd.f32 %v700, %v868
  %v870 = vpop.f32.mrf.mxu0
  %v871 = vadd.f32 %v702, %v870
  %872 = vmatmul.bf16.gmra.mxu0 %v538
  %v873 = vpop.f32.mrf.mxu0
  %v874 = vadd.f32 %v705, %v873
  %v875 = vpop.f32.mrf.mxu0
  %v876 = vadd.f32 %v707, %v875
  %877 = vdwg.mxu0
  %v878 = vxor.u32 %v719, 2147483648
  %v879 = vxor.u32 %v721, 2147483648
  %v880 = vxor.u32 %v724, 2147483648
  %v881 = vxor.u32 %v726, 2147483648
  %v882 = vxor.u32 %v729, 2147483648
  %v883 = vxor.u32 %v731, 2147483648
  %v884 = vxor.u32 %v734, 2147483648
  %v885 = vxor.u32 %v736, 2147483648
  %v886 = vxor.u32 %v739, 2147483648
  %v887 = vxor.u32 %v741, 2147483648
  %v888 = vxor.u32 %v744, 2147483648
  %v889 = vxor.u32 %v746, 2147483648
  %v890 = vxor.u32 %v749, 2147483648
  %v891 = vxor.u32 %v751, 2147483648
  %v892 = vxor.u32 %v754, 2147483648
  %v893 = vxor.u32 %v756, 2147483648
  %v894 = vxor.u32 %v759, 2147483648
  %v895 = vxor.u32 %v761, 2147483648
  %v896 = vxor.u32 %v764, 2147483648
  %v897 = vxor.u32 %v766, 2147483648
  %v898 = vxor.u32 %v769, 2147483648
  %v899 = vxor.u32 %v771, 2147483648
  %v900 = vxor.u32 %v774, 2147483648
  %v901 = vxor.u32 %v776, 2147483648
  %v902 = vxor.u32 %v779, 2147483648
  %v903 = vxor.u32 %v781, 2147483648
  %v904 = vxor.u32 %v784, 2147483648
  %v905 = vxor.u32 %v786, 2147483648
  %v906 = vxor.u32 %v789, 2147483648
  %v907 = vxor.u32 %v791, 2147483648
  %v908 = vxor.u32 %v794, 2147483648
  %v909 = vxor.u32 %v796, 2147483648
  %v910 = vxor.u32 %v799, 2147483648
  %v911 = vxor.u32 %v801, 2147483648
  %v912 = vxor.u32 %v804, 2147483648
  %v913 = vxor.u32 %v806, 2147483648
  %v914 = vxor.u32 %v809, 2147483648
  %v915 = vxor.u32 %v811, 2147483648
  %v916 = vxor.u32 %v814, 2147483648
  %v917 = vxor.u32 %v816, 2147483648
  %v918 = vxor.u32 %v819, 2147483648
  %v919 = vxor.u32 %v821, 2147483648
  %v920 = vxor.u32 %v824, 2147483648
  %v921 = vxor.u32 %v826, 2147483648
  %v922 = vxor.u32 %v829, 2147483648
  %v923 = vxor.u32 %v831, 2147483648
  %v924 = vxor.u32 %v834, 2147483648
  %v925 = vxor.u32 %v836, 2147483648
  %v926 = vxor.u32 %v839, 2147483648
  %v927 = vxor.u32 %v841, 2147483648
  %v928 = vxor.u32 %v844, 2147483648
  %v929 = vxor.u32 %v846, 2147483648
  %v930 = vxor.u32 %v849, 2147483648
  %v931 = vxor.u32 %v851, 2147483648
  %v932 = vxor.u32 %v854, 2147483648
  %v933 = vxor.u32 %v856, 2147483648
  %v934 = vxor.u32 %v859, 2147483648
  %v935 = vxor.u32 %v861, 2147483648
  %v936 = vxor.u32 %v864, 2147483648
  %v937 = vxor.u32 %v866, 2147483648
  %v938 = vxor.u32 %v869, 2147483648
  %v939 = vxor.u32 %v871, 2147483648
  %v940 = vxor.u32 %v874, 2147483648
  %v941 = vxor.u32 %v876, 2147483648
  %v942 = vmul.f32 %v878, 1.442695
  %v943 = vpow.pop %v942
  %v944 = vmul.f32 %v879, 1.442695
  %v945 = vpow.pop %v944
  %v946 = vmul.f32 %v880, 1.442695
  %v947 = vpow.pop %v946
  %v948 = vmul.f32 %v881, 1.442695
  %v949 = vpow.pop %v948
  %v950 = vmul.f32 %v882, 1.442695
  %v951 = vpow.pop %v950
  %v952 = vmul.f32 %v883, 1.442695
  %v953 = vpow.pop %v952
  %v954 = vmul.f32 %v884, 1.442695
  %v955 = vpow.pop %v954
  %v956 = vmul.f32 %v885, 1.442695
  %v957 = vpow.pop %v956
  %v958 = vmul.f32 %v886, 1.442695
  %v959 = vpow.pop %v958
  %v960 = vmul.f32 %v887, 1.442695
  %v961 = vpow.pop %v960
  %v962 = vmul.f32 %v888, 1.442695
  %v963 = vpow.pop %v962
  %v964 = vmul.f32 %v889, 1.442695
  %v965 = vpow.pop %v964
  %v966 = vmul.f32 %v890, 1.442695
  %v967 = vpow.pop %v966
  %v968 = vmul.f32 %v891, 1.442695
  %v969 = vpow.pop %v968
  %v970 = vmul.f32 %v892, 1.442695
  %v971 = vpow.pop %v970
  %v972 = vmul.f32 %v893, 1.442695
  %v973 = vpow.pop %v972
  %v974 = vmul.f32 %v894, 1.442695
  %v975 = vpow.pop %v974
  %v976 = vmul.f32 %v895, 1.442695
  %v977 = vpow.pop %v976
  %v978 = vmul.f32 %v896, 1.442695
  %v979 = vpow.pop %v978
  %v980 = vmul.f32 %v897, 1.442695
  %v981 = vpow.pop %v980
  %v982 = vmul.f32 %v898, 1.442695
  %v983 = vpow.pop %v982
  %v984 = vmul.f32 %v899, 1.442695
  %v985 = vpow.pop %v984
  %v986 = vmul.f32 %v900, 1.442695
  %v987 = vpow.pop %v986
  %v988 = vmul.f32 %v901, 1.442695
  %v989 = vpow.pop %v988
  %v990 = vmul.f32 %v902, 1.442695
  %v991 = vpow.pop %v990
  %v992 = vmul.f32 %v903, 1.442695
  %v993 = vpow.pop %v992
  %v994 = vmul.f32 %v904, 1.442695
  %v995 = vpow.pop %v994
  %v996 = vmul.f32 %v905, 1.442695
  %v997 = vpow.pop %v996
  %v998 = vmul.f32 %v906, 1.442695
  %v999 = vpow.pop %v998
  %v1000 = vmul.f32 %v907, 1.442695
  %v1001 = vpow.pop %v1000
  %v1002 = vmul.f32 %v908, 1.442695
  %v1003 = vpow.pop %v1002
  %v1004 = vmul.f32 %v909, 1.442695
  %v1005 = vpow.pop %v1004
  %v1006 = vmul.f32 %v910, 1.442695
  %v1007 = vpow.pop %v1006
  %v1008 = vmul.f32 %v911, 1.442695
  %v1009 = vpow.pop %v1008
  %v1010 = vmul.f32 %v912, 1.442695
  %v1011 = vpow.pop %v1010
  %v1012 = vmul.f32 %v913, 1.442695
  %v1013 = vpow.pop %v1012
  %v1014 = vmul.f32 %v914, 1.442695
  %v1015 = vpow.pop %v1014
  %v1016 = vmul.f32 %v915, 1.442695
  %v1017 = vpow.pop %v1016
  %v1018 = vmul.f32 %v916, 1.442695
  %v1019 = vpow.pop %v1018
  %v1020 = vmul.f32 %v917, 1.442695
  %v1021 = vpow.pop %v1020
  %v1022 = vmul.f32 %v918, 1.442695
  %v1023 = vpow.pop %v1022
  %v1024 = vmul.f32 %v919, 1.442695
  %v1025 = vpow.pop %v1024
  %v1026 = vmul.f32 %v920, 1.442695
  %v1027 = vpow.pop %v1026
  %v1028 = vmul.f32 %v921, 1.442695
  %v1029 = vpow.pop %v1028
  %v1030 = vmul.f32 %v922, 1.442695
  %v1031 = vpow.pop %v1030
  %v1032 = vmul.f32 %v923, 1.442695
  %v1033 = vpow.pop %v1032
  %v1034 = vmul.f32 %v924, 1.442695
  %v1035 = vpow.pop %v1034
  %v1036 = vmul.f32 %v925, 1.442695
  %v1037 = vpow.pop %v1036
  %v1038 = vmul.f32 %v926, 1.442695
  %v1039 = vpow.pop %v1038
  %v1040 = vmul.f32 %v927, 1.442695
  %v1041 = vpow.pop %v1040
  %v1042 = vmul.f32 %v928, 1.442695
  %v1043 = vpow.pop %v1042
  %v1044 = vmul.f32 %v929, 1.442695
  %v1045 = vpow.pop %v1044
  %v1046 = vmul.f32 %v930, 1.442695
  %v1047 = vpow.pop %v1046
  %v1048 = vmul.f32 %v931, 1.442695
  %v1049 = vpow.pop %v1048
  %v1050 = vmul.f32 %v932, 1.442695
  %v1051 = vpow.pop %v1050
  %v1052 = vmul.f32 %v933, 1.442695
  %v1053 = vpow.pop %v1052
  %v1054 = vmul.f32 %v934, 1.442695
  %v1055 = vpow.pop %v1054
  %v1056 = vmul.f32 %v935, 1.442695
  %v1057 = vpow.pop %v1056
  %v1058 = vmul.f32 %v936, 1.442695
  %v1059 = vpow.pop %v1058
  %v1060 = vmul.f32 %v937, 1.442695
  %v1061 = vpow.pop %v1060
  %v1062 = vmul.f32 %v938, 1.442695
  %v1063 = vpow.pop %v1062
  %v1064 = vmul.f32 %v939, 1.442695
  %v1065 = vpow.pop %v1064
  %v1066 = vmul.f32 %v940, 1.442695
  %v1067 = vpow.pop %v1066
  %v1068 = vmul.f32 %v941, 1.442695
  %v1069 = vpow.pop %v1068
  %v1070 = vadd.f32 %v943, 1.0
  %v1071 = vadd.f32 %v945, 1.0
  %v1072 = vadd.f32 %v947, 1.0
  %v1073 = vadd.f32 %v949, 1.0
  %v1074 = vadd.f32 %v951, 1.0
  %v1075 = vadd.f32 %v953, 1.0
  %v1076 = vadd.f32 %v955, 1.0
  %v1077 = vadd.f32 %v957, 1.0
  %v1078 = vadd.f32 %v959, 1.0
  %v1079 = vadd.f32 %v961, 1.0
  %v1080 = vadd.f32 %v963, 1.0
  %v1081 = vadd.f32 %v965, 1.0
  %v1082 = vadd.f32 %v967, 1.0
  %v1083 = vadd.f32 %v969, 1.0
  %v1084 = vadd.f32 %v971, 1.0
  %v1085 = vadd.f32 %v973, 1.0
  %v1086 = vadd.f32 %v975, 1.0
  %v1087 = vadd.f32 %v977, 1.0
  %v1088 = vadd.f32 %v979, 1.0
  %v1089 = vadd.f32 %v981, 1.0
  %v1090 = vadd.f32 %v983, 1.0
  %v1091 = vadd.f32 %v985, 1.0
  %v1092 = vadd.f32 %v987, 1.0
  %v1093 = vadd.f32 %v989, 1.0
  %v1094 = vadd.f32 %v991, 1.0
  %v1095 = vadd.f32 %v993, 1.0
  %v1096 = vadd.f32 %v995, 1.0
  %v1097 = vadd.f32 %v997, 1.0
  %v1098 = vadd.f32 %v999, 1.0
  %v1099 = vadd.f32 %v1001, 1.0
  %v1100 = vadd.f32 %v1003, 1.0
  %v1101 = vadd.f32 %v1005, 1.0
  %v1102 = vadd.f32 %v1007, 1.0
  %v1103 = vadd.f32 %v1009, 1.0
  %v1104 = vadd.f32 %v1011, 1.0
  %v1105 = vadd.f32 %v1013, 1.0
  %v1106 = vadd.f32 %v1015, 1.0
  %v1107 = vadd.f32 %v1017, 1.0
  %v1108 = vadd.f32 %v1019, 1.0
  %v1109 = vadd.f32 %v1021, 1.0
  %v1110 = vadd.f32 %v1023, 1.0
  %v1111 = vadd.f32 %v1025, 1.0
  %v1112 = vadd.f32 %v1027, 1.0
  %v1113 = vadd.f32 %v1029, 1.0
  %v1114 = vadd.f32 %v1031, 1.0
  %v1115 = vadd.f32 %v1033, 1.0
  %v1116 = vadd.f32 %v1035, 1.0
  %v1117 = vadd.f32 %v1037, 1.0
  %v1118 = vadd.f32 %v1039, 1.0
  %v1119 = vadd.f32 %v1041, 1.0
  %v1120 = vadd.f32 %v1043, 1.0
  %v1121 = vadd.f32 %v1045, 1.0
  %v1122 = vadd.f32 %v1047, 1.0
  %v1123 = vadd.f32 %v1049, 1.0
  %v1124 = vadd.f32 %v1051, 1.0
  %v1125 = vadd.f32 %v1053, 1.0
  %v1126 = vadd.f32 %v1055, 1.0
  %v1127 = vadd.f32 %v1057, 1.0
  %v1128 = vadd.f32 %v1059, 1.0
  %v1129 = vadd.f32 %v1061, 1.0
  %v1130 = vadd.f32 %v1063, 1.0
  %v1131 = vadd.f32 %v1065, 1.0
  %v1132 = vadd.f32 %v1067, 1.0
  %v1133 = vadd.f32 %v1069, 1.0
  %v1134 = vrcp.pop %v1070
  %v1135 = vmul.f32 %v1070, %v1134
  %v1136 = vsub.f32 1.0, %v1135
  %v1137 = vmul.f32 %v1134, %v1136
  %v1138 = vadd.f32 %v1134, %v1137
  %vm1139 = vweird.f32 %v1070
  %vm1140 = vweird.f32 %v1134
  %vm1141 = vmor %vm1139, %vm1140
  %v1142 = vsel %vm1141, %v1134, %v1138
  %v1143 = vand.u32 2147483647, %v1070
  %vm1144 = vcmp.eq.f32.partialorder %v1143, 8.507059e+37
  %v1145 = vand.u32 %v1070, 2147483648
  %v1146 = vor.u32 1.1754944e-38, %v1145
  %v1147 = vsel %vm1144, %v1146, %v1142
  %v1148 = vmul.f32 1.0, %v1147
  %v1149 = vrcp.pop %v1071
  %v1150 = vmul.f32 %v1071, %v1149
  %v1151 = vsub.f32 1.0, %v1150
  %v1152 = vmul.f32 %v1149, %v1151
  %v1153 = vadd.f32 %v1149, %v1152
  %vm1154 = vweird.f32 %v1071
  %vm1155 = vweird.f32 %v1149
  %vm1156 = vmor %vm1154, %vm1155
  %v1157 = vsel %vm1156, %v1149, %v1153
  %v1158 = vand.u32 2147483647, %v1071
  %vm1159 = vcmp.eq.f32.partialorder %v1158, 8.507059e+37
  %v1160 = vand.u32 %v1071, 2147483648
  %v1161 = vor.u32 1.1754944e-38, %v1160
  %v1162 = vsel %vm1159, %v1161, %v1157
  %v1163 = vmul.f32 1.0, %v1162
  %v1164 = vrcp.pop %v1072
  %v1165 = vmul.f32 %v1072, %v1164
  %v1166 = vsub.f32 1.0, %v1165
  %v1167 = vmul.f32 %v1164, %v1166
  %v1168 = vadd.f32 %v1164, %v1167
  %vm1169 = vweird.f32 %v1072
  %vm1170 = vweird.f32 %v1164
  %vm1171 = vmor %vm1169, %vm1170
  %v1172 = vsel %vm1171, %v1164, %v1168
  %v1173 = vand.u32 2147483647, %v1072
  %vm1174 = vcmp.eq.f32.partialorder %v1173, 8.507059e+37
  %v1175 = vand.u32 %v1072, 2147483648
  %v1176 = vor.u32 1.1754944e-38, %v1175
  %v1177 = vsel %vm1174, %v1176, %v1172
  %v1178 = vmul.f32 1.0, %v1177
  %v1179 = vrcp.pop %v1073
  %v1180 = vmul.f32 %v1073, %v1179
  %v1181 = vsub.f32 1.0, %v1180
  %v1182 = vmul.f32 %v1179, %v1181
  %v1183 = vadd.f32 %v1179, %v1182
  %vm1184 = vweird.f32 %v1073
  %vm1185 = vweird.f32 %v1179
  %vm1186 = vmor %vm1184, %vm1185
  %v1187 = vsel %vm1186, %v1179, %v1183
  %v1188 = vand.u32 2147483647, %v1073
  %vm1189 = vcmp.eq.f32.partialorder %v1188, 8.507059e+37
  %v1190 = vand.u32 %v1073, 2147483648
  %v1191 = vor.u32 1.1754944e-38, %v1190
  %v1192 = vsel %vm1189, %v1191, %v1187
  %v1193 = vmul.f32 1.0, %v1192
  %v1194 = vrcp.pop %v1074
  %v1195 = vmul.f32 %v1074, %v1194
  %v1196 = vsub.f32 1.0, %v1195
  %v1197 = vmul.f32 %v1194, %v1196
  %v1198 = vadd.f32 %v1194, %v1197
  %vm1199 = vweird.f32 %v1074
  %vm1200 = vweird.f32 %v1194
  %vm1201 = vmor %vm1199, %vm1200
  %v1202 = vsel %vm1201, %v1194, %v1198
  %v1203 = vand.u32 2147483647, %v1074
  %vm1204 = vcmp.eq.f32.partialorder %v1203, 8.507059e+37
  %v1205 = vand.u32 %v1074, 2147483648
  %v1206 = vor.u32 1.1754944e-38, %v1205
  %v1207 = vsel %vm1204, %v1206, %v1202
  %v1208 = vmul.f32 1.0, %v1207
  %v1209 = vrcp.pop %v1075
  %v1210 = vmul.f32 %v1075, %v1209
  %v1211 = vsub.f32 1.0, %v1210
  %v1212 = vmul.f32 %v1209, %v1211
  %v1213 = vadd.f32 %v1209, %v1212
  %vm1214 = vweird.f32 %v1075
  %vm1215 = vweird.f32 %v1209
  %vm1216 = vmor %vm1214, %vm1215
  %v1217 = vsel %vm1216, %v1209, %v1213
  %v1218 = vand.u32 2147483647, %v1075
  %vm1219 = vcmp.eq.f32.partialorder %v1218, 8.507059e+37
  %v1220 = vand.u32 %v1075, 2147483648
  %v1221 = vor.u32 1.1754944e-38, %v1220
  %v1222 = vsel %vm1219, %v1221, %v1217
  %v1223 = vmul.f32 1.0, %v1222
  %v1224 = vrcp.pop %v1076
  %v1225 = vmul.f32 %v1076, %v1224
  %v1226 = vsub.f32 1.0, %v1225
  %v1227 = vmul.f32 %v1224, %v1226
  %v1228 = vadd.f32 %v1224, %v1227
  %vm1229 = vweird.f32 %v1076
  %vm1230 = vweird.f32 %v1224
  %vm1231 = vmor %vm1229, %vm1230
  %v1232 = vsel %vm1231, %v1224, %v1228
  %v1233 = vand.u32 2147483647, %v1076
  %vm1234 = vcmp.eq.f32.partialorder %v1233, 8.507059e+37
  %v1235 = vand.u32 %v1076, 2147483648
  %v1236 = vor.u32 1.1754944e-38, %v1235
  %v1237 = vsel %vm1234, %v1236, %v1232
  %v1238 = vmul.f32 1.0, %v1237
  %v1239 = vrcp.pop %v1077
  %v1240 = vmul.f32 %v1077, %v1239
  %v1241 = vsub.f32 1.0, %v1240
  %v1242 = vmul.f32 %v1239, %v1241
  %v1243 = vadd.f32 %v1239, %v1242
  %vm1244 = vweird.f32 %v1077
  %vm1245 = vweird.f32 %v1239
  %vm1246 = vmor %vm1244, %vm1245
  %v1247 = vsel %vm1246, %v1239, %v1243
  %v1248 = vand.u32 2147483647, %v1077
  %vm1249 = vcmp.eq.f32.partialorder %v1248, 8.507059e+37
  %v1250 = vand.u32 %v1077, 2147483648
  %v1251 = vor.u32 1.1754944e-38, %v1250
  %v1252 = vsel %vm1249, %v1251, %v1247
  %v1253 = vmul.f32 1.0, %v1252
  %v1254 = vrcp.pop %v1078
  %v1255 = vmul.f32 %v1078, %v1254
  %v1256 = vsub.f32 1.0, %v1255
  %v1257 = vmul.f32 %v1254, %v1256
  %v1258 = vadd.f32 %v1254, %v1257
  %vm1259 = vweird.f32 %v1078
  %vm1260 = vweird.f32 %v1254
  %vm1261 = vmor %vm1259, %vm1260
  %v1262 = vsel %vm1261, %v1254, %v1258
  %v1263 = vand.u32 2147483647, %v1078
  %vm1264 = vcmp.eq.f32.partialorder %v1263, 8.507059e+37
  %v1265 = vand.u32 %v1078, 2147483648
  %v1266 = vor.u32 1.1754944e-38, %v1265
  %v1267 = vsel %vm1264, %v1266, %v1262
  %v1268 = vmul.f32 1.0, %v1267
  %v1269 = vrcp.pop %v1079
  %v1270 = vmul.f32 %v1079, %v1269
  %v1271 = vsub.f32 1.0, %v1270
  %v1272 = vmul.f32 %v1269, %v1271
  %v1273 = vadd.f32 %v1269, %v1272
  %vm1274 = vweird.f32 %v1079
  %vm1275 = vweird.f32 %v1269
  %vm1276 = vmor %vm1274, %vm1275
  %v1277 = vsel %vm1276, %v1269, %v1273
  %v1278 = vand.u32 2147483647, %v1079
  %vm1279 = vcmp.eq.f32.partialorder %v1278, 8.507059e+37
  %v1280 = vand.u32 %v1079, 2147483648
  %v1281 = vor.u32 1.1754944e-38, %v1280
  %v1282 = vsel %vm1279, %v1281, %v1277
  %v1283 = vmul.f32 1.0, %v1282
  %v1284 = vrcp.pop %v1080
  %v1285 = vmul.f32 %v1080, %v1284
  %v1286 = vsub.f32 1.0, %v1285
  %v1287 = vmul.f32 %v1284, %v1286
  %v1288 = vadd.f32 %v1284, %v1287
  %vm1289 = vweird.f32 %v1080
  %vm1290 = vweird.f32 %v1284
  %vm1291 = vmor %vm1289, %vm1290
  %v1292 = vsel %vm1291, %v1284, %v1288
  %v1293 = vand.u32 2147483647, %v1080
  %vm1294 = vcmp.eq.f32.partialorder %v1293, 8.507059e+37
  %v1295 = vand.u32 %v1080, 2147483648
  %v1296 = vor.u32 1.1754944e-38, %v1295
  %v1297 = vsel %vm1294, %v1296, %v1292
  %v1298 = vmul.f32 1.0, %v1297
  %v1299 = vrcp.pop %v1081
  %v1300 = vmul.f32 %v1081, %v1299
  %v1301 = vsub.f32 1.0, %v1300
  %v1302 = vmul.f32 %v1299, %v1301
  %v1303 = vadd.f32 %v1299, %v1302
  %vm1304 = vweird.f32 %v1081
  %vm1305 = vweird.f32 %v1299
  %vm1306 = vmor %vm1304, %vm1305
  %v1307 = vsel %vm1306, %v1299, %v1303
  %v1308 = vand.u32 2147483647, %v1081
  %vm1309 = vcmp.eq.f32.partialorder %v1308, 8.507059e+37
  %v1310 = vand.u32 %v1081, 2147483648
  %v1311 = vor.u32 1.1754944e-38, %v1310
  %v1312 = vsel %vm1309, %v1311, %v1307
  %v1313 = vmul.f32 1.0, %v1312
  %v1314 = vrcp.pop %v1082
  %v1315 = vmul.f32 %v1082, %v1314
  %v1316 = vsub.f32 1.0, %v1315
  %v1317 = vmul.f32 %v1314, %v1316
  %v1318 = vadd.f32 %v1314, %v1317
  %vm1319 = vweird.f32 %v1082
  %vm1320 = vweird.f32 %v1314
  %vm1321 = vmor %vm1319, %vm1320
  %v1322 = vsel %vm1321, %v1314, %v1318
  %v1323 = vand.u32 2147483647, %v1082
  %vm1324 = vcmp.eq.f32.partialorder %v1323, 8.507059e+37
  %v1325 = vand.u32 %v1082, 2147483648
  %v1326 = vor.u32 1.1754944e-38, %v1325
  %v1327 = vsel %vm1324, %v1326, %v1322
  %v1328 = vmul.f32 1.0, %v1327
  %v1329 = vrcp.pop %v1083
  %v1330 = vmul.f32 %v1083, %v1329
  %v1331 = vsub.f32 1.0, %v1330
  %v1332 = vmul.f32 %v1329, %v1331
  %v1333 = vadd.f32 %v1329, %v1332
  %vm1334 = vweird.f32 %v1083
  %vm1335 = vweird.f32 %v1329
  %vm1336 = vmor %vm1334, %vm1335
  %v1337 = vsel %vm1336, %v1329, %v1333
  %v1338 = vand.u32 2147483647, %v1083
  %vm1339 = vcmp.eq.f32.partialorder %v1338, 8.507059e+37
  %v1340 = vand.u32 %v1083, 2147483648
  %v1341 = vor.u32 1.1754944e-38, %v1340
  %v1342 = vsel %vm1339, %v1341, %v1337
  %v1343 = vmul.f32 1.0, %v1342
  %v1344 = vrcp.pop %v1084
  %v1345 = vmul.f32 %v1084, %v1344
  %v1346 = vsub.f32 1.0, %v1345
  %v1347 = vmul.f32 %v1344, %v1346
  %v1348 = vadd.f32 %v1344, %v1347
  %vm1349 = vweird.f32 %v1084
  %vm1350 = vweird.f32 %v1344
  %vm1351 = vmor %vm1349, %vm1350
  %v1352 = vsel %vm1351, %v1344, %v1348
  %v1353 = vand.u32 2147483647, %v1084
  %vm1354 = vcmp.eq.f32.partialorder %v1353, 8.507059e+37
  %v1355 = vand.u32 %v1084, 2147483648
  %v1356 = vor.u32 1.1754944e-38, %v1355
  %v1357 = vsel %vm1354, %v1356, %v1352
  %v1358 = vmul.f32 1.0, %v1357
  %v1359 = vrcp.pop %v1085
  %v1360 = vmul.f32 %v1085, %v1359
  %v1361 = vsub.f32 1.0, %v1360
  %v1362 = vmul.f32 %v1359, %v1361
  %v1363 = vadd.f32 %v1359, %v1362
  %vm1364 = vweird.f32 %v1085
  %vm1365 = vweird.f32 %v1359
  %vm1366 = vmor %vm1364, %vm1365
  %v1367 = vsel %vm1366, %v1359, %v1363
  %v1368 = vand.u32 2147483647, %v1085
  %vm1369 = vcmp.eq.f32.partialorder %v1368, 8.507059e+37
  %v1370 = vand.u32 %v1085, 2147483648
  %v1371 = vor.u32 1.1754944e-38, %v1370
  %v1372 = vsel %vm1369, %v1371, %v1367
  %v1373 = vmul.f32 1.0, %v1372
  %v1374 = vrcp.pop %v1086
  %v1375 = vmul.f32 %v1086, %v1374
  %v1376 = vsub.f32 1.0, %v1375
  %v1377 = vmul.f32 %v1374, %v1376
  %v1378 = vadd.f32 %v1374, %v1377
  %vm1379 = vweird.f32 %v1086
  %vm1380 = vweird.f32 %v1374
  %vm1381 = vmor %vm1379, %vm1380
  %v1382 = vsel %vm1381, %v1374, %v1378
  %v1383 = vand.u32 2147483647, %v1086
  %vm1384 = vcmp.eq.f32.partialorder %v1383, 8.507059e+37
  %v1385 = vand.u32 %v1086, 2147483648
  %v1386 = vor.u32 1.1754944e-38, %v1385
  %v1387 = vsel %vm1384, %v1386, %v1382
  %v1388 = vmul.f32 1.0, %v1387
  %v1389 = vrcp.pop %v1087
  %v1390 = vmul.f32 %v1087, %v1389
  %v1391 = vsub.f32 1.0, %v1390
  %v1392 = vmul.f32 %v1389, %v1391
  %v1393 = vadd.f32 %v1389, %v1392
  %vm1394 = vweird.f32 %v1087
  %vm1395 = vweird.f32 %v1389
  %vm1396 = vmor %vm1394, %vm1395
  %v1397 = vsel %vm1396, %v1389, %v1393
  %v1398 = vand.u32 2147483647, %v1087
  %vm1399 = vcmp.eq.f32.partialorder %v1398, 8.507059e+37
  %v1400 = vand.u32 %v1087, 2147483648
  %v1401 = vor.u32 1.1754944e-38, %v1400
  %v1402 = vsel %vm1399, %v1401, %v1397
  %v1403 = vmul.f32 1.0, %v1402
  %v1404 = vrcp.pop %v1088
  %v1405 = vmul.f32 %v1088, %v1404
  %v1406 = vsub.f32 1.0, %v1405
  %v1407 = vmul.f32 %v1404, %v1406
  %v1408 = vadd.f32 %v1404, %v1407
  %vm1409 = vweird.f32 %v1088
  %vm1410 = vweird.f32 %v1404
  %vm1411 = vmor %vm1409, %vm1410
  %v1412 = vsel %vm1411, %v1404, %v1408
  %v1413 = vand.u32 2147483647, %v1088
  %vm1414 = vcmp.eq.f32.partialorder %v1413, 8.507059e+37
  %v1415 = vand.u32 %v1088, 2147483648
  %v1416 = vor.u32 1.1754944e-38, %v1415
  %v1417 = vsel %vm1414, %v1416, %v1412
  %v1418 = vmul.f32 1.0, %v1417
  %v1419 = vrcp.pop %v1089
  %v1420 = vmul.f32 %v1089, %v1419
  %v1421 = vsub.f32 1.0, %v1420
  %v1422 = vmul.f32 %v1419, %v1421
  %v1423 = vadd.f32 %v1419, %v1422
  %vm1424 = vweird.f32 %v1089
  %vm1425 = vweird.f32 %v1419
  %vm1426 = vmor %vm1424, %vm1425
  %v1427 = vsel %vm1426, %v1419, %v1423
  %v1428 = vand.u32 2147483647, %v1089
  %vm1429 = vcmp.eq.f32.partialorder %v1428, 8.507059e+37
  %v1430 = vand.u32 %v1089, 2147483648
  %v1431 = vor.u32 1.1754944e-38, %v1430
  %v1432 = vsel %vm1429, %v1431, %v1427
  %v1433 = vmul.f32 1.0, %v1432
  %v1434 = vrcp.pop %v1090
  %v1435 = vmul.f32 %v1090, %v1434
  %v1436 = vsub.f32 1.0, %v1435
  %v1437 = vmul.f32 %v1434, %v1436
  %v1438 = vadd.f32 %v1434, %v1437
  %vm1439 = vweird.f32 %v1090
  %vm1440 = vweird.f32 %v1434
  %vm1441 = vmor %vm1439, %vm1440
  %v1442 = vsel %vm1441, %v1434, %v1438
  %v1443 = vand.u32 2147483647, %v1090
  %vm1444 = vcmp.eq.f32.partialorder %v1443, 8.507059e+37
  %v1445 = vand.u32 %v1090, 2147483648
  %v1446 = vor.u32 1.1754944e-38, %v1445
  %v1447 = vsel %vm1444, %v1446, %v1442
  %v1448 = vmul.f32 1.0, %v1447
  %v1449 = vrcp.pop %v1091
  %v1450 = vmul.f32 %v1091, %v1449
  %v1451 = vsub.f32 1.0, %v1450
  %v1452 = vmul.f32 %v1449, %v1451
  %v1453 = vadd.f32 %v1449, %v1452
  %vm1454 = vweird.f32 %v1091
  %vm1455 = vweird.f32 %v1449
  %vm1456 = vmor %vm1454, %vm1455
  %v1457 = vsel %vm1456, %v1449, %v1453
  %v1458 = vand.u32 2147483647, %v1091
  %vm1459 = vcmp.eq.f32.partialorder %v1458, 8.507059e+37
  %v1460 = vand.u32 %v1091, 2147483648
  %v1461 = vor.u32 1.1754944e-38, %v1460
  %v1462 = vsel %vm1459, %v1461, %v1457
  %v1463 = vmul.f32 1.0, %v1462
  %v1464 = vrcp.pop %v1092
  %v1465 = vmul.f32 %v1092, %v1464
  %v1466 = vsub.f32 1.0, %v1465
  %v1467 = vmul.f32 %v1464, %v1466
  %v1468 = vadd.f32 %v1464, %v1467
  %vm1469 = vweird.f32 %v1092
  %vm1470 = vweird.f32 %v1464
  %vm1471 = vmor %vm1469, %vm1470
  %v1472 = vsel %vm1471, %v1464, %v1468
  %v1473 = vand.u32 2147483647, %v1092
  %vm1474 = vcmp.eq.f32.partialorder %v1473, 8.507059e+37
  %v1475 = vand.u32 %v1092, 2147483648
  %v1476 = vor.u32 1.1754944e-38, %v1475
  %v1477 = vsel %vm1474, %v1476, %v1472
  %v1478 = vmul.f32 1.0, %v1477
  %v1479 = vrcp.pop %v1093
  %v1480 = vmul.f32 %v1093, %v1479
  %v1481 = vsub.f32 1.0, %v1480
  %v1482 = vmul.f32 %v1479, %v1481
  %v1483 = vadd.f32 %v1479, %v1482
  %vm1484 = vweird.f32 %v1093
  %vm1485 = vweird.f32 %v1479
  %vm1486 = vmor %vm1484, %vm1485
  %v1487 = vsel %vm1486, %v1479, %v1483
  %v1488 = vand.u32 2147483647, %v1093
  %vm1489 = vcmp.eq.f32.partialorder %v1488, 8.507059e+37
  %v1490 = vand.u32 %v1093, 2147483648
  %v1491 = vor.u32 1.1754944e-38, %v1490
  %v1492 = vsel %vm1489, %v1491, %v1487
  %v1493 = vmul.f32 1.0, %v1492
  %v1494 = vrcp.pop %v1094
  %v1495 = vmul.f32 %v1094, %v1494
  %v1496 = vsub.f32 1.0, %v1495
  %v1497 = vmul.f32 %v1494, %v1496
  %v1498 = vadd.f32 %v1494, %v1497
  %vm1499 = vweird.f32 %v1094
  %vm1500 = vweird.f32 %v1494
  %vm1501 = vmor %vm1499, %vm1500
  %v1502 = vsel %vm1501, %v1494, %v1498
  %v1503 = vand.u32 2147483647, %v1094
  %vm1504 = vcmp.eq.f32.partialorder %v1503, 8.507059e+37
  %v1505 = vand.u32 %v1094, 2147483648
  %v1506 = vor.u32 1.1754944e-38, %v1505
  %v1507 = vsel %vm1504, %v1506, %v1502
  %v1508 = vmul.f32 1.0, %v1507
  %v1509 = vrcp.pop %v1095
  %v1510 = vmul.f32 %v1095, %v1509
  %v1511 = vsub.f32 1.0, %v1510
  %v1512 = vmul.f32 %v1509, %v1511
  %v1513 = vadd.f32 %v1509, %v1512
  %vm1514 = vweird.f32 %v1095
  %vm1515 = vweird.f32 %v1509
  %vm1516 = vmor %vm1514, %vm1515
  %v1517 = vsel %vm1516, %v1509, %v1513
  %v1518 = vand.u32 2147483647, %v1095
  %vm1519 = vcmp.eq.f32.partialorder %v1518, 8.507059e+37
  %v1520 = vand.u32 %v1095, 2147483648
  %v1521 = vor.u32 1.1754944e-38, %v1520
  %v1522 = vsel %vm1519, %v1521, %v1517
  %v1523 = vmul.f32 1.0, %v1522
  %v1524 = vrcp.pop %v1096
  %v1525 = vmul.f32 %v1096, %v1524
  %v1526 = vsub.f32 1.0, %v1525
  %v1527 = vmul.f32 %v1524, %v1526
  %v1528 = vadd.f32 %v1524, %v1527
  %vm1529 = vweird.f32 %v1096
  %vm1530 = vweird.f32 %v1524
  %vm1531 = vmor %vm1529, %vm1530
  %v1532 = vsel %vm1531, %v1524, %v1528
  %v1533 = vand.u32 2147483647, %v1096
  %vm1534 = vcmp.eq.f32.partialorder %v1533, 8.507059e+37
  %v1535 = vand.u32 %v1096, 2147483648
  %v1536 = vor.u32 1.1754944e-38, %v1535
  %v1537 = vsel %vm1534, %v1536, %v1532
  %v1538 = vmul.f32 1.0, %v1537
  %v1539 = vrcp.pop %v1097
  %v1540 = vmul.f32 %v1097, %v1539
  %v1541 = vsub.f32 1.0, %v1540
  %v1542 = vmul.f32 %v1539, %v1541
  %v1543 = vadd.f32 %v1539, %v1542
  %vm1544 = vweird.f32 %v1097
  %vm1545 = vweird.f32 %v1539
  %vm1546 = vmor %vm1544, %vm1545
  %v1547 = vsel %vm1546, %v1539, %v1543
  %v1548 = vand.u32 2147483647, %v1097
  %vm1549 = vcmp.eq.f32.partialorder %v1548, 8.507059e+37
  %v1550 = vand.u32 %v1097, 2147483648
  %v1551 = vor.u32 1.1754944e-38, %v1550
  %v1552 = vsel %vm1549, %v1551, %v1547
  %v1553 = vmul.f32 1.0, %v1552
  %v1554 = vrcp.pop %v1098
  %v1555 = vmul.f32 %v1098, %v1554
  %v1556 = vsub.f32 1.0, %v1555
  %v1557 = vmul.f32 %v1554, %v1556
  %v1558 = vadd.f32 %v1554, %v1557
  %vm1559 = vweird.f32 %v1098
  %vm1560 = vweird.f32 %v1554
  %vm1561 = vmor %vm1559, %vm1560
  %v1562 = vsel %vm1561, %v1554, %v1558
  %v1563 = vand.u32 2147483647, %v1098
  %vm1564 = vcmp.eq.f32.partialorder %v1563, 8.507059e+37
  %v1565 = vand.u32 %v1098, 2147483648
  %v1566 = vor.u32 1.1754944e-38, %v1565
  %v1567 = vsel %vm1564, %v1566, %v1562
  %v1568 = vmul.f32 1.0, %v1567
  %v1569 = vrcp.pop %v1099
  %v1570 = vmul.f32 %v1099, %v1569
  %v1571 = vsub.f32 1.0, %v1570
  %v1572 = vmul.f32 %v1569, %v1571
  %v1573 = vadd.f32 %v1569, %v1572
  %vm1574 = vweird.f32 %v1099
  %vm1575 = vweird.f32 %v1569
  %vm1576 = vmor %vm1574, %vm1575
  %v1577 = vsel %vm1576, %v1569, %v1573
  %v1578 = vand.u32 2147483647, %v1099
  %vm1579 = vcmp.eq.f32.partialorder %v1578, 8.507059e+37
  %v1580 = vand.u32 %v1099, 2147483648
  %v1581 = vor.u32 1.1754944e-38, %v1580
  %v1582 = vsel %vm1579, %v1581, %v1577
  %v1583 = vmul.f32 1.0, %v1582
  %v1584 = vrcp.pop %v1100
  %v1585 = vmul.f32 %v1100, %v1584
  %v1586 = vsub.f32 1.0, %v1585
  %v1587 = vmul.f32 %v1584, %v1586
  %v1588 = vadd.f32 %v1584, %v1587
  %vm1589 = vweird.f32 %v1100
  %vm1590 = vweird.f32 %v1584
  %vm1591 = vmor %vm1589, %vm1590
  %v1592 = vsel %vm1591, %v1584, %v1588
  %v1593 = vand.u32 2147483647, %v1100
  %vm1594 = vcmp.eq.f32.partialorder %v1593, 8.507059e+37
  %v1595 = vand.u32 %v1100, 2147483648
  %v1596 = vor.u32 1.1754944e-38, %v1595
  %v1597 = vsel %vm1594, %v1596, %v1592
  %v1598 = vmul.f32 1.0, %v1597
  %v1599 = vrcp.pop %v1101
  %v1600 = vmul.f32 %v1101, %v1599
  %v1601 = vsub.f32 1.0, %v1600
  %v1602 = vmul.f32 %v1599, %v1601
  %v1603 = vadd.f32 %v1599, %v1602
  %vm1604 = vweird.f32 %v1101
  %vm1605 = vweird.f32 %v1599
  %vm1606 = vmor %vm1604, %vm1605
  %v1607 = vsel %vm1606, %v1599, %v1603
  %v1608 = vand.u32 2147483647, %v1101
  %vm1609 = vcmp.eq.f32.partialorder %v1608, 8.507059e+37
  %v1610 = vand.u32 %v1101, 2147483648
  %v1611 = vor.u32 1.1754944e-38, %v1610
  %v1612 = vsel %vm1609, %v1611, %v1607
  %v1613 = vmul.f32 1.0, %v1612
  %v1614 = vrcp.pop %v1102
  %v1615 = vmul.f32 %v1102, %v1614
  %v1616 = vsub.f32 1.0, %v1615
  %v1617 = vmul.f32 %v1614, %v1616
  %v1618 = vadd.f32 %v1614, %v1617
  %vm1619 = vweird.f32 %v1102
  %vm1620 = vweird.f32 %v1614
  %vm1621 = vmor %vm1619, %vm1620
  %v1622 = vsel %vm1621, %v1614, %v1618
  %v1623 = vand.u32 2147483647, %v1102
  %vm1624 = vcmp.eq.f32.partialorder %v1623, 8.507059e+37
  %v1625 = vand.u32 %v1102, 2147483648
  %v1626 = vor.u32 1.1754944e-38, %v1625
  %v1627 = vsel %vm1624, %v1626, %v1622
  %v1628 = vmul.f32 1.0, %v1627
  %v1629 = vrcp.pop %v1103
  %v1630 = vmul.f32 %v1103, %v1629
  %v1631 = vsub.f32 1.0, %v1630
  %v1632 = vmul.f32 %v1629, %v1631
  %v1633 = vadd.f32 %v1629, %v1632
  %vm1634 = vweird.f32 %v1103
  %vm1635 = vweird.f32 %v1629
  %vm1636 = vmor %vm1634, %vm1635
  %v1637 = vsel %vm1636, %v1629, %v1633
  %v1638 = vand.u32 2147483647, %v1103
  %vm1639 = vcmp.eq.f32.partialorder %v1638, 8.507059e+37
  %v1640 = vand.u32 %v1103, 2147483648
  %v1641 = vor.u32 1.1754944e-38, %v1640
  %v1642 = vsel %vm1639, %v1641, %v1637
  %v1643 = vmul.f32 1.0, %v1642
  %v1644 = vrcp.pop %v1104
  %v1645 = vmul.f32 %v1104, %v1644
  %v1646 = vsub.f32 1.0, %v1645
  %v1647 = vmul.f32 %v1644, %v1646
  %v1648 = vadd.f32 %v1644, %v1647
  %vm1649 = vweird.f32 %v1104
  %vm1650 = vweird.f32 %v1644
  %vm1651 = vmor %vm1649, %vm1650
  %v1652 = vsel %vm1651, %v1644, %v1648
  %v1653 = vand.u32 2147483647, %v1104
  %vm1654 = vcmp.eq.f32.partialorder %v1653, 8.507059e+37
  %v1655 = vand.u32 %v1104, 2147483648
  %v1656 = vor.u32 1.1754944e-38, %v1655
  %v1657 = vsel %vm1654, %v1656, %v1652
  %v1658 = vmul.f32 1.0, %v1657
  %v1659 = vrcp.pop %v1105
  %v1660 = vmul.f32 %v1105, %v1659
  %v1661 = vsub.f32 1.0, %v1660
  %v1662 = vmul.f32 %v1659, %v1661
  %v1663 = vadd.f32 %v1659, %v1662
  %vm1664 = vweird.f32 %v1105
  %vm1665 = vweird.f32 %v1659
  %vm1666 = vmor %vm1664, %vm1665
  %v1667 = vsel %vm1666, %v1659, %v1663
  %v1668 = vand.u32 2147483647, %v1105
  %vm1669 = vcmp.eq.f32.partialorder %v1668, 8.507059e+37
  %v1670 = vand.u32 %v1105, 2147483648
  %v1671 = vor.u32 1.1754944e-38, %v1670
  %v1672 = vsel %vm1669, %v1671, %v1667
  %v1673 = vmul.f32 1.0, %v1672
  %v1674 = vrcp.pop %v1106
  %v1675 = vmul.f32 %v1106, %v1674
  %v1676 = vsub.f32 1.0, %v1675
  %v1677 = vmul.f32 %v1674, %v1676
  %v1678 = vadd.f32 %v1674, %v1677
  %vm1679 = vweird.f32 %v1106
  %vm1680 = vweird.f32 %v1674
  %vm1681 = vmor %vm1679, %vm1680
  %v1682 = vsel %vm1681, %v1674, %v1678
  %v1683 = vand.u32 2147483647, %v1106
  %vm1684 = vcmp.eq.f32.partialorder %v1683, 8.507059e+37
  %v1685 = vand.u32 %v1106, 2147483648
  %v1686 = vor.u32 1.1754944e-38, %v1685
  %v1687 = vsel %vm1684, %v1686, %v1682
  %v1688 = vmul.f32 1.0, %v1687
  %v1689 = vrcp.pop %v1107
  %v1690 = vmul.f32 %v1107, %v1689
  %v1691 = vsub.f32 1.0, %v1690
  %v1692 = vmul.f32 %v1689, %v1691
  %v1693 = vadd.f32 %v1689, %v1692
  %vm1694 = vweird.f32 %v1107
  %vm1695 = vweird.f32 %v1689
  %vm1696 = vmor %vm1694, %vm1695
  %v1697 = vsel %vm1696, %v1689, %v1693
  %v1698 = vand.u32 2147483647, %v1107
  %vm1699 = vcmp.eq.f32.partialorder %v1698, 8.507059e+37
  %v1700 = vand.u32 %v1107, 2147483648
  %v1701 = vor.u32 1.1754944e-38, %v1700
  %v1702 = vsel %vm1699, %v1701, %v1697
  %v1703 = vmul.f32 1.0, %v1702
  %v1704 = vrcp.pop %v1108
  %v1705 = vmul.f32 %v1108, %v1704
  %v1706 = vsub.f32 1.0, %v1705
  %v1707 = vmul.f32 %v1704, %v1706
  %v1708 = vadd.f32 %v1704, %v1707
  %vm1709 = vweird.f32 %v1108
  %vm1710 = vweird.f32 %v1704
  %vm1711 = vmor %vm1709, %vm1710
  %v1712 = vsel %vm1711, %v1704, %v1708
  %v1713 = vand.u32 2147483647, %v1108
  %vm1714 = vcmp.eq.f32.partialorder %v1713, 8.507059e+37
  %v1715 = vand.u32 %v1108, 2147483648
  %v1716 = vor.u32 1.1754944e-38, %v1715
  %v1717 = vsel %vm1714, %v1716, %v1712
  %v1718 = vmul.f32 1.0, %v1717
  %v1719 = vrcp.pop %v1109
  %v1720 = vmul.f32 %v1109, %v1719
  %v1721 = vsub.f32 1.0, %v1720
  %v1722 = vmul.f32 %v1719, %v1721
  %v1723 = vadd.f32 %v1719, %v1722
  %vm1724 = vweird.f32 %v1109
  %vm1725 = vweird.f32 %v1719
  %vm1726 = vmor %vm1724, %vm1725
  %v1727 = vsel %vm1726, %v1719, %v1723
  %v1728 = vand.u32 2147483647, %v1109
  %vm1729 = vcmp.eq.f32.partialorder %v1728, 8.507059e+37
  %v1730 = vand.u32 %v1109, 2147483648
  %v1731 = vor.u32 1.1754944e-38, %v1730
  %v1732 = vsel %vm1729, %v1731, %v1727
  %v1733 = vmul.f32 1.0, %v1732
  %v1734 = vrcp.pop %v1110
  %v1735 = vmul.f32 %v1110, %v1734
  %v1736 = vsub.f32 1.0, %v1735
  %v1737 = vmul.f32 %v1734, %v1736
  %v1738 = vadd.f32 %v1734, %v1737
  %vm1739 = vweird.f32 %v1110
  %vm1740 = vweird.f32 %v1734
  %vm1741 = vmor %vm1739, %vm1740
  %v1742 = vsel %vm1741, %v1734, %v1738
  %v1743 = vand.u32 2147483647, %v1110
  %vm1744 = vcmp.eq.f32.partialorder %v1743, 8.507059e+37
  %v1745 = vand.u32 %v1110, 2147483648
  %v1746 = vor.u32 1.1754944e-38, %v1745
  %v1747 = vsel %vm1744, %v1746, %v1742
  %v1748 = vmul.f32 1.0, %v1747
  %v1749 = vrcp.pop %v1111
  %v1750 = vmul.f32 %v1111, %v1749
  %v1751 = vsub.f32 1.0, %v1750
  %v1752 = vmul.f32 %v1749, %v1751
  %v1753 = vadd.f32 %v1749, %v1752
  %vm1754 = vweird.f32 %v1111
  %vm1755 = vweird.f32 %v1749
  %vm1756 = vmor %vm1754, %vm1755
  %v1757 = vsel %vm1756, %v1749, %v1753
  %v1758 = vand.u32 2147483647, %v1111
  %vm1759 = vcmp.eq.f32.partialorder %v1758, 8.507059e+37
  %v1760 = vand.u32 %v1111, 2147483648
  %v1761 = vor.u32 1.1754944e-38, %v1760
  %v1762 = vsel %vm1759, %v1761, %v1757
  %v1763 = vmul.f32 1.0, %v1762
  %v1764 = vrcp.pop %v1112
  %v1765 = vmul.f32 %v1112, %v1764
  %v1766 = vsub.f32 1.0, %v1765
  %v1767 = vmul.f32 %v1764, %v1766
  %v1768 = vadd.f32 %v1764, %v1767
  %vm1769 = vweird.f32 %v1112
  %vm1770 = vweird.f32 %v1764
  %vm1771 = vmor %vm1769, %vm1770
  %v1772 = vsel %vm1771, %v1764, %v1768
  %v1773 = vand.u32 2147483647, %v1112
  %vm1774 = vcmp.eq.f32.partialorder %v1773, 8.507059e+37
  %v1775 = vand.u32 %v1112, 2147483648
  %v1776 = vor.u32 1.1754944e-38, %v1775
  %v1777 = vsel %vm1774, %v1776, %v1772
  %v1778 = vmul.f32 1.0, %v1777
  %v1779 = vrcp.pop %v1113
  %v1780 = vmul.f32 %v1113, %v1779
  %v1781 = vsub.f32 1.0, %v1780
  %v1782 = vmul.f32 %v1779, %v1781
  %v1783 = vadd.f32 %v1779, %v1782
  %vm1784 = vweird.f32 %v1113
  %vm1785 = vweird.f32 %v1779
  %vm1786 = vmor %vm1784, %vm1785
  %v1787 = vsel %vm1786, %v1779, %v1783
  %v1788 = vand.u32 2147483647, %v1113
  %vm1789 = vcmp.eq.f32.partialorder %v1788, 8.507059e+37
  %v1790 = vand.u32 %v1113, 2147483648
  %v1791 = vor.u32 1.1754944e-38, %v1790
  %v1792 = vsel %vm1789, %v1791, %v1787
  %v1793 = vmul.f32 1.0, %v1792
  %v1794 = vrcp.pop %v1114
  %v1795 = vmul.f32 %v1114, %v1794
  %v1796 = vsub.f32 1.0, %v1795
  %v1797 = vmul.f32 %v1794, %v1796
  %v1798 = vadd.f32 %v1794, %v1797
  %vm1799 = vweird.f32 %v1114
  %vm1800 = vweird.f32 %v1794
  %vm1801 = vmor %vm1799, %vm1800
  %v1802 = vsel %vm1801, %v1794, %v1798
  %v1803 = vand.u32 2147483647, %v1114
  %vm1804 = vcmp.eq.f32.partialorder %v1803, 8.507059e+37
  %v1805 = vand.u32 %v1114, 2147483648
  %v1806 = vor.u32 1.1754944e-38, %v1805
  %v1807 = vsel %vm1804, %v1806, %v1802
  %v1808 = vmul.f32 1.0, %v1807
  %v1809 = vrcp.pop %v1115
  %v1810 = vmul.f32 %v1115, %v1809
  %v1811 = vsub.f32 1.0, %v1810
  %v1812 = vmul.f32 %v1809, %v1811
  %v1813 = vadd.f32 %v1809, %v1812
  %vm1814 = vweird.f32 %v1115
  %vm1815 = vweird.f32 %v1809
  %vm1816 = vmor %vm1814, %vm1815
  %v1817 = vsel %vm1816, %v1809, %v1813
  %v1818 = vand.u32 2147483647, %v1115
  %vm1819 = vcmp.eq.f32.partialorder %v1818, 8.507059e+37
  %v1820 = vand.u32 %v1115, 2147483648
  %v1821 = vor.u32 1.1754944e-38, %v1820
  %v1822 = vsel %vm1819, %v1821, %v1817
  %v1823 = vmul.f32 1.0, %v1822
  %v1824 = vrcp.pop %v1116
  %v1825 = vmul.f32 %v1116, %v1824
  %v1826 = vsub.f32 1.0, %v1825
  %v1827 = vmul.f32 %v1824, %v1826
  %v1828 = vadd.f32 %v1824, %v1827
  %vm1829 = vweird.f32 %v1116
  %vm1830 = vweird.f32 %v1824
  %vm1831 = vmor %vm1829, %vm1830
  %v1832 = vsel %vm1831, %v1824, %v1828
  %v1833 = vand.u32 2147483647, %v1116
  %vm1834 = vcmp.eq.f32.partialorder %v1833, 8.507059e+37
  %v1835 = vand.u32 %v1116, 2147483648
  %v1836 = vor.u32 1.1754944e-38, %v1835
  %v1837 = vsel %vm1834, %v1836, %v1832
  %v1838 = vmul.f32 1.0, %v1837
  %v1839 = vrcp.pop %v1117
  %v1840 = vmul.f32 %v1117, %v1839
  %v1841 = vsub.f32 1.0, %v1840
  %v1842 = vmul.f32 %v1839, %v1841
  %v1843 = vadd.f32 %v1839, %v1842
  %vm1844 = vweird.f32 %v1117
  %vm1845 = vweird.f32 %v1839
  %vm1846 = vmor %vm1844, %vm1845
  %v1847 = vsel %vm1846, %v1839, %v1843
  %v1848 = vand.u32 2147483647, %v1117
  %vm1849 = vcmp.eq.f32.partialorder %v1848, 8.507059e+37
  %v1850 = vand.u32 %v1117, 2147483648
  %v1851 = vor.u32 1.1754944e-38, %v1850
  %v1852 = vsel %vm1849, %v1851, %v1847
  %v1853 = vmul.f32 1.0, %v1852
  %v1854 = vrcp.pop %v1118
  %v1855 = vmul.f32 %v1118, %v1854
  %v1856 = vsub.f32 1.0, %v1855
  %v1857 = vmul.f32 %v1854, %v1856
  %v1858 = vadd.f32 %v1854, %v1857
  %vm1859 = vweird.f32 %v1118
  %vm1860 = vweird.f32 %v1854
  %vm1861 = vmor %vm1859, %vm1860
  %v1862 = vsel %vm1861, %v1854, %v1858
  %v1863 = vand.u32 2147483647, %v1118
  %vm1864 = vcmp.eq.f32.partialorder %v1863, 8.507059e+37
  %v1865 = vand.u32 %v1118, 2147483648
  %v1866 = vor.u32 1.1754944e-38, %v1865
  %v1867 = vsel %vm1864, %v1866, %v1862
  %v1868 = vmul.f32 1.0, %v1867
  %v1869 = vrcp.pop %v1119
  %v1870 = vmul.f32 %v1119, %v1869
  %v1871 = vsub.f32 1.0, %v1870
  %v1872 = vmul.f32 %v1869, %v1871
  %v1873 = vadd.f32 %v1869, %v1872
  %vm1874 = vweird.f32 %v1119
  %vm1875 = vweird.f32 %v1869
  %vm1876 = vmor %vm1874, %vm1875
  %v1877 = vsel %vm1876, %v1869, %v1873
  %v1878 = vand.u32 2147483647, %v1119
  %vm1879 = vcmp.eq.f32.partialorder %v1878, 8.507059e+37
  %v1880 = vand.u32 %v1119, 2147483648
  %v1881 = vor.u32 1.1754944e-38, %v1880
  %v1882 = vsel %vm1879, %v1881, %v1877
  %v1883 = vmul.f32 1.0, %v1882
  %v1884 = vrcp.pop %v1120
  %v1885 = vmul.f32 %v1120, %v1884
  %v1886 = vsub.f32 1.0, %v1885
  %v1887 = vmul.f32 %v1884, %v1886
  %v1888 = vadd.f32 %v1884, %v1887
  %vm1889 = vweird.f32 %v1120
  %vm1890 = vweird.f32 %v1884
  %vm1891 = vmor %vm1889, %vm1890
  %v1892 = vsel %vm1891, %v1884, %v1888
  %v1893 = vand.u32 2147483647, %v1120
  %vm1894 = vcmp.eq.f32.partialorder %v1893, 8.507059e+37
  %v1895 = vand.u32 %v1120, 2147483648
  %v1896 = vor.u32 1.1754944e-38, %v1895
  %v1897 = vsel %vm1894, %v1896, %v1892
  %v1898 = vmul.f32 1.0, %v1897
  %v1899 = vrcp.pop %v1121
  %v1900 = vmul.f32 %v1121, %v1899
  %v1901 = vsub.f32 1.0, %v1900
  %v1902 = vmul.f32 %v1899, %v1901
  %v1903 = vadd.f32 %v1899, %v1902
  %vm1904 = vweird.f32 %v1121
  %vm1905 = vweird.f32 %v1899
  %vm1906 = vmor %vm1904, %vm1905
  %v1907 = vsel %vm1906, %v1899, %v1903
  %v1908 = vand.u32 2147483647, %v1121
  %vm1909 = vcmp.eq.f32.partialorder %v1908, 8.507059e+37
  %v1910 = vand.u32 %v1121, 2147483648
  %v1911 = vor.u32 1.1754944e-38, %v1910
  %v1912 = vsel %vm1909, %v1911, %v1907
  %v1913 = vmul.f32 1.0, %v1912
  %v1914 = vrcp.pop %v1122
  %v1915 = vmul.f32 %v1122, %v1914
  %v1916 = vsub.f32 1.0, %v1915
  %v1917 = vmul.f32 %v1914, %v1916
  %v1918 = vadd.f32 %v1914, %v1917
  %vm1919 = vweird.f32 %v1122
  %vm1920 = vweird.f32 %v1914
  %vm1921 = vmor %vm1919, %vm1920
  %v1922 = vsel %vm1921, %v1914, %v1918
  %v1923 = vand.u32 2147483647, %v1122
  %vm1924 = vcmp.eq.f32.partialorder %v1923, 8.507059e+37
  %v1925 = vand.u32 %v1122, 2147483648
  %v1926 = vor.u32 1.1754944e-38, %v1925
  %v1927 = vsel %vm1924, %v1926, %v1922
  %v1928 = vmul.f32 1.0, %v1927
  %v1929 = vrcp.pop %v1123
  %v1930 = vmul.f32 %v1123, %v1929
  %v1931 = vsub.f32 1.0, %v1930
  %v1932 = vmul.f32 %v1929, %v1931
  %v1933 = vadd.f32 %v1929, %v1932
  %vm1934 = vweird.f32 %v1123
  %vm1935 = vweird.f32 %v1929
  %vm1936 = vmor %vm1934, %vm1935
  %v1937 = vsel %vm1936, %v1929, %v1933
  %v1938 = vand.u32 2147483647, %v1123
  %vm1939 = vcmp.eq.f32.partialorder %v1938, 8.507059e+37
  %v1940 = vand.u32 %v1123, 2147483648
  %v1941 = vor.u32 1.1754944e-38, %v1940
  %v1942 = vsel %vm1939, %v1941, %v1937
  %v1943 = vmul.f32 1.0, %v1942
  %v1944 = vrcp.pop %v1124
  %v1945 = vmul.f32 %v1124, %v1944
  %v1946 = vsub.f32 1.0, %v1945
  %v1947 = vmul.f32 %v1944, %v1946
  %v1948 = vadd.f32 %v1944, %v1947
  %vm1949 = vweird.f32 %v1124
  %vm1950 = vweird.f32 %v1944
  %vm1951 = vmor %vm1949, %vm1950
  %v1952 = vsel %vm1951, %v1944, %v1948
  %v1953 = vand.u32 2147483647, %v1124
  %vm1954 = vcmp.eq.f32.partialorder %v1953, 8.507059e+37
  %v1955 = vand.u32 %v1124, 2147483648
  %v1956 = vor.u32 1.1754944e-38, %v1955
  %v1957 = vsel %vm1954, %v1956, %v1952
  %v1958 = vmul.f32 1.0, %v1957
  %v1959 = vrcp.pop %v1125
  %v1960 = vmul.f32 %v1125, %v1959
  %v1961 = vsub.f32 1.0, %v1960
  %v1962 = vmul.f32 %v1959, %v1961
  %v1963 = vadd.f32 %v1959, %v1962
  %vm1964 = vweird.f32 %v1125
  %vm1965 = vweird.f32 %v1959
  %vm1966 = vmor %vm1964, %vm1965
  %v1967 = vsel %vm1966, %v1959, %v1963
  %v1968 = vand.u32 2147483647, %v1125
  %vm1969 = vcmp.eq.f32.partialorder %v1968, 8.507059e+37
  %v1970 = vand.u32 %v1125, 2147483648
  %v1971 = vor.u32 1.1754944e-38, %v1970
  %v1972 = vsel %vm1969, %v1971, %v1967
  %v1973 = vmul.f32 1.0, %v1972
  %v1974 = vrcp.pop %v1126
  %v1975 = vmul.f32 %v1126, %v1974
  %v1976 = vsub.f32 1.0, %v1975
  %v1977 = vmul.f32 %v1974, %v1976
  %v1978 = vadd.f32 %v1974, %v1977
  %vm1979 = vweird.f32 %v1126
  %vm1980 = vweird.f32 %v1974
  %vm1981 = vmor %vm1979, %vm1980
  %v1982 = vsel %vm1981, %v1974, %v1978
  %v1983 = vand.u32 2147483647, %v1126
  %vm1984 = vcmp.eq.f32.partialorder %v1983, 8.507059e+37
  %v1985 = vand.u32 %v1126, 2147483648
  %v1986 = vor.u32 1.1754944e-38, %v1985
  %v1987 = vsel %vm1984, %v1986, %v1982
  %v1988 = vmul.f32 1.0, %v1987
  %v1989 = vrcp.pop %v1127
  %v1990 = vmul.f32 %v1127, %v1989
  %v1991 = vsub.f32 1.0, %v1990
  %v1992 = vmul.f32 %v1989, %v1991
  %v1993 = vadd.f32 %v1989, %v1992
  %vm1994 = vweird.f32 %v1127
  %vm1995 = vweird.f32 %v1989
  %vm1996 = vmor %vm1994, %vm1995
  %v1997 = vsel %vm1996, %v1989, %v1993
  %v1998 = vand.u32 2147483647, %v1127
  %vm1999 = vcmp.eq.f32.partialorder %v1998, 8.507059e+37
  %v2000 = vand.u32 %v1127, 2147483648
  %v2001 = vor.u32 1.1754944e-38, %v2000
  %v2002 = vsel %vm1999, %v2001, %v1997
  %v2003 = vmul.f32 1.0, %v2002
  %v2004 = vrcp.pop %v1128
  %v2005 = vmul.f32 %v1128, %v2004
  %v2006 = vsub.f32 1.0, %v2005
  %v2007 = vmul.f32 %v2004, %v2006
  %v2008 = vadd.f32 %v2004, %v2007
  %vm2009 = vweird.f32 %v1128
  %vm2010 = vweird.f32 %v2004
  %vm2011 = vmor %vm2009, %vm2010
  %v2012 = vsel %vm2011, %v2004, %v2008
  %v2013 = vand.u32 2147483647, %v1128
  %vm2014 = vcmp.eq.f32.partialorder %v2013, 8.507059e+37
  %v2015 = vand.u32 %v1128, 2147483648
  %v2016 = vor.u32 1.1754944e-38, %v2015
  %v2017 = vsel %vm2014, %v2016, %v2012
  %v2018 = vmul.f32 1.0, %v2017
  %v2019 = vrcp.pop %v1129
  %v2020 = vmul.f32 %v1129, %v2019
  %v2021 = vsub.f32 1.0, %v2020
  %v2022 = vmul.f32 %v2019, %v2021
  %v2023 = vadd.f32 %v2019, %v2022
  %vm2024 = vweird.f32 %v1129
  %vm2025 = vweird.f32 %v2019
  %vm2026 = vmor %vm2024, %vm2025
  %v2027 = vsel %vm2026, %v2019, %v2023
  %v2028 = vand.u32 2147483647, %v1129
  %vm2029 = vcmp.eq.f32.partialorder %v2028, 8.507059e+37
  %v2030 = vand.u32 %v1129, 2147483648
  %v2031 = vor.u32 1.1754944e-38, %v2030
  %v2032 = vsel %vm2029, %v2031, %v2027
  %v2033 = vmul.f32 1.0, %v2032
  %v2034 = vrcp.pop %v1130
  %v2035 = vmul.f32 %v1130, %v2034
  %v2036 = vsub.f32 1.0, %v2035
  %v2037 = vmul.f32 %v2034, %v2036
  %v2038 = vadd.f32 %v2034, %v2037
  %vm2039 = vweird.f32 %v1130
  %vm2040 = vweird.f32 %v2034
  %vm2041 = vmor %vm2039, %vm2040
  %v2042 = vsel %vm2041, %v2034, %v2038
  %v2043 = vand.u32 2147483647, %v1130
  %vm2044 = vcmp.eq.f32.partialorder %v2043, 8.507059e+37
  %v2045 = vand.u32 %v1130, 2147483648
  %v2046 = vor.u32 1.1754944e-38, %v2045
  %v2047 = vsel %vm2044, %v2046, %v2042
  %v2048 = vmul.f32 1.0, %v2047
  %v2049 = vrcp.pop %v1131
  %v2050 = vmul.f32 %v1131, %v2049
  %v2051 = vsub.f32 1.0, %v2050
  %v2052 = vmul.f32 %v2049, %v2051
  %v2053 = vadd.f32 %v2049, %v2052
  %vm2054 = vweird.f32 %v1131
  %vm2055 = vweird.f32 %v2049
  %vm2056 = vmor %vm2054, %vm2055
  %v2057 = vsel %vm2056, %v2049, %v2053
  %v2058 = vand.u32 2147483647, %v1131
  %vm2059 = vcmp.eq.f32.partialorder %v2058, 8.507059e+37
  %v2060 = vand.u32 %v1131, 2147483648
  %v2061 = vor.u32 1.1754944e-38, %v2060
  %v2062 = vsel %vm2059, %v2061, %v2057
  %v2063 = vmul.f32 1.0, %v2062
  %v2064 = vrcp.pop %v1132
  %v2065 = vmul.f32 %v1132, %v2064
  %v2066 = vsub.f32 1.0, %v2065
  %v2067 = vmul.f32 %v2064, %v2066
  %v2068 = vadd.f32 %v2064, %v2067
  %vm2069 = vweird.f32 %v1132
  %vm2070 = vweird.f32 %v2064
  %vm2071 = vmor %vm2069, %vm2070
  %v2072 = vsel %vm2071, %v2064, %v2068
  %v2073 = vand.u32 2147483647, %v1132
  %vm2074 = vcmp.eq.f32.partialorder %v2073, 8.507059e+37
  %v2075 = vand.u32 %v1132, 2147483648
  %v2076 = vor.u32 1.1754944e-38, %v2075
  %v2077 = vsel %vm2074, %v2076, %v2072
  %v2078 = vmul.f32 1.0, %v2077
  %v2079 = vrcp.pop %v1133
  %v2080 = vmul.f32 %v1133, %v2079
  %v2081 = vsub.f32 1.0, %v2080
  %v2082 = vmul.f32 %v2079, %v2081
  %v2083 = vadd.f32 %v2079, %v2082
  %vm2084 = vweird.f32 %v1133
  %vm2085 = vweird.f32 %v2079
  %vm2086 = vmor %vm2084, %vm2085
  %v2087 = vsel %vm2086, %v2079, %v2083
  %v2088 = vand.u32 2147483647, %v1133
  %vm2089 = vcmp.eq.f32.partialorder %v2088, 8.507059e+37
  %v2090 = vand.u32 %v1133, 2147483648
  %v2091 = vor.u32 1.1754944e-38, %v2090
  %v2092 = vsel %vm2089, %v2091, %v2087
  %v2093 = vmul.f32 1.0, %v2092
  %vm2094 = vcmask 31744
  %2095 = vst.msk [vmem:[%s3] sm:$0xff] %vm2094, %v1148
  %2096 = vst.msk [vmem:[%s3 + $0x8] sm:$0xff] %vm2094, %v1163
  %2097 = vst.msk [vmem:[%s3 + $0x10] sm:$0xff] %vm2094, %v1178
  %2098 = vst.msk [vmem:[%s3 + $0x18] sm:$0xff] %vm2094, %v1193
  %2099 = vst.msk [vmem:[%s3 + $0x20] sm:$0xff] %vm2094, %v1208
  %2100 = vst.msk [vmem:[%s3 + $0x28] sm:$0xff] %vm2094, %v1223
  %2101 = vst.msk [vmem:[%s3 + $0x30] sm:$0xff] %vm2094, %v1238
  %2102 = vst.msk [vmem:[%s3 + $0x38] sm:$0xff] %vm2094, %v1253
  %2103 = vst.msk [vmem:[%s3 + $0x40] sm:$0xff] %vm2094, %v1268
  %2104 = vst.msk [vmem:[%s3 + $0x48] sm:$0xff] %vm2094, %v1283
  %2105 = vst.msk [vmem:[%s3 + $0x50] sm:$0xff] %vm2094, %v1298
  %2106 = vst.msk [vmem:[%s3 + $0x58] sm:$0xff] %vm2094, %v1313
  %2107 = vst.msk [vmem:[%s3 + $0x60] sm:$0xff] %vm2094, %v1328
  %2108 = vst.msk [vmem:[%s3 + $0x68] sm:$0xff] %vm2094, %v1343
  %2109 = vst.msk [vmem:[%s3 + $0x70] sm:$0xff] %vm2094, %v1358
  %2110 = vst.msk [vmem:[%s3 + $0x78] sm:$0xff] %vm2094, %v1373
  %2111 = vst.msk [vmem:[%s3 + $0x80] sm:$0xff] %vm2094, %v1388
  %2112 = vst.msk [vmem:[%s3 + $0x88] sm:$0xff] %vm2094, %v1403
  %2113 = vst.msk [vmem:[%s3 + $0x90] sm:$0xff] %vm2094, %v1418
  %2114 = vst.msk [vmem:[%s3 + $0x98] sm:$0xff] %vm2094, %v1433
  %2115 = vst.msk [vmem:[%s3 + $0xa0] sm:$0xff] %vm2094, %v1448
  %2116 = vst.msk [vmem:[%s3 + $0xa8] sm:$0xff] %vm2094, %v1463
  %2117 = vst.msk [vmem:[%s3 + $0xb0] sm:$0xff] %vm2094, %v1478
  %2118 = vst.msk [vmem:[%s3 + $0xb8] sm:$0xff] %vm2094, %v1493
  %2119 = vst.msk [vmem:[%s3 + $0xc0] sm:$0xff] %vm2094, %v1508
  %2120 = vst.msk [vmem:[%s3 + $0xc8] sm:$0xff] %vm2094, %v1523
  %2121 = vst.msk [vmem:[%s3 + $0xd0] sm:$0xff] %vm2094, %v1538
  %2122 = vst.msk [vmem:[%s3 + $0xd8] sm:$0xff] %vm2094, %v1553
  %2123 = vst.msk [vmem:[%s3 + $0xe0] sm:$0xff] %vm2094, %v1568
  %2124 = vst.msk [vmem:[%s3 + $0xe8] sm:$0xff] %vm2094, %v1583
  %2125 = vst.msk [vmem:[%s3 + $0xf0] sm:$0xff] %vm2094, %v1598
  %2126 = vst.msk [vmem:[%s3 + $0xf8] sm:$0xff] %vm2094, %v1613
  %2127 = vst.msk [vmem:[%s3 + $0x100] sm:$0xff] %vm2094, %v1628
  %2128 = vst.msk [vmem:[%s3 + $0x108] sm:$0xff] %vm2094, %v1643
  %2129 = vst.msk [vmem:[%s3 + $0x110] sm:$0xff] %vm2094, %v1658
  %2130 = vst.msk [vmem:[%s3 + $0x118] sm:$0xff] %vm2094, %v1673
  %2131 = vst.msk [vmem:[%s3 + $0x120] sm:$0xff] %vm2094, %v1688
  %2132 = vst.msk [vmem:[%s3 + $0x128] sm:$0xff] %vm2094, %v1703
  %2133 = vst.msk [vmem:[%s3 + $0x130] sm:$0xff] %vm2094, %v1718
  %2134 = vst.msk [vmem:[%s3 + $0x138] sm:$0xff] %vm2094, %v1733
  %2135 = vst.msk [vmem:[%s3 + $0x140] sm:$0xff] %vm2094, %v1748
  %2136 = vst.msk [vmem:[%s3 + $0x148] sm:$0xff] %vm2094, %v1763
  %2137 = vst.msk [vmem:[%s3 + $0x150] sm:$0xff] %vm2094, %v1778
  %2138 = vst.msk [vmem:[%s3 + $0x158] sm:$0xff] %vm2094, %v1793
  %2139 = vst.msk [vmem:[%s3 + $0x160] sm:$0xff] %vm2094, %v1808
  %2140 = vst.msk [vmem:[%s3 + $0x168] sm:$0xff] %vm2094, %v1823
  %2141 = vst.msk [vmem:[%s3 + $0x170] sm:$0xff] %vm2094, %v1838
  %2142 = vst.msk [vmem:[%s3 + $0x178] sm:$0xff] %vm2094, %v1853
  %2143 = vst.msk [vmem:[%s3 + $0x180] sm:$0xff] %vm2094, %v1868
  %2144 = vst.msk [vmem:[%s3 + $0x188] sm:$0xff] %vm2094, %v1883
  %2145 = vst.msk [vmem:[%s3 + $0x190] sm:$0xff] %vm2094, %v1898
  %2146 = vst.msk [vmem:[%s3 + $0x198] sm:$0xff] %vm2094, %v1913
  %2147 = vst.msk [vmem:[%s3 + $0x1a0] sm:$0xff] %vm2094, %v1928
  %2148 = vst.msk [vmem:[%s3 + $0x1a8] sm:$0xff] %vm2094, %v1943
  %2149 = vst.msk [vmem:[%s3 + $0x1b0] sm:$0xff] %vm2094, %v1958
  %2150 = vst.msk [vmem:[%s3 + $0x1b8] sm:$0xff] %vm2094, %v1973
  %2151 = vst.msk [vmem:[%s3 + $0x1c0] sm:$0xff] %vm2094, %v1988
  %2152 = vst.msk [vmem:[%s3 + $0x1c8] sm:$0xff] %vm2094, %v2003
  %2153 = vst.msk [vmem:[%s3 + $0x1d0] sm:$0xff] %vm2094, %v2018
  %2154 = vst.msk [vmem:[%s3 + $0x1d8] sm:$0xff] %vm2094, %v2033
  %2155 = vst.msk [vmem:[%s3 + $0x1e0] sm:$0xff] %vm2094, %v2048
  %2156 = vst.msk [vmem:[%s3 + $0x1e8] sm:$0xff] %vm2094, %v2063
  %2157 = vst.msk [vmem:[%s3 + $0x1f0] sm:$0xff] %vm2094, %v2078
  %2158 = vst.msk [vmem:[%s3 + $0x1f8] sm:$0xff] %vm2094, %v2093
  // Predicated region
  $region14: #{conv_vae_forward.13} parent=0 // pred_check
    _
  $region15: #{conv_vae_forward.13} parent=0 // pred_check_branch
    %2160 = sbr.rel (0) target = $region17
  $region16: #{conv_vae_forward.13} parent=0 // pred_region
    _
  $region17: #{conv_vae_forward.13} parent=0 // pred_fallthru
    _
  // Predicated region
  $region18: #{conv_vae_forward.13} parent=0 // pred_check
    _
  $region19: #{conv_vae_forward.13} parent=0 // pred_check_branch
    %2162 = sbr.rel (0) target = $region21
  $region20: #{conv_vae_forward.13} parent=0 // pred_region
    _
  $region21: #{conv_vae_forward.13} parent=0 // pred_fallthru
    _

</llo_original>
